<compile_context>
chip_gen: v7x
topology: tpu7x:2x2x1
jax: 0.10.0
libtpu: 0.0.40
codegen_flags: <defaults>
</compile_context>

<pallas_src>
import functools

import jax
import jax.numpy as jnp
import numpy as np
from jax import lax
from jax.experimental import pallas as pl
from jax.experimental.pallas import tpu as pltpu

LN_EPS = 1e-5
LANE = 128       # TPU lane width; all feature dims padded to this
SUB = 8          # sublane multiple for the GRU batch rows

# ----------------------------- config (small) --------------------------------
CHUNK_LEN = 4
BATCH = 2
AGENT_NUM = 3
OBS_DIM = 24
STATE_DIM = 40
ACTION_DIM = 12
HIDDEN_DIM = 32
ACTOR_RNN_LAYERS = 2
CRITIC_RNN_LAYERS = 1


def _ru(n, m):
    return ((n + m - 1) // m) * m


# ----------------------- fused per-branch kernel ------------------------------
def branch_kernel(x_ref, h0_ref,
                  w1_ref, b1_ref, g1_ref, be1_ref,
                  w2_ref, b2_ref, g2_ref, be2_ref,
                  wih_ref, whh_ref, bih_ref, bhh_ref,
                  wg_ref, bg_ref, wh_ref, bh_ref,
                  out_ref, hT_ref,
                  *, T, Bp, L, H, P):
    inv_h = 1.0 / float(H)

    def mlp_layer(x, w, b, g, be):
        h = jnp.dot(x, w, preferred_element_type=jnp.float32) + b
        h = jnp.maximum(h, 0.0)                                  # pad lanes stay 0
        mu = jnp.sum(h, axis=-1, keepdims=True) * inv_h          # pads are 0 -> exact mean
        var = jnp.sum(h * h, axis=-1, keepdims=True) * inv_h - mu * mu
        return (h - mu) * lax.rsqrt(var + LN_EPS) * g + be       # gamma pad = 0 -> pad lanes 0

    # ---- (Linear -> ReLU -> LayerNorm) x 2 over all T*Bp rows at once ----
    x = x_ref[...]                                               # [T*Bp, in_pad]
    m = mlp_layer(x, w1_ref[...], b1_ref[...], g1_ref[...], be1_ref[...])
    m = mlp_layer(m, w2_ref[...], b2_ref[...], g2_ref[...], be2_ref[...])   # [T*Bp, P]

    # ---- GRU: layer-0 input projection hoisted out of the time loop ----
    gi0 = jnp.dot(m, wih_ref[0], preferred_element_type=jnp.float32) + bih_ref[0]   # [T*Bp, 3P]

    h = [h0_ref[l] for l in range(L)]                            # each [Bp, P], lives in vregs
    outs = []
    for t in range(T):                                           # static unroll (T small)
        xl = None
        for l in range(L):
            if l == 0:
                gi = gi0[t * Bp:(t + 1) * Bp, :]                 # static, sublane-aligned slice
            else:
                gi = jnp.dot(xl, wih_ref[l], preferred_element_type=jnp.float32) + bih_ref[l]
            gh = jnp.dot(h[l], whh_ref[l], preferred_element_type=jnp.float32) + bhh_ref[l]
            # gate boundaries are vreg-aligned (P = 128) -> free slices, no XLU lane shuffles
            r = jax.nn.sigmoid(gi[:, 0:P] + gh[:, 0:P])
            z = jax.nn.sigmoid(gi[:, P:2 * P] + gh[:, P:2 * P])
            n = jnp.tanh(gi[:, 2 * P:3 * P] + r * gh[:, 2 * P:3 * P])
            h[l] = (1.0 - z) * n + z * h[l]                      # pad lanes: 0.5*0 + 0.5*0 = 0
            xl = h[l]
        outs.append(xl)
    rnn_out = jnp.concatenate(outs, axis=0)                      # [T*Bp, P], lane-dense

    for l in range(L):                                           # static-index, lane-dense stores
        hT_ref[l] = h[l]

    # ---- gate fusion + head: single big lane-dense matmuls over all rows ----
    gate = jax.nn.sigmoid(
        jnp.dot(m, wg_ref[...], preferred_element_type=jnp.float32) + bg_ref[...])
    feat = m + gate * rnn_out
    out_ref[...] = jnp.dot(feat, wh_ref[...], preferred_element_type=jnp.float32) + bh_ref[...]


def branch_forward(x_pad, h0_pad, p, *, T, Bp, L, H=HIDDEN_DIM, P=LANE):
    kernel = functools.partial(branch_kernel, T=T, Bp=Bp, L=L, H=H, P=P)
    args = (x_pad, h0_pad,
            p["w1"], p["b1"], p["g1"], p["be1"],
            p["w2"], p["b2"], p["g2"], p["be2"],
            p["wih"], p["whh"], p["bih"], p["bhh"],
            p["wg"], p["bg"], p["wh"], p["bh"])
    return pl.pallas_call(
        kernel,
        out_shape=(jax.ShapeDtypeStruct((T * Bp, P), jnp.float32),
                   jax.ShapeDtypeStruct((L, Bp, P), jnp.float32)),
        in_specs=[pl.BlockSpec(memory_space=pltpu.MemorySpace.VMEM)] * len(args),
        out_specs=(pl.BlockSpec(memory_space=pltpu.MemorySpace.VMEM),
                   pl.BlockSpec(memory_space=pltpu.MemorySpace.VMEM)),
    )(*args)


# --------------------------- parameter padding --------------------------------
def _pad2(w, rt, ct):
    return jnp.zeros((rt, ct), jnp.float32).at[:w.shape[0], :w.shape[1]].set(w)


def _pad_bias(b, ct):
    return jnp.zeros((1, ct), jnp.float32).at[:, :b.shape[1]].set(b)


def _pad_gru_w(w, H, P):
    # w: [L, in(=H), 3H] -> [L, P, 3P]; each gate block padded to its own 128-lane slot
    L = w.shape[0]
    out = jnp.zeros((L, P, 3 * P), jnp.float32)
    for k in range(3):
        out = out.at[:, :w.shape[1], k * P:k * P + H].set(w[:, :, k * H:(k + 1) * H])
    return out


def _pad_gru_b(b, H, P):
    L = b.shape[0]
    out = jnp.zeros((L, 1, 3 * P), jnp.float32)
    for k in range(3):
        out = out.at[:, :, k * P:k * P + H].set(b[:, :, k * H:(k + 1) * H])
    return out


def _pad_branch(net, rnn, gate, head, H=HIDDEN_DIM, P=LANE):
    in_pad = _ru(net["w1"].shape[0], P)
    return dict(
        w1=_pad2(net["w1"], in_pad, P), b1=_pad_bias(net["b1"], P),
        g1=_pad_bias(net["g1"], P), be1=_pad_bias(net["be1"], P),
        w2=_pad2(net["w2"], P, P), b2=_pad_bias(net["b2"], P),
        g2=_pad_bias(net["g2"], P), be2=_pad_bias(net["be2"], P),
        wih=_pad_gru_w(rnn["wih"], H, P), whh=_pad_gru_w(rnn["whh"], H, P),
        bih=_pad_gru_b(rnn["bih"], H, P), bhh=_pad_gru_b(rnn["bhh"], H, P),
        wg=_pad2(gate["w"], P, P), bg=_pad_bias(gate["b"], P),
        wh=_pad2(head["w"], P, P), bh=_pad_bias(head["b"], P),
    )


def prepare_padded_params(p):
    return dict(
        actor=_pad_branch(p["actor_net"], p["actor_rnn"], p["actor_gate"], p["actor_head"]),
        critic=_pad_branch(p["critic_net"], p["critic_rnn"], p["critic_gate"], p["critic_head"]),
    )


# ----------------------------- full forward -----------------------------------
def actor_critic_forward(padded_params, obs, state, actor_rnn_hidden, critic_rnn_hidden):
    T, bs, agn = obs.shape[:3]
    H, P = HIDDEN_DIM, LANE
    La, Lc = ACTOR_RNN_LAYERS, CRITIC_RNN_LAYERS

    # ---- actor branch ----
    Ba = bs * agn
    Bpa = _ru(Ba, SUB)
    in_a = _ru(OBS_DIM, P)
    obs_pad = jnp.zeros((T, Bpa, in_a), jnp.float32).at[:, :Ba, :OBS_DIM].set(
        obs.reshape(T, Ba, OBS_DIM))
    a_h0 = jnp.zeros((La, Bpa, P), jnp.float32).at[:, :Ba, :H].set(
        actor_rnn_hidden.reshape(La, Ba, H))
    a_out, a_hT = branch_forward(obs_pad.reshape(T * Bpa, in_a), a_h0,
                                 padded_params["actor"], T=T, Bp=Bpa, L=La)
    logits = a_out.reshape(T, Bpa, P)[:, :Ba, :ACTION_DIM].reshape(T, bs, agn, ACTION_DIM)
    ahout = a_hT[:, :Ba, :H].reshape(La, bs, agn, H)

    # ---- critic branch ----
    Bc = bs
    Bpc = _ru(Bc, SUB)
    in_c = _ru(STATE_DIM, P)
    st_pad = jnp.zeros((T, Bpc, in_c), jnp.float32).at[:, :Bc, :STATE_DIM].set(state)
    c_h0 = jnp.zeros((Lc, Bpc, P), jnp.float32).at[:, :Bc, :H].set(critic_rnn_hidden)
    c_out, c_hT = branch_forward(st_pad.reshape(T * Bpc, in_c), c_h0,
                                 padded_params["critic"], T=T, Bp=Bpc, L=Lc)
    value = c_out.reshape(T, Bpc, P)[:, :Bc, 0]                  # squeeze(-1)
    chout = c_hT[:, :Bc, :H]

    return logits, value, ahout, chout


# --------------------------- parameter construction ---------------------------
def init_params(key):
    keys = iter(jax.random.split(key, 32))

    def linear(in_dim, out_dim):
        w = jax.random.normal(next(keys), (in_dim, out_dim), jnp.float32) / np.sqrt(in_dim)
        b = jax.random.normal(next(keys), (1, out_dim), jnp.float32) * 0.01
        return w, b

    def mlp_params(in_dim, h):
        w1, b1 = linear(in_dim, h)
        w2, b2 = linear(h, h)
        return dict(w1=w1, b1=b1, g1=jnp.ones((1, h), jnp.float32), be1=jnp.zeros((1, h), jnp.float32),
                    w2=w2, b2=b2, g2=jnp.ones((1, h), jnp.float32), be2=jnp.zeros((1, h), jnp.float32))

    def gru_params(layers, h):
        # weights stored pre-transposed: [L, in, 3H]; biases zero (init_rnn zeros biases)
        wih = jax.random.normal(next(keys), (layers, h, 3 * h), jnp.float32) / np.sqrt(h)
        whh = jax.random.normal(next(keys), (layers, h, 3 * h), jnp.float32) / np.sqrt(h)
        bih = jnp.zeros((layers, 1, 3 * h), jnp.float32)
        bhh = jnp.zeros((layers, 1, 3 * h), jnp.float32)
        return dict(wih=wih, whh=whh, bih=bih, bhh=bhh)

    def lin_dict(in_dim, out_dim):
        w, b = linear(in_dim, out_dim)
        return dict(w=w, b=b)

    return dict(
        actor_net=mlp_params(OBS_DIM, HIDDEN_DIM),
        actor_rnn=gru_params(ACTOR_RNN_LAYERS, HIDDEN_DIM),
        actor_gate=lin_dict(HIDDEN_DIM, HIDDEN_DIM),
        actor_head=lin_dict(HIDDEN_DIM, ACTION_DIM),
        critic_net=mlp_params(STATE_DIM, HIDDEN_DIM),
        critic_rnn=gru_params(CRITIC_RNN_LAYERS, HIDDEN_DIM),
        critic_gate=lin_dict(HIDDEN_DIM, HIDDEN_DIM),
        critic_head=lin_dict(HIDDEN_DIM, 1),
    )


# ------------------------------ pure-JAX reference -----------------------------
def _ref_mlp(x, p):
    def layer(x, w, b, g, be):
        h = jnp.maximum(x @ w + b, 0.0)
        mu = h.mean(-1, keepdims=True)
        var = ((h - mu) ** 2).mean(-1, keepdims=True)
        return (h - mu) / jnp.sqrt(var + LN_EPS) * g + be
    h = layer(x, p["w1"], p["b1"], p["g1"], p["be1"])
    return layer(h, p["w2"], p["b2"], p["g2"], p["be2"])


def _ref_gru(x, h0, p):
    T = x.shape[0]
    L, _, H = h0.shape
    hs = [h0[l] for l in range(L)]
    outs = []
    for t in range(T):
        xt = x[t]
        for l in range(L):
            gi = xt @ p["wih"][l] + p["bih"][l]
            gh = hs[l] @ p["whh"][l] + p["bhh"][l]
            r = jax.nn.sigmoid(gi[:, :H] + gh[:, :H])
            z = jax.nn.sigmoid(gi[:, H:2 * H] + gh[:, H:2 * H])
            n = jnp.tanh(gi[:, 2 * H:] + r * gh[:, 2 * H:])
            hs[l] = (1.0 - z) * n + z * hs[l]
            xt = hs[l]
        outs.append(xt)
    return jnp.stack(outs, 0), jnp.stack(hs, 0)


def _ref_gate_head(m, r, gp, hp):
    g = jax.nn.sigmoid(m @ gp["w"] + gp["b"])
    feat = m + g * r
    return feat @ hp["w"] + hp["b"]


def _ref_forward(params, obs, state, a_hid, c_hid):
    T, bs, agn = obs.shape[:3]
    H = HIDDEN_DIM
    a_mlp = _ref_mlp(obs.reshape(-1, OBS_DIM), params["actor_net"])
    a_out, ah = _ref_gru(a_mlp.reshape(T, bs * agn, H),
                         a_hid.reshape(-1, bs * agn, H), params["actor_rnn"])
    logits = _ref_gate_head(a_mlp, a_out.reshape(-1, H),
                            params["actor_gate"], params["actor_head"]).reshape(T, bs, agn, ACTION_DIM)
    c_mlp = _ref_mlp(state.reshape(-1, STATE_DIM), params["critic_net"])
    c_out, ch = _ref_gru(c_mlp.reshape(T, bs, H), c_hid, params["critic_rnn"])
    value = _ref_gate_head(c_mlp, c_out.reshape(-1, H),
                           params["critic_gate"], params["critic_head"]).reshape(T, bs)
    return logits, value, ah.reshape(-1, bs, agn, H), ch


# ------------------------------------ main -------------------------------------
if __name__ == "__main__":
    key = jax.random.PRNGKey(0)
    kp, k1, k2, k3, k4 = jax.random.split(key, 5)

    params = init_params(kp)
    padded_params = prepare_padded_params(params)

    obs = jax.random.normal(k1, (CHUNK_LEN, BATCH, AGENT_NUM, OBS_DIM), jnp.float32)
    state = jax.random.normal(k2, (CHUNK_LEN, BATCH, STATE_DIM), jnp.float32)
    actor_rnn_hidden = jax.random.normal(
        k3, (ACTOR_RNN_LAYERS, BATCH, AGENT_NUM, HIDDEN_DIM), jnp.float32) * 0.1
    critic_rnn_hidden = jax.random.normal(
        k4, (CRITIC_RNN_LAYERS, BATCH, HIDDEN_DIM), jnp.float32) * 0.1

    fwd = jax.jit(actor_critic_forward)
    logits, value, ahout, chout = fwd(
        padded_params, obs, state, actor_rnn_hidden, critic_rnn_hidden)
    jax.block_until_ready((logits, value, ahout, chout))

    # correctness check against pure-JAX reference (unpadded params)
    r_logits, r_value, r_ah, r_ch = _ref_forward(
        params, obs, state, actor_rnn_hidden, critic_rnn_hidden)
    np.testing.assert_allclose(np.asarray(logits), np.asarray(r_logits), rtol=3e-4, atol=3e-4)
    np.testing.assert_allclose(np.asarray(value), np.asarray(r_value), rtol=3e-4, atol=3e-4)
    np.testing.assert_allclose(np.asarray(ahout), np.asarray(r_ah), rtol=3e-4, atol=3e-4)
    np.testing.assert_allclose(np.asarray(chout), np.asarray(r_ch), rtol=3e-4, atol=3e-4)

    print("KERNEL_OK")
</pallas_src>

<mosaic_0001>
module attributes {stable_mosaic.version = 11 : i64} {
  func.func @branch_kernel(%arg0: memref<32x128xf32, #tpu.memory_space<vmem>>, %arg1: memref<2x8x128xf32, #tpu.memory_space<vmem>>, %arg2: memref<128x128xf32, #tpu.memory_space<vmem>>, %arg3: memref<1x128xf32, #tpu.memory_space<vmem>>, %arg4: memref<1x128xf32, #tpu.memory_space<vmem>>, %arg5: memref<1x128xf32, #tpu.memory_space<vmem>>, %arg6: memref<128x128xf32, #tpu.memory_space<vmem>>, %arg7: memref<1x128xf32, #tpu.memory_space<vmem>>, %arg8: memref<1x128xf32, #tpu.memory_space<vmem>>, %arg9: memref<1x128xf32, #tpu.memory_space<vmem>>, %arg10: memref<2x128x384xf32, #tpu.memory_space<vmem>>, %arg11: memref<2x128x384xf32, #tpu.memory_space<vmem>>, %arg12: memref<2x1x384xf32, #tpu.memory_space<vmem>>, %arg13: memref<2x1x384xf32, #tpu.memory_space<vmem>>, %arg14: memref<128x128xf32, #tpu.memory_space<vmem>>, %arg15: memref<1x128xf32, #tpu.memory_space<vmem>>, %arg16: memref<128x128xf32, #tpu.memory_space<vmem>>, %arg17: memref<1x128xf32, #tpu.memory_space<vmem>>, %arg18: memref<32x128xf32, #tpu.memory_space<vmem>>, %arg19: memref<2x8x128xf32, #tpu.memory_space<vmem>>) attributes {dimension_semantics = [], scalar_prefetch = 0 : i64, scratch_operands = 0 : i64, tpu.core_type = #tpu.core_type<tc>} {
    %c0 = arith.constant 0 : index
    %c0_0 = arith.constant 0 : index
    %0 = vector.load %arg0[%c0, %c0_0] : memref<32x128xf32, #tpu.memory_space<vmem>>, vector<32x128xf32>
    %c0_1 = arith.constant 0 : index
    %c0_2 = arith.constant 0 : index
    %1 = vector.load %arg2[%c0_1, %c0_2] : memref<128x128xf32, #tpu.memory_space<vmem>>, vector<128x128xf32>
    %c0_3 = arith.constant 0 : index
    %c0_4 = arith.constant 0 : index
    %2 = vector.load %arg3[%c0_3, %c0_4] : memref<1x128xf32, #tpu.memory_space<vmem>>, vector<1x128xf32>
    %c0_5 = arith.constant 0 : index
    %c0_6 = arith.constant 0 : index
    %3 = vector.load %arg4[%c0_5, %c0_6] : memref<1x128xf32, #tpu.memory_space<vmem>>, vector<1x128xf32>
    %c0_7 = arith.constant 0 : index
    %c0_8 = arith.constant 0 : index
    %4 = vector.load %arg5[%c0_7, %c0_8] : memref<1x128xf32, #tpu.memory_space<vmem>>, vector<1x128xf32>
    %cst = arith.constant dense<0.000000e+00> : vector<32x128xf32>
    %5 = tpu.matmul %0, %1, %cst {dimension_numbers = #tpu.dot_dimension_numbers<[1], [0], [0], [1], [0, 0, 1, 1], [], []>} : vector<32x128xf32>, vector<128x128xf32>, vector<32x128xf32> -> vector<32x128xf32>
    %6 = vector.broadcast %2 : vector<1x128xf32> to vector<32x128xf32>
    %7 = arith.addf %5, %6 : vector<32x128xf32>
    %cst_9 = arith.constant 0.000000e+00 : f32
    %8 = vector.broadcast %cst_9 : f32 to vector<32x128xf32>
    %9 = arith.maximumf %7, %8 : vector<32x128xf32>
    %cst_10 = arith.constant dense<0.000000e+00> : vector<32xf32>
    %10 = vector.multi_reduction <add>, %9, %cst_10 [1] : vector<32x128xf32> to vector<32xf32>
    %11 = vector.shape_cast %10 : vector<32xf32> to vector<32x1xf32>
    %cst_11 = arith.constant 3.125000e-02 : f32
    %12 = vector.broadcast %cst_11 : f32 to vector<32x1xf32>
    %13 = arith.mulf %11, %12 : vector<32x1xf32>
    %14 = arith.mulf %9, %9 : vector<32x128xf32>
    %cst_12 = arith.constant dense<0.000000e+00> : vector<32xf32>
    %15 = vector.multi_reduction <add>, %14, %cst_12 [1] : vector<32x128xf32> to vector<32xf32>
    %16 = vector.shape_cast %15 : vector<32xf32> to vector<32x1xf32>
    %cst_13 = arith.constant 3.125000e-02 : f32
    %17 = vector.broadcast %cst_13 : f32 to vector<32x1xf32>
    %18 = arith.mulf %16, %17 : vector<32x1xf32>
    %19 = arith.mulf %13, %13 : vector<32x1xf32>
    %20 = arith.subf %18, %19 : vector<32x1xf32>
    %21 = vector.broadcast %13 : vector<32x1xf32> to vector<32x128xf32>
    %22 = arith.subf %9, %21 : vector<32x128xf32>
    %cst_14 = arith.constant 9.99999974E-6 : f32
    %23 = vector.broadcast %cst_14 : f32 to vector<32x1xf32>
    %24 = arith.addf %20, %23 : vector<32x1xf32>
    %25 = math.rsqrt %24 : vector<32x1xf32>
    %26 = vector.broadcast %25 : vector<32x1xf32> to vector<32x128xf32>
    %27 = arith.mulf %22, %26 : vector<32x128xf32>
    %28 = vector.broadcast %3 : vector<1x128xf32> to vector<32x128xf32>
    %29 = arith.mulf %27, %28 : vector<32x128xf32>
    %30 = vector.broadcast %4 : vector<1x128xf32> to vector<32x128xf32>
    %31 = arith.addf %29, %30 : vector<32x128xf32>
    %c0_15 = arith.constant 0 : index
    %c0_16 = arith.constant 0 : index
    %32 = vector.load %arg6[%c0_15, %c0_16] : memref<128x128xf32, #tpu.memory_space<vmem>>, vector<128x128xf32>
    %c0_17 = arith.constant 0 : index
    %c0_18 = arith.constant 0 : index
    %33 = vector.load %arg7[%c0_17, %c0_18] : memref<1x128xf32, #tpu.memory_space<vmem>>, vector<1x128xf32>
    %c0_19 = arith.constant 0 : index
    %c0_20 = arith.constant 0 : index
    %34 = vector.load %arg8[%c0_19, %c0_20] : memref<1x128xf32, #tpu.memory_space<vmem>>, vector<1x128xf32>
    %c0_21 = arith.constant 0 : index
    %c0_22 = arith.constant 0 : index
    %35 = vector.load %arg9[%c0_21, %c0_22] : memref<1x128xf32, #tpu.memory_space<vmem>>, vector<1x128xf32>
    %cst_23 = arith.constant dense<0.000000e+00> : vector<32x128xf32>
    %36 = tpu.matmul %31, %32, %cst_23 {dimension_numbers = #tpu.dot_dimension_numbers<[1], [0], [0], [1], [0, 0, 1, 1], [], []>} : vector<32x128xf32>, vector<128x128xf32>, vector<32x128xf32> -> vector<32x128xf32>
    %37 = vector.broadcast %33 : vector<1x128xf32> to vector<32x128xf32>
    %38 = arith.addf %36, %37 : vector<32x128xf32>
    %cst_24 = arith.constant 0.000000e+00 : f32
    %39 = vector.broadcast %cst_24 : f32 to vector<32x128xf32>
    %40 = arith.maximumf %38, %39 : vector<32x128xf32>
    %cst_25 = arith.constant dense<0.000000e+00> : vector<32xf32>
    %41 = vector.multi_reduction <add>, %40, %cst_25 [1] : vector<32x128xf32> to vector<32xf32>
    %42 = vector.shape_cast %41 : vector<32xf32> to vector<32x1xf32>
    %cst_26 = arith.constant 3.125000e-02 : f32
    %43 = vector.broadcast %cst_26 : f32 to vector<32x1xf32>
    %44 = arith.mulf %42, %43 : vector<32x1xf32>
    %45 = arith.mulf %40, %40 : vector<32x128xf32>
    %cst_27 = arith.constant dense<0.000000e+00> : vector<32xf32>
    %46 = vector.multi_reduction <add>, %45, %cst_27 [1] : vector<32x128xf32> to vector<32xf32>
    %47 = vector.shape_cast %46 : vector<32xf32> to vector<32x1xf32>
    %cst_28 = arith.constant 3.125000e-02 : f32
    %48 = vector.broadcast %cst_28 : f32 to vector<32x1xf32>
    %49 = arith.mulf %47, %48 : vector<32x1xf32>
    %50 = arith.mulf %44, %44 : vector<32x1xf32>
    %51 = arith.subf %49, %50 : vector<32x1xf32>
    %52 = vector.broadcast %44 : vector<32x1xf32> to vector<32x128xf32>
    %53 = arith.subf %40, %52 : vector<32x128xf32>
    %cst_29 = arith.constant 9.99999974E-6 : f32
    %54 = vector.broadcast %cst_29 : f32 to vector<32x1xf32>
    %55 = arith.addf %51, %54 : vector<32x1xf32>
    %56 = math.rsqrt %55 : vector<32x1xf32>
    %57 = vector.broadcast %56 : vector<32x1xf32> to vector<32x128xf32>
    %58 = arith.mulf %53, %57 : vector<32x128xf32>
    %59 = vector.broadcast %34 : vector<1x128xf32> to vector<32x128xf32>
    %60 = arith.mulf %58, %59 : vector<32x128xf32>
    %61 = vector.broadcast %35 : vector<1x128xf32> to vector<32x128xf32>
    %62 = arith.addf %60, %61 : vector<32x128xf32>
    %c0_30 = arith.constant 0 : index
    %c0_31 = arith.constant 0 : index
    %c0_32 = arith.constant 0 : index
    %63 = vector.load %arg10[%c0_30, %c0_31, %c0_32] : memref<2x128x384xf32, #tpu.memory_space<vmem>>, vector<1x128x384xf32>
    %64 = vector.shape_cast %63 : vector<1x128x384xf32> to vector<128x384xf32>
    %cst_33 = arith.constant dense<0.000000e+00> : vector<32x384xf32>
    %65 = tpu.matmul %62, %64, %cst_33 {dimension_numbers = #tpu.dot_dimension_numbers<[1], [0], [0], [1], [0, 0, 1, 1], [], []>} : vector<32x128xf32>, vector<128x384xf32>, vector<32x384xf32> -> vector<32x384xf32>
    %c0_34 = arith.constant 0 : index
    %c0_35 = arith.constant 0 : index
    %c0_36 = arith.constant 0 : index
    %66 = vector.load %arg12[%c0_34, %c0_35, %c0_36] : memref<2x1x384xf32, #tpu.memory_space<vmem>>, vector<1x1x384xf32>
    %67 = vector.shape_cast %66 : vector<1x1x384xf32> to vector<1x384xf32>
    %68 = vector.broadcast %67 : vector<1x384xf32> to vector<32x384xf32>
    %69 = arith.addf %65, %68 : vector<32x384xf32>
    %c0_37 = arith.constant 0 : index
    %c0_38 = arith.constant 0 : index
    %c0_39 = arith.constant 0 : index
    %70 = vector.load %arg1[%c0_37, %c0_38, %c0_39] : memref<2x8x128xf32, #tpu.memory_space<vmem>>, vector<1x8x128xf32>
    %71 = vector.shape_cast %70 : vector<1x8x128xf32> to vector<8x128xf32>
    %c1 = arith.constant 1 : index
    %c0_40 = arith.constant 0 : index
    %c0_41 = arith.constant 0 : index
    %72 = vector.load %arg1[%c1, %c0_40, %c0_41] : memref<2x8x128xf32, #tpu.memory_space<vmem>>, vector<1x8x128xf32>
    %73 = vector.shape_cast %72 : vector<1x8x128xf32> to vector<8x128xf32>
    %74 = vector.extract_strided_slice %69 {offsets = [0, 0], sizes = [8, 384], strides = [1, 1]} : vector<32x384xf32> to vector<8x384xf32>
    %c0_42 = arith.constant 0 : index
    %c0_43 = arith.constant 0 : index
    %c0_44 = arith.constant 0 : index
    %75 = vector.load %arg11[%c0_42, %c0_43, %c0_44] : memref<2x128x384xf32, #tpu.memory_space<vmem>>, vector<1x128x384xf32>
    %76 = vector.shape_cast %75 : vector<1x128x384xf32> to vector<128x384xf32>
    %cst_45 = arith.constant dense<0.000000e+00> : vector<8x384xf32>
    %77 = tpu.matmul %71, %76, %cst_45 {dimension_numbers = #tpu.dot_dimension_numbers<[1], [0], [0], [1], [0, 0, 1, 1], [], []>} : vector<8x128xf32>, vector<128x384xf32>, vector<8x384xf32> -> vector<8x384xf32>
    %c0_46 = arith.constant 0 : index
    %c0_47 = arith.constant 0 : index
    %c0_48 = arith.constant 0 : index
    %78 = vector.load %arg13[%c0_46, %c0_47, %c0_48] : memref<2x1x384xf32, #tpu.memory_space<vmem>>, vector<1x1x384xf32>
    %79 = vector.shape_cast %78 : vector<1x1x384xf32> to vector<1x384xf32>
    %80 = vector.broadcast %79 : vector<1x384xf32> to vector<8x384xf32>
    %81 = arith.addf %77, %80 : vector<8x384xf32>
    %82 = vector.extract_strided_slice %74 {offsets = [0, 0], sizes = [8, 128], strides = [1, 1]} : vector<8x384xf32> to vector<8x128xf32>
    %83 = vector.extract_strided_slice %81 {offsets = [0, 0], sizes = [8, 128], strides = [1, 1]} : vector<8x384xf32> to vector<8x128xf32>
    %84 = arith.addf %82, %83 : vector<8x128xf32>
    %85 = arith.negf %84 : vector<8x128xf32>
    %86 = math.exp %85 : vector<8x128xf32>
    %cst_49 = arith.constant 1.000000e+00 : f32
    %87 = vector.broadcast %cst_49 : f32 to vector<8x128xf32>
    %88 = arith.addf %87, %86 : vector<8x128xf32>
    %89 = arith.divf %87, %88 : vector<8x128xf32>
    %90 = vector.extract_strided_slice %74 {offsets = [0, 128], sizes = [8, 128], strides = [1, 1]} : vector<8x384xf32> to vector<8x128xf32>
    %91 = vector.extract_strided_slice %81 {offsets = [0, 128], sizes = [8, 128], strides = [1, 1]} : vector<8x384xf32> to vector<8x128xf32>
    %92 = arith.addf %90, %91 : vector<8x128xf32>
    %93 = arith.negf %92 : vector<8x128xf32>
    %94 = math.exp %93 : vector<8x128xf32>
    %cst_50 = arith.constant 1.000000e+00 : f32
    %95 = vector.broadcast %cst_50 : f32 to vector<8x128xf32>
    %96 = arith.addf %95, %94 : vector<8x128xf32>
    %97 = arith.divf %95, %96 : vector<8x128xf32>
    %98 = vector.extract_strided_slice %74 {offsets = [0, 256], sizes = [8, 128], strides = [1, 1]} : vector<8x384xf32> to vector<8x128xf32>
    %99 = vector.extract_strided_slice %81 {offsets = [0, 256], sizes = [8, 128], strides = [1, 1]} : vector<8x384xf32> to vector<8x128xf32>
    %100 = arith.mulf %89, %99 : vector<8x128xf32>
    %101 = arith.addf %98, %100 : vector<8x128xf32>
    %102 = math.tanh %101 : vector<8x128xf32>
    %cst_51 = arith.constant 1.000000e+00 : f32
    %103 = vector.broadcast %cst_51 : f32 to vector<8x128xf32>
    %104 = arith.subf %103, %97 : vector<8x128xf32>
    %105 = arith.mulf %104, %102 : vector<8x128xf32>
    %106 = arith.mulf %97, %71 : vector<8x128xf32>
    %107 = arith.addf %105, %106 : vector<8x128xf32>
    %c1_52 = arith.constant 1 : index
    %c0_53 = arith.constant 0 : index
    %c0_54 = arith.constant 0 : index
    %108 = vector.load %arg10[%c1_52, %c0_53, %c0_54] : memref<2x128x384xf32, #tpu.memory_space<vmem>>, vector<1x128x384xf32>
    %109 = vector.shape_cast %108 : vector<1x128x384xf32> to vector<128x384xf32>
    %cst_55 = arith.constant dense<0.000000e+00> : vector<8x384xf32>
    %110 = tpu.matmul %107, %109, %cst_55 {dimension_numbers = #tpu.dot_dimension_numbers<[1], [0], [0], [1], [0, 0, 1, 1], [], []>} : vector<8x128xf32>, vector<128x384xf32>, vector<8x384xf32> -> vector<8x384xf32>
    %c1_56 = arith.constant 1 : index
    %c0_57 = arith.constant 0 : index
    %c0_58 = arith.constant 0 : index
    %111 = vector.load %arg12[%c1_56, %c0_57, %c0_58] : memref<2x1x384xf32, #tpu.memory_space<vmem>>, vector<1x1x384xf32>
    %112 = vector.shape_cast %111 : vector<1x1x384xf32> to vector<1x384xf32>
    %113 = vector.broadcast %112 : vector<1x384xf32> to vector<8x384xf32>
    %114 = arith.addf %110, %113 : vector<8x384xf32>
    %c1_59 = arith.constant 1 : index
    %c0_60 = arith.constant 0 : index
    %c0_61 = arith.constant 0 : index
    %115 = vector.load %arg11[%c1_59, %c0_60, %c0_61] : memref<2x128x384xf32, #tpu.memory_space<vmem>>, vector<1x128x384xf32>
    %116 = vector.shape_cast %115 : vector<1x128x384xf32> to vector<128x384xf32>
    %cst_62 = arith.constant dense<0.000000e+00> : vector<8x384xf32>
    %117 = tpu.matmul %73, %116, %cst_62 {dimension_numbers = #tpu.dot_dimension_numbers<[1], [0], [0], [1], [0, 0, 1, 1], [], []>} : vector<8x128xf32>, vector<128x384xf32>, vector<8x384xf32> -> vector<8x384xf32>
    %c1_63 = arith.constant 1 : index
    %c0_64 = arith.constant 0 : index
    %c0_65 = arith.constant 0 : index
    %118 = vector.load %arg13[%c1_63, %c0_64, %c0_65] : memref<2x1x384xf32, #tpu.memory_space<vmem>>, vector<1x1x384xf32>
    %119 = vector.shape_cast %118 : vector<1x1x384xf32> to vector<1x384xf32>
    %120 = vector.broadcast %119 : vector<1x384xf32> to vector<8x384xf32>
    %121 = arith.addf %117, %120 : vector<8x384xf32>
    %122 = vector.extract_strided_slice %114 {offsets = [0, 0], sizes = [8, 128], strides = [1, 1]} : vector<8x384xf32> to vector<8x128xf32>
    %123 = vector.extract_strided_slice %121 {offsets = [0, 0], sizes = [8, 128], strides = [1, 1]} : vector<8x384xf32> to vector<8x128xf32>
    %124 = arith.addf %122, %123 : vector<8x128xf32>
    %125 = arith.negf %124 : vector<8x128xf32>
    %126 = math.exp %125 : vector<8x128xf32>
    %cst_66 = arith.constant 1.000000e+00 : f32
    %127 = vector.broadcast %cst_66 : f32 to vector<8x128xf32>
    %128 = arith.addf %127, %126 : vector<8x128xf32>
    %129 = arith.divf %127, %128 : vector<8x128xf32>
    %130 = vector.extract_strided_slice %114 {offsets = [0, 128], sizes = [8, 128], strides = [1, 1]} : vector<8x384xf32> to vector<8x128xf32>
    %131 = vector.extract_strided_slice %121 {offsets = [0, 128], sizes = [8, 128], strides = [1, 1]} : vector<8x384xf32> to vector<8x128xf32>
    %132 = arith.addf %130, %131 : vector<8x128xf32>
    %133 = arith.negf %132 : vector<8x128xf32>
    %134 = math.exp %133 : vector<8x128xf32>
    %cst_67 = arith.constant 1.000000e+00 : f32
    %135 = vector.broadcast %cst_67 : f32 to vector<8x128xf32>
    %136 = arith.addf %135, %134 : vector<8x128xf32>
    %137 = arith.divf %135, %136 : vector<8x128xf32>
    %138 = vector.extract_strided_slice %114 {offsets = [0, 256], sizes = [8, 128], strides = [1, 1]} : vector<8x384xf32> to vector<8x128xf32>
    %139 = vector.extract_strided_slice %121 {offsets = [0, 256], sizes = [8, 128], strides = [1, 1]} : vector<8x384xf32> to vector<8x128xf32>
    %140 = arith.mulf %129, %139 : vector<8x128xf32>
    %141 = arith.addf %138, %140 : vector<8x128xf32>
    %142 = math.tanh %141 : vector<8x128xf32>
    %cst_68 = arith.constant 1.000000e+00 : f32
    %143 = vector.broadcast %cst_68 : f32 to vector<8x128xf32>
    %144 = arith.subf %143, %137 : vector<8x128xf32>
    %145 = arith.mulf %144, %142 : vector<8x128xf32>
    %146 = arith.mulf %137, %73 : vector<8x128xf32>
    %147 = arith.addf %145, %146 : vector<8x128xf32>
    %148 = vector.extract_strided_slice %69 {offsets = [8, 0], sizes = [8, 384], strides = [1, 1]} : vector<32x384xf32> to vector<8x384xf32>
    %c0_69 = arith.constant 0 : index
    %c0_70 = arith.constant 0 : index
    %c0_71 = arith.constant 0 : index
    %149 = vector.load %arg11[%c0_69, %c0_70, %c0_71] : memref<2x128x384xf32, #tpu.memory_space<vmem>>, vector<1x128x384xf32>
    %150 = vector.shape_cast %149 : vector<1x128x384xf32> to vector<128x384xf32>
    %cst_72 = arith.constant dense<0.000000e+00> : vector<8x384xf32>
    %151 = tpu.matmul %107, %150, %cst_72 {dimension_numbers = #tpu.dot_dimension_numbers<[1], [0], [0], [1], [0, 0, 1, 1], [], []>} : vector<8x128xf32>, vector<128x384xf32>, vector<8x384xf32> -> vector<8x384xf32>
    %c0_73 = arith.constant 0 : index
    %c0_74 = arith.constant 0 : index
    %c0_75 = arith.constant 0 : index
    %152 = vector.load %arg13[%c0_73, %c0_74, %c0_75] : memref<2x1x384xf32, #tpu.memory_space<vmem>>, vector<1x1x384xf32>
    %153 = vector.shape_cast %152 : vector<1x1x384xf32> to vector<1x384xf32>
    %154 = vector.broadcast %153 : vector<1x384xf32> to vector<8x384xf32>
    %155 = arith.addf %151, %154 : vector<8x384xf32>
    %156 = vector.extract_strided_slice %148 {offsets = [0, 0], sizes = [8, 128], strides = [1, 1]} : vector<8x384xf32> to vector<8x128xf32>
    %157 = vector.extract_strided_slice %155 {offsets = [0, 0], sizes = [8, 128], strides = [1, 1]} : vector<8x384xf32> to vector<8x128xf32>
    %158 = arith.addf %156, %157 : vector<8x128xf32>
    %159 = arith.negf %158 : vector<8x128xf32>
    %160 = math.exp %159 : vector<8x128xf32>
    %cst_76 = arith.constant 1.000000e+00 : f32
    %161 = vector.broadcast %cst_76 : f32 to vector<8x128xf32>
    %162 = arith.addf %161, %160 : vector<8x128xf32>
    %163 = arith.divf %161, %162 : vector<8x128xf32>
    %164 = vector.extract_strided_slice %148 {offsets = [0, 128], sizes = [8, 128], strides = [1, 1]} : vector<8x384xf32> to vector<8x128xf32>
    %165 = vector.extract_strided_slice %155 {offsets = [0, 128], sizes = [8, 128], strides = [1, 1]} : vector<8x384xf32> to vector<8x128xf32>
    %166 = arith.addf %164, %165 : vector<8x128xf32>
    %167 = arith.negf %166 : vector<8x128xf32>
    %168 = math.exp %167 : vector<8x128xf32>
    %cst_77 = arith.constant 1.000000e+00 : f32
    %169 = vector.broadcast %cst_77 : f32 to vector<8x128xf32>
    %170 = arith.addf %169, %168 : vector<8x128xf32>
    %171 = arith.divf %169, %170 : vector<8x128xf32>
    %172 = vector.extract_strided_slice %148 {offsets = [0, 256], sizes = [8, 128], strides = [1, 1]} : vector<8x384xf32> to vector<8x128xf32>
    %173 = vector.extract_strided_slice %155 {offsets = [0, 256], sizes = [8, 128], strides = [1, 1]} : vector<8x384xf32> to vector<8x128xf32>
    %174 = arith.mulf %163, %173 : vector<8x128xf32>
    %175 = arith.addf %172, %174 : vector<8x128xf32>
    %176 = math.tanh %175 : vector<8x128xf32>
    %cst_78 = arith.constant 1.000000e+00 : f32
    %177 = vector.broadcast %cst_78 : f32 to vector<8x128xf32>
    %178 = arith.subf %177, %171 : vector<8x128xf32>
    %179 = arith.mulf %178, %176 : vector<8x128xf32>
    %180 = arith.mulf %171, %107 : vector<8x128xf32>
    %181 = arith.addf %179, %180 : vector<8x128xf32>
    %c1_79 = arith.constant 1 : index
    %c0_80 = arith.constant 0 : index
    %c0_81 = arith.constant 0 : index
    %182 = vector.load %arg10[%c1_79, %c0_80, %c0_81] : memref<2x128x384xf32, #tpu.memory_space<vmem>>, vector<1x128x384xf32>
    %183 = vector.shape_cast %182 : vector<1x128x384xf32> to vector<128x384xf32>
    %cst_82 = arith.constant dense<0.000000e+00> : vector<8x384xf32>
    %184 = tpu.matmul %181, %183, %cst_82 {dimension_numbers = #tpu.dot_dimension_numbers<[1], [0], [0], [1], [0, 0, 1, 1], [], []>} : vector<8x128xf32>, vector<128x384xf32>, vector<8x384xf32> -> vector<8x384xf32>
    %c1_83 = arith.constant 1 : index
    %c0_84 = arith.constant 0 : index
    %c0_85 = arith.constant 0 : index
    %185 = vector.load %arg12[%c1_83, %c0_84, %c0_85] : memref<2x1x384xf32, #tpu.memory_space<vmem>>, vector<1x1x384xf32>
    %186 = vector.shape_cast %185 : vector<1x1x384xf32> to vector<1x384xf32>
    %187 = vector.broadcast %186 : vector<1x384xf32> to vector<8x384xf32>
    %188 = arith.addf %184, %187 : vector<8x384xf32>
    %c1_86 = arith.constant 1 : index
    %c0_87 = arith.constant 0 : index
    %c0_88 = arith.constant 0 : index
    %189 = vector.load %arg11[%c1_86, %c0_87, %c0_88] : memref<2x128x384xf32, #tpu.memory_space<vmem>>, vector<1x128x384xf32>
    %190 = vector.shape_cast %189 : vector<1x128x384xf32> to vector<128x384xf32>
    %cst_89 = arith.constant dense<0.000000e+00> : vector<8x384xf32>
    %191 = tpu.matmul %147, %190, %cst_89 {dimension_numbers = #tpu.dot_dimension_numbers<[1], [0], [0], [1], [0, 0, 1, 1], [], []>} : vector<8x128xf32>, vector<128x384xf32>, vector<8x384xf32> -> vector<8x384xf32>
    %c1_90 = arith.constant 1 : index
    %c0_91 = arith.constant 0 : index
    %c0_92 = arith.constant 0 : index
    %192 = vector.load %arg13[%c1_90, %c0_91, %c0_92] : memref<2x1x384xf32, #tpu.memory_space<vmem>>, vector<1x1x384xf32>
    %193 = vector.shape_cast %192 : vector<1x1x384xf32> to vector<1x384xf32>
    %194 = vector.broadcast %193 : vector<1x384xf32> to vector<8x384xf32>
    %195 = arith.addf %191, %194 : vector<8x384xf32>
    %196 = vector.extract_strided_slice %188 {offsets = [0, 0], sizes = [8, 128], strides = [1, 1]} : vector<8x384xf32> to vector<8x128xf32>
    %197 = vector.extract_strided_slice %195 {offsets = [0, 0], sizes = [8, 128], strides = [1, 1]} : vector<8x384xf32> to vector<8x128xf32>
    %198 = arith.addf %196, %197 : vector<8x128xf32>
    %199 = arith.negf %198 : vector<8x128xf32>
    %200 = math.exp %199 : vector<8x128xf32>
    %cst_93 = arith.constant 1.000000e+00 : f32
    %201 = vector.broadcast %cst_93 : f32 to vector<8x128xf32>
    %202 = arith.addf %201, %200 : vector<8x128xf32>
    %203 = arith.divf %201, %202 : vector<8x128xf32>
    %204 = vector.extract_strided_slice %188 {offsets = [0, 128], sizes = [8, 128], strides = [1, 1]} : vector<8x384xf32> to vector<8x128xf32>
    %205 = vector.extract_strided_slice %195 {offsets = [0, 128], sizes = [8, 128], strides = [1, 1]} : vector<8x384xf32> to vector<8x128xf32>
    %206 = arith.addf %204, %205 : vector<8x128xf32>
    %207 = arith.negf %206 : vector<8x128xf32>
    %208 = math.exp %207 : vector<8x128xf32>
    %cst_94 = arith.constant 1.000000e+00 : f32
    %209 = vector.broadcast %cst_94 : f32 to vector<8x128xf32>
    %210 = arith.addf %209, %208 : vector<8x128xf32>
    %211 = arith.divf %209, %210 : vector<8x128xf32>
    %212 = vector.extract_strided_slice %188 {offsets = [0, 256], sizes = [8, 128], strides = [1, 1]} : vector<8x384xf32> to vector<8x128xf32>
    %213 = vector.extract_strided_slice %195 {offsets = [0, 256], sizes = [8, 128], strides = [1, 1]} : vector<8x384xf32> to vector<8x128xf32>
    %214 = arith.mulf %203, %213 : vector<8x128xf32>
    %215 = arith.addf %212, %214 : vector<8x128xf32>
    %216 = math.tanh %215 : vector<8x128xf32>
    %cst_95 = arith.constant 1.000000e+00 : f32
    %217 = vector.broadcast %cst_95 : f32 to vector<8x128xf32>
    %218 = arith.subf %217, %211 : vector<8x128xf32>
    %219 = arith.mulf %218, %216 : vector<8x128xf32>
    %220 = arith.mulf %211, %147 : vector<8x128xf32>
    %221 = arith.addf %219, %220 : vector<8x128xf32>
    %222 = vector.extract_strided_slice %69 {offsets = [16, 0], sizes = [8, 384], strides = [1, 1]} : vector<32x384xf32> to vector<8x384xf32>
    %c0_96 = arith.constant 0 : index
    %c0_97 = arith.constant 0 : index
    %c0_98 = arith.constant 0 : index
    %223 = vector.load %arg11[%c0_96, %c0_97, %c0_98] : memref<2x128x384xf32, #tpu.memory_space<vmem>>, vector<1x128x384xf32>
    %224 = vector.shape_cast %223 : vector<1x128x384xf32> to vector<128x384xf32>
    %cst_99 = arith.constant dense<0.000000e+00> : vector<8x384xf32>
    %225 = tpu.matmul %181, %224, %cst_99 {dimension_numbers = #tpu.dot_dimension_numbers<[1], [0], [0], [1], [0, 0, 1, 1], [], []>} : vector<8x128xf32>, vector<128x384xf32>, vector<8x384xf32> -> vector<8x384xf32>
    %c0_100 = arith.constant 0 : index
    %c0_101 = arith.constant 0 : index
    %c0_102 = arith.constant 0 : index
    %226 = vector.load %arg13[%c0_100, %c0_101, %c0_102] : memref<2x1x384xf32, #tpu.memory_space<vmem>>, vector<1x1x384xf32>
    %227 = vector.shape_cast %226 : vector<1x1x384xf32> to vector<1x384xf32>
    %228 = vector.broadcast %227 : vector<1x384xf32> to vector<8x384xf32>
    %229 = arith.addf %225, %228 : vector<8x384xf32>
    %230 = vector.extract_strided_slice %222 {offsets = [0, 0], sizes = [8, 128], strides = [1, 1]} : vector<8x384xf32> to vector<8x128xf32>
    %231 = vector.extract_strided_slice %229 {offsets = [0, 0], sizes = [8, 128], strides = [1, 1]} : vector<8x384xf32> to vector<8x128xf32>
    %232 = arith.addf %230, %231 : vector<8x128xf32>
    %233 = arith.negf %232 : vector<8x128xf32>
    %234 = math.exp %233 : vector<8x128xf32>
    %cst_103 = arith.constant 1.000000e+00 : f32
    %235 = vector.broadcast %cst_103 : f32 to vector<8x128xf32>
    %236 = arith.addf %235, %234 : vector<8x128xf32>
    %237 = arith.divf %235, %236 : vector<8x128xf32>
    %238 = vector.extract_strided_slice %222 {offsets = [0, 128], sizes = [8, 128], strides = [1, 1]} : vector<8x384xf32> to vector<8x128xf32>
    %239 = vector.extract_strided_slice %229 {offsets = [0, 128], sizes = [8, 128], strides = [1, 1]} : vector<8x384xf32> to vector<8x128xf32>
    %240 = arith.addf %238, %239 : vector<8x128xf32>
    %241 = arith.negf %240 : vector<8x128xf32>
    %242 = math.exp %241 : vector<8x128xf32>
    %cst_104 = arith.constant 1.000000e+00 : f32
    %243 = vector.broadcast %cst_104 : f32 to vector<8x128xf32>
    %244 = arith.addf %243, %242 : vector<8x128xf32>
    %245 = arith.divf %243, %244 : vector<8x128xf32>
    %246 = vector.extract_strided_slice %222 {offsets = [0, 256], sizes = [8, 128], strides = [1, 1]} : vector<8x384xf32> to vector<8x128xf32>
    %247 = vector.extract_strided_slice %229 {offsets = [0, 256], sizes = [8, 128], strides = [1, 1]} : vector<8x384xf32> to vector<8x128xf32>
    %248 = arith.mulf %237, %247 : vector<8x128xf32>
    %249 = arith.addf %246, %248 : vector<8x128xf32>
    %250 = math.tanh %249 : vector<8x128xf32>
    %cst_105 = arith.constant 1.000000e+00 : f32
    %251 = vector.broadcast %cst_105 : f32 to vector<8x128xf32>
    %252 = arith.subf %251, %245 : vector<8x128xf32>
    %253 = arith.mulf %252, %250 : vector<8x128xf32>
    %254 = arith.mulf %245, %181 : vector<8x128xf32>
    %255 = arith.addf %253, %254 : vector<8x128xf32>
    %c1_106 = arith.constant 1 : index
    %c0_107 = arith.constant 0 : index
    %c0_108 = arith.constant 0 : index
    %256 = vector.load %arg10[%c1_106, %c0_107, %c0_108] : memref<2x128x384xf32, #tpu.memory_space<vmem>>, vector<1x128x384xf32>
    %257 = vector.shape_cast %256 : vector<1x128x384xf32> to vector<128x384xf32>
    %cst_109 = arith.constant dense<0.000000e+00> : vector<8x384xf32>
    %258 = tpu.matmul %255, %257, %cst_109 {dimension_numbers = #tpu.dot_dimension_numbers<[1], [0], [0], [1], [0, 0, 1, 1], [], []>} : vector<8x128xf32>, vector<128x384xf32>, vector<8x384xf32> -> vector<8x384xf32>
    %c1_110 = arith.constant 1 : index
    %c0_111 = arith.constant 0 : index
    %c0_112 = arith.constant 0 : index
    %259 = vector.load %arg12[%c1_110, %c0_111, %c0_112] : memref<2x1x384xf32, #tpu.memory_space<vmem>>, vector<1x1x384xf32>
    %260 = vector.shape_cast %259 : vector<1x1x384xf32> to vector<1x384xf32>
    %261 = vector.broadcast %260 : vector<1x384xf32> to vector<8x384xf32>
    %262 = arith.addf %258, %261 : vector<8x384xf32>
    %c1_113 = arith.constant 1 : index
    %c0_114 = arith.constant 0 : index
    %c0_115 = arith.constant 0 : index
    %263 = vector.load %arg11[%c1_113, %c0_114, %c0_115] : memref<2x128x384xf32, #tpu.memory_space<vmem>>, vector<1x128x384xf32>
    %264 = vector.shape_cast %263 : vector<1x128x384xf32> to vector<128x384xf32>
    %cst_116 = arith.constant dense<0.000000e+00> : vector<8x384xf32>
    %265 = tpu.matmul %221, %264, %cst_116 {dimension_numbers = #tpu.dot_dimension_numbers<[1], [0], [0], [1], [0, 0, 1, 1], [], []>} : vector<8x128xf32>, vector<128x384xf32>, vector<8x384xf32> -> vector<8x384xf32>
    %c1_117 = arith.constant 1 : index
    %c0_118 = arith.constant 0 : index
    %c0_119 = arith.constant 0 : index
    %266 = vector.load %arg13[%c1_117, %c0_118, %c0_119] : memref<2x1x384xf32, #tpu.memory_space<vmem>>, vector<1x1x384xf32>
    %267 = vector.shape_cast %266 : vector<1x1x384xf32> to vector<1x384xf32>
    %268 = vector.broadcast %267 : vector<1x384xf32> to vector<8x384xf32>
    %269 = arith.addf %265, %268 : vector<8x384xf32>
    %270 = vector.extract_strided_slice %262 {offsets = [0, 0], sizes = [8, 128], strides = [1, 1]} : vector<8x384xf32> to vector<8x128xf32>
    %271 = vector.extract_strided_slice %269 {offsets = [0, 0], sizes = [8, 128], strides = [1, 1]} : vector<8x384xf32> to vector<8x128xf32>
    %272 = arith.addf %270, %271 : vector<8x128xf32>
    %273 = arith.negf %272 : vector<8x128xf32>
    %274 = math.exp %273 : vector<8x128xf32>
    %cst_120 = arith.constant 1.000000e+00 : f32
    %275 = vector.broadcast %cst_120 : f32 to vector<8x128xf32>
    %276 = arith.addf %275, %274 : vector<8x128xf32>
    %277 = arith.divf %275, %276 : vector<8x128xf32>
    %278 = vector.extract_strided_slice %262 {offsets = [0, 128], sizes = [8, 128], strides = [1, 1]} : vector<8x384xf32> to vector<8x128xf32>
    %279 = vector.extract_strided_slice %269 {offsets = [0, 128], sizes = [8, 128], strides = [1, 1]} : vector<8x384xf32> to vector<8x128xf32>
    %280 = arith.addf %278, %279 : vector<8x128xf32>
    %281 = arith.negf %280 : vector<8x128xf32>
    %282 = math.exp %281 : vector<8x128xf32>
    %cst_121 = arith.constant 1.000000e+00 : f32
    %283 = vector.broadcast %cst_121 : f32 to vector<8x128xf32>
    %284 = arith.addf %283, %282 : vector<8x128xf32>
    %285 = arith.divf %283, %284 : vector<8x128xf32>
    %286 = vector.extract_strided_slice %262 {offsets = [0, 256], sizes = [8, 128], strides = [1, 1]} : vector<8x384xf32> to vector<8x128xf32>
    %287 = vector.extract_strided_slice %269 {offsets = [0, 256], sizes = [8, 128], strides = [1, 1]} : vector<8x384xf32> to vector<8x128xf32>
    %288 = arith.mulf %277, %287 : vector<8x128xf32>
    %289 = arith.addf %286, %288 : vector<8x128xf32>
    %290 = math.tanh %289 : vector<8x128xf32>
    %cst_122 = arith.constant 1.000000e+00 : f32
    %291 = vector.broadcast %cst_122 : f32 to vector<8x128xf32>
    %292 = arith.subf %291, %285 : vector<8x128xf32>
    %293 = arith.mulf %292, %290 : vector<8x128xf32>
    %294 = arith.mulf %285, %221 : vector<8x128xf32>
    %295 = arith.addf %293, %294 : vector<8x128xf32>
    %296 = vector.extract_strided_slice %69 {offsets = [24, 0], sizes = [8, 384], strides = [1, 1]} : vector<32x384xf32> to vector<8x384xf32>
    %c0_123 = arith.constant 0 : index
    %c0_124 = arith.constant 0 : index
    %c0_125 = arith.constant 0 : index
    %297 = vector.load %arg11[%c0_123, %c0_124, %c0_125] : memref<2x128x384xf32, #tpu.memory_space<vmem>>, vector<1x128x384xf32>
    %298 = vector.shape_cast %297 : vector<1x128x384xf32> to vector<128x384xf32>
    %cst_126 = arith.constant dense<0.000000e+00> : vector<8x384xf32>
    %299 = tpu.matmul %255, %298, %cst_126 {dimension_numbers = #tpu.dot_dimension_numbers<[1], [0], [0], [1], [0, 0, 1, 1], [], []>} : vector<8x128xf32>, vector<128x384xf32>, vector<8x384xf32> -> vector<8x384xf32>
    %c0_127 = arith.constant 0 : index
    %c0_128 = arith.constant 0 : index
    %c0_129 = arith.constant 0 : index
    %300 = vector.load %arg13[%c0_127, %c0_128, %c0_129] : memref<2x1x384xf32, #tpu.memory_space<vmem>>, vector<1x1x384xf32>
    %301 = vector.shape_cast %300 : vector<1x1x384xf32> to vector<1x384xf32>
    %302 = vector.broadcast %301 : vector<1x384xf32> to vector<8x384xf32>
    %303 = arith.addf %299, %302 : vector<8x384xf32>
    %304 = vector.extract_strided_slice %296 {offsets = [0, 0], sizes = [8, 128], strides = [1, 1]} : vector<8x384xf32> to vector<8x128xf32>
    %305 = vector.extract_strided_slice %303 {offsets = [0, 0], sizes = [8, 128], strides = [1, 1]} : vector<8x384xf32> to vector<8x128xf32>
    %306 = arith.addf %304, %305 : vector<8x128xf32>
    %307 = arith.negf %306 : vector<8x128xf32>
    %308 = math.exp %307 : vector<8x128xf32>
    %cst_130 = arith.constant 1.000000e+00 : f32
    %309 = vector.broadcast %cst_130 : f32 to vector<8x128xf32>
    %310 = arith.addf %309, %308 : vector<8x128xf32>
    %311 = arith.divf %309, %310 : vector<8x128xf32>
    %312 = vector.extract_strided_slice %296 {offsets = [0, 128], sizes = [8, 128], strides = [1, 1]} : vector<8x384xf32> to vector<8x128xf32>
    %313 = vector.extract_strided_slice %303 {offsets = [0, 128], sizes = [8, 128], strides = [1, 1]} : vector<8x384xf32> to vector<8x128xf32>
    %314 = arith.addf %312, %313 : vector<8x128xf32>
    %315 = arith.negf %314 : vector<8x128xf32>
    %316 = math.exp %315 : vector<8x128xf32>
    %cst_131 = arith.constant 1.000000e+00 : f32
    %317 = vector.broadcast %cst_131 : f32 to vector<8x128xf32>
    %318 = arith.addf %317, %316 : vector<8x128xf32>
    %319 = arith.divf %317, %318 : vector<8x128xf32>
    %320 = vector.extract_strided_slice %296 {offsets = [0, 256], sizes = [8, 128], strides = [1, 1]} : vector<8x384xf32> to vector<8x128xf32>
    %321 = vector.extract_strided_slice %303 {offsets = [0, 256], sizes = [8, 128], strides = [1, 1]} : vector<8x384xf32> to vector<8x128xf32>
    %322 = arith.mulf %311, %321 : vector<8x128xf32>
    %323 = arith.addf %320, %322 : vector<8x128xf32>
    %324 = math.tanh %323 : vector<8x128xf32>
    %cst_132 = arith.constant 1.000000e+00 : f32
    %325 = vector.broadcast %cst_132 : f32 to vector<8x128xf32>
    %326 = arith.subf %325, %319 : vector<8x128xf32>
    %327 = arith.mulf %326, %324 : vector<8x128xf32>
    %328 = arith.mulf %319, %255 : vector<8x128xf32>
    %329 = arith.addf %327, %328 : vector<8x128xf32>
    %c1_133 = arith.constant 1 : index
    %c0_134 = arith.constant 0 : index
    %c0_135 = arith.constant 0 : index
    %330 = vector.load %arg10[%c1_133, %c0_134, %c0_135] : memref<2x128x384xf32, #tpu.memory_space<vmem>>, vector<1x128x384xf32>
    %331 = vector.shape_cast %330 : vector<1x128x384xf32> to vector<128x384xf32>
    %cst_136 = arith.constant dense<0.000000e+00> : vector<8x384xf32>
    %332 = tpu.matmul %329, %331, %cst_136 {dimension_numbers = #tpu.dot_dimension_numbers<[1], [0], [0], [1], [0, 0, 1, 1], [], []>} : vector<8x128xf32>, vector<128x384xf32>, vector<8x384xf32> -> vector<8x384xf32>
    %c1_137 = arith.constant 1 : index
    %c0_138 = arith.constant 0 : index
    %c0_139 = arith.constant 0 : index
    %333 = vector.load %arg12[%c1_137, %c0_138, %c0_139] : memref<2x1x384xf32, #tpu.memory_space<vmem>>, vector<1x1x384xf32>
    %334 = vector.shape_cast %333 : vector<1x1x384xf32> to vector<1x384xf32>
    %335 = vector.broadcast %334 : vector<1x384xf32> to vector<8x384xf32>
    %336 = arith.addf %332, %335 : vector<8x384xf32>
    %c1_140 = arith.constant 1 : index
    %c0_141 = arith.constant 0 : index
    %c0_142 = arith.constant 0 : index
    %337 = vector.load %arg11[%c1_140, %c0_141, %c0_142] : memref<2x128x384xf32, #tpu.memory_space<vmem>>, vector<1x128x384xf32>
    %338 = vector.shape_cast %337 : vector<1x128x384xf32> to vector<128x384xf32>
    %cst_143 = arith.constant dense<0.000000e+00> : vector<8x384xf32>
    %339 = tpu.matmul %295, %338, %cst_143 {dimension_numbers = #tpu.dot_dimension_numbers<[1], [0], [0], [1], [0, 0, 1, 1], [], []>} : vector<8x128xf32>, vector<128x384xf32>, vector<8x384xf32> -> vector<8x384xf32>
    %c1_144 = arith.constant 1 : index
    %c0_145 = arith.constant 0 : index
    %c0_146 = arith.constant 0 : index
    %340 = vector.load %arg13[%c1_144, %c0_145, %c0_146] : memref<2x1x384xf32, #tpu.memory_space<vmem>>, vector<1x1x384xf32>
    %341 = vector.shape_cast %340 : vector<1x1x384xf32> to vector<1x384xf32>
    %342 = vector.broadcast %341 : vector<1x384xf32> to vector<8x384xf32>
    %343 = arith.addf %339, %342 : vector<8x384xf32>
    %344 = vector.extract_strided_slice %336 {offsets = [0, 0], sizes = [8, 128], strides = [1, 1]} : vector<8x384xf32> to vector<8x128xf32>
    %345 = vector.extract_strided_slice %343 {offsets = [0, 0], sizes = [8, 128], strides = [1, 1]} : vector<8x384xf32> to vector<8x128xf32>
    %346 = arith.addf %344, %345 : vector<8x128xf32>
    %347 = arith.negf %346 : vector<8x128xf32>
    %348 = math.exp %347 : vector<8x128xf32>
    %cst_147 = arith.constant 1.000000e+00 : f32
    %349 = vector.broadcast %cst_147 : f32 to vector<8x128xf32>
    %350 = arith.addf %349, %348 : vector<8x128xf32>
    %351 = arith.divf %349, %350 : vector<8x128xf32>
    %352 = vector.extract_strided_slice %336 {offsets = [0, 128], sizes = [8, 128], strides = [1, 1]} : vector<8x384xf32> to vector<8x128xf32>
    %353 = vector.extract_strided_slice %343 {offsets = [0, 128], sizes = [8, 128], strides = [1, 1]} : vector<8x384xf32> to vector<8x128xf32>
    %354 = arith.addf %352, %353 : vector<8x128xf32>
    %355 = arith.negf %354 : vector<8x128xf32>
    %356 = math.exp %355 : vector<8x128xf32>
    %cst_148 = arith.constant 1.000000e+00 : f32
    %357 = vector.broadcast %cst_148 : f32 to vector<8x128xf32>
    %358 = arith.addf %357, %356 : vector<8x128xf32>
    %359 = arith.divf %357, %358 : vector<8x128xf32>
    %360 = vector.extract_strided_slice %336 {offsets = [0, 256], sizes = [8, 128], strides = [1, 1]} : vector<8x384xf32> to vector<8x128xf32>
    %361 = vector.extract_strided_slice %343 {offsets = [0, 256], sizes = [8, 128], strides = [1, 1]} : vector<8x384xf32> to vector<8x128xf32>
    %362 = arith.mulf %351, %361 : vector<8x128xf32>
    %363 = arith.addf %360, %362 : vector<8x128xf32>
    %364 = math.tanh %363 : vector<8x128xf32>
    %cst_149 = arith.constant 1.000000e+00 : f32
    %365 = vector.broadcast %cst_149 : f32 to vector<8x128xf32>
    %366 = arith.subf %365, %359 : vector<8x128xf32>
    %367 = arith.mulf %366, %364 : vector<8x128xf32>
    %368 = arith.mulf %359, %295 : vector<8x128xf32>
    %369 = arith.addf %367, %368 : vector<8x128xf32>
    %370 = tpu.concatenate %147, %221, %295, %369 in 0 : vector<8x128xf32>, vector<8x128xf32>, vector<8x128xf32>, vector<8x128xf32> -> vector<32x128xf32>
    %c0_150 = arith.constant 0 : index
    %c0_151 = arith.constant 0 : index
    %c0_152 = arith.constant 0 : index
    %371 = vector.load %arg19[%c0_150, %c0_151, %c0_152] : memref<2x8x128xf32, #tpu.memory_space<vmem>>, vector<1x8x128xf32>
    %372 = vector.shape_cast %371 : vector<1x8x128xf32> to vector<8x128xf32>
    %373 = vector.shape_cast %329 : vector<8x128xf32> to vector<1x8x128xf32>
    tpu.vector_store %arg19[%c0_150, %c0_151, %c0_152], %373 {strides = array<i32>} : memref<2x8x128xf32, #tpu.memory_space<vmem>>, vector<1x8x128xf32>,
    %c1_153 = arith.constant 1 : index
    %c0_154 = arith.constant 0 : index
    %c0_155 = arith.constant 0 : index
    %374 = vector.load %arg19[%c1_153, %c0_154, %c0_155] : memref<2x8x128xf32, #tpu.memory_space<vmem>>, vector<1x8x128xf32>
    %375 = vector.shape_cast %374 : vector<1x8x128xf32> to vector<8x128xf32>
    %376 = vector.shape_cast %369 : vector<8x128xf32> to vector<1x8x128xf32>
    tpu.vector_store %arg19[%c1_153, %c0_154, %c0_155], %376 {strides = array<i32>} : memref<2x8x128xf32, #tpu.memory_space<vmem>>, vector<1x8x128xf32>,
    %c0_156 = arith.constant 0 : index
    %c0_157 = arith.constant 0 : index
    %377 = vector.load %arg14[%c0_156, %c0_157] : memref<128x128xf32, #tpu.memory_space<vmem>>, vector<128x128xf32>
    %cst_158 = arith.constant dense<0.000000e+00> : vector<32x128xf32>
    %378 = tpu.matmul %62, %377, %cst_158 {dimension_numbers = #tpu.dot_dimension_numbers<[1], [0], [0], [1], [0, 0, 1, 1], [], []>} : vector<32x128xf32>, vector<128x128xf32>, vector<32x128xf32> -> vector<32x128xf32>
    %c0_159 = arith.constant 0 : index
    %c0_160 = arith.constant 0 : index
    %379 = vector.load %arg15[%c0_159, %c0_160] : memref<1x128xf32, #tpu.memory_space<vmem>>, vector<1x128xf32>
    %380 = vector.broadcast %379 : vector<1x128xf32> to vector<32x128xf32>
    %381 = arith.addf %378, %380 : vector<32x128xf32>
    %382 = arith.negf %381 : vector<32x128xf32>
    %383 = math.exp %382 : vector<32x128xf32>
    %cst_161 = arith.constant 1.000000e+00 : f32
    %384 = vector.broadcast %cst_161 : f32 to vector<32x128xf32>
    %385 = arith.addf %384, %383 : vector<32x128xf32>
    %386 = arith.divf %384, %385 : vector<32x128xf32>
    %387 = arith.mulf %386, %370 : vector<32x128xf32>
    %388 = arith.addf %62, %387 : vector<32x128xf32>
    %c0_162 = arith.constant 0 : index
    %c0_163 = arith.constant 0 : index
    %389 = vector.load %arg16[%c0_162, %c0_163] : memref<128x128xf32, #tpu.memory_space<vmem>>, vector<128x128xf32>
    %cst_164 = arith.constant dense<0.000000e+00> : vector<32x128xf32>
    %390 = tpu.matmul %388, %389, %cst_164 {dimension_numbers = #tpu.dot_dimension_numbers<[1], [0], [0], [1], [0, 0, 1, 1], [], []>} : vector<32x128xf32>, vector<128x128xf32>, vector<32x128xf32> -> vector<32x128xf32>
    %c0_165 = arith.constant 0 : index
    %c0_166 = arith.constant 0 : index
    %391 = vector.load %arg17[%c0_165, %c0_166] : memref<1x128xf32, #tpu.memory_space<vmem>>, vector<1x128xf32>
    %392 = vector.broadcast %391 : vector<1x128xf32> to vector<32x128xf32>
    %393 = arith.addf %390, %392 : vector<32x128xf32>
    %c0_167 = arith.constant 0 : index
    %c0_168 = arith.constant 0 : index
    %394 = vector.load %arg18[%c0_167, %c0_168] : memref<32x128xf32, #tpu.memory_space<vmem>>, vector<32x128xf32>
    tpu.vector_store %arg18[%c0_167, %c0_168], %393 {strides = array<i32>} : memref<32x128xf32, #tpu.memory_space<vmem>>, vector<32x128xf32>,
    return
  }
}

module attributes {stable_mosaic.version = 11 : i64} {
  func.func @branch_kernel(%arg0: memref<32x128xf32, #tpu.memory_space<vmem>>, %arg1: memref<1x8x128xf32, #tpu.memory_space<vmem>>, %arg2: memref<128x128xf32, #tpu.memory_space<vmem>>, %arg3: memref<1x128xf32, #tpu.memory_space<vmem>>, %arg4: memref<1x128xf32, #tpu.memory_space<vmem>>, %arg5: memref<1x128xf32, #tpu.memory_space<vmem>>, %arg6: memref<128x128xf32, #tpu.memory_space<vmem>>, %arg7: memref<1x128xf32, #tpu.memory_space<vmem>>, %arg8: memref<1x128xf32, #tpu.memory_space<vmem>>, %arg9: memref<1x128xf32, #tpu.memory_space<vmem>>, %arg10: memref<1x128x384xf32, #tpu.memory_space<vmem>>, %arg11: memref<1x128x384xf32, #tpu.memory_space<vmem>>, %arg12: memref<1x1x384xf32, #tpu.memory_space<vmem>>, %arg13: memref<1x1x384xf32, #tpu.memory_space<vmem>>, %arg14: memref<128x128xf32, #tpu.memory_space<vmem>>, %arg15: memref<1x128xf32, #tpu.memory_space<vmem>>, %arg16: memref<128x128xf32, #tpu.memory_space<vmem>>, %arg17: memref<1x128xf32, #tpu.memory_space<vmem>>, %arg18: memref<32x128xf32, #tpu.memory_space<vmem>>, %arg19: memref<1x8x128xf32, #tpu.memory_space<vmem>>) attributes {dimension_semantics = [], scalar_prefetch = 0 : i64, scratch_operands = 0 : i64, tpu.core_type = #tpu.core_type<tc>} {
    %c0 = arith.constant 0 : index
    %c0_0 = arith.constant 0 : index
    %0 = vector.load %arg0[%c0, %c0_0] : memref<32x128xf32, #tpu.memory_space<vmem>>, vector<32x128xf32>
    %c0_1 = arith.constant 0 : index
    %c0_2 = arith.constant 0 : index
    %1 = vector.load %arg2[%c0_1, %c0_2] : memref<128x128xf32, #tpu.memory_space<vmem>>, vector<128x128xf32>
    %c0_3 = arith.constant 0 : index
    %c0_4 = arith.constant 0 : index
    %2 = vector.load %arg3[%c0_3, %c0_4] : memref<1x128xf32, #tpu.memory_space<vmem>>, vector<1x128xf32>
    %c0_5 = arith.constant 0 : index
    %c0_6 = arith.constant 0 : index
    %3 = vector.load %arg4[%c0_5, %c0_6] : memref<1x128xf32, #tpu.memory_space<vmem>>, vector<1x128xf32>
    %c0_7 = arith.constant 0 : index
    %c0_8 = arith.constant 0 : index
    %4 = vector.load %arg5[%c0_7, %c0_8] : memref<1x128xf32, #tpu.memory_space<vmem>>, vector<1x128xf32>
    %cst = arith.constant dense<0.000000e+00> : vector<32x128xf32>
    %5 = tpu.matmul %0, %1, %cst {dimension_numbers = #tpu.dot_dimension_numbers<[1], [0], [0], [1], [0, 0, 1, 1], [], []>} : vector<32x128xf32>, vector<128x128xf32>, vector<32x128xf32> -> vector<32x128xf32>
    %6 = vector.broadcast %2 : vector<1x128xf32> to vector<32x128xf32>
    %7 = arith.addf %5, %6 : vector<32x128xf32>
    %cst_9 = arith.constant 0.000000e+00 : f32
    %8 = vector.broadcast %cst_9 : f32 to vector<32x128xf32>
    %9 = arith.maximumf %7, %8 : vector<32x128xf32>
    %cst_10 = arith.constant dense<0.000000e+00> : vector<32xf32>
    %10 = vector.multi_reduction <add>, %9, %cst_10 [1] : vector<32x128xf32> to vector<32xf32>
    %11 = vector.shape_cast %10 : vector<32xf32> to vector<32x1xf32>
    %cst_11 = arith.constant 3.125000e-02 : f32
    %12 = vector.broadcast %cst_11 : f32 to vector<32x1xf32>
    %13 = arith.mulf %11, %12 : vector<32x1xf32>
    %14 = arith.mulf %9, %9 : vector<32x128xf32>
    %cst_12 = arith.constant dense<0.000000e+00> : vector<32xf32>
    %15 = vector.multi_reduction <add>, %14, %cst_12 [1] : vector<32x128xf32> to vector<32xf32>
    %16 = vector.shape_cast %15 : vector<32xf32> to vector<32x1xf32>
    %cst_13 = arith.constant 3.125000e-02 : f32
    %17 = vector.broadcast %cst_13 : f32 to vector<32x1xf32>
    %18 = arith.mulf %16, %17 : vector<32x1xf32>
    %19 = arith.mulf %13, %13 : vector<32x1xf32>
    %20 = arith.subf %18, %19 : vector<32x1xf32>
    %21 = vector.broadcast %13 : vector<32x1xf32> to vector<32x128xf32>
    %22 = arith.subf %9, %21 : vector<32x128xf32>
    %cst_14 = arith.constant 9.99999974E-6 : f32
    %23 = vector.broadcast %cst_14 : f32 to vector<32x1xf32>
    %24 = arith.addf %20, %23 : vector<32x1xf32>
    %25 = math.rsqrt %24 : vector<32x1xf32>
    %26 = vector.broadcast %25 : vector<32x1xf32> to vector<32x128xf32>
    %27 = arith.mulf %22, %26 : vector<32x128xf32>
    %28 = vector.broadcast %3 : vector<1x128xf32> to vector<32x128xf32>
    %29 = arith.mulf %27, %28 : vector<32x128xf32>
    %30 = vector.broadcast %4 : vector<1x128xf32> to vector<32x128xf32>
    %31 = arith.addf %29, %30 : vector<32x128xf32>
    %c0_15 = arith.constant 0 : index
    %c0_16 = arith.constant 0 : index
    %32 = vector.load %arg6[%c0_15, %c0_16] : memref<128x128xf32, #tpu.memory_space<vmem>>, vector<128x128xf32>
    %c0_17 = arith.constant 0 : index
    %c0_18 = arith.constant 0 : index
    %33 = vector.load %arg7[%c0_17, %c0_18] : memref<1x128xf32, #tpu.memory_space<vmem>>, vector<1x128xf32>
    %c0_19 = arith.constant 0 : index
    %c0_20 = arith.constant 0 : index
    %34 = vector.load %arg8[%c0_19, %c0_20] : memref<1x128xf32, #tpu.memory_space<vmem>>, vector<1x128xf32>
    %c0_21 = arith.constant 0 : index
    %c0_22 = arith.constant 0 : index
    %35 = vector.load %arg9[%c0_21, %c0_22] : memref<1x128xf32, #tpu.memory_space<vmem>>, vector<1x128xf32>
    %cst_23 = arith.constant dense<0.000000e+00> : vector<32x128xf32>
    %36 = tpu.matmul %31, %32, %cst_23 {dimension_numbers = #tpu.dot_dimension_numbers<[1], [0], [0], [1], [0, 0, 1, 1], [], []>} : vector<32x128xf32>, vector<128x128xf32>, vector<32x128xf32> -> vector<32x128xf32>
    %37 = vector.broadcast %33 : vector<1x128xf32> to vector<32x128xf32>
    %38 = arith.addf %36, %37 : vector<32x128xf32>
    %cst_24 = arith.constant 0.000000e+00 : f32
    %39 = vector.broadcast %cst_24 : f32 to vector<32x128xf32>
    %40 = arith.maximumf %38, %39 : vector<32x128xf32>
    %cst_25 = arith.constant dense<0.000000e+00> : vector<32xf32>
    %41 = vector.multi_reduction <add>, %40, %cst_25 [1] : vector<32x128xf32> to vector<32xf32>
    %42 = vector.shape_cast %41 : vector<32xf32> to vector<32x1xf32>
    %cst_26 = arith.constant 3.125000e-02 : f32
    %43 = vector.broadcast %cst_26 : f32 to vector<32x1xf32>
    %44 = arith.mulf %42, %43 : vector<32x1xf32>
    %45 = arith.mulf %40, %40 : vector<32x128xf32>
    %cst_27 = arith.constant dense<0.000000e+00> : vector<32xf32>
    %46 = vector.multi_reduction <add>, %45, %cst_27 [1] : vector<32x128xf32> to vector<32xf32>
    %47 = vector.shape_cast %46 : vector<32xf32> to vector<32x1xf32>
    %cst_28 = arith.constant 3.125000e-02 : f32
    %48 = vector.broadcast %cst_28 : f32 to vector<32x1xf32>
    %49 = arith.mulf %47, %48 : vector<32x1xf32>
    %50 = arith.mulf %44, %44 : vector<32x1xf32>
    %51 = arith.subf %49, %50 : vector<32x1xf32>
    %52 = vector.broadcast %44 : vector<32x1xf32> to vector<32x128xf32>
    %53 = arith.subf %40, %52 : vector<32x128xf32>
    %cst_29 = arith.constant 9.99999974E-6 : f32
    %54 = vector.broadcast %cst_29 : f32 to vector<32x1xf32>
    %55 = arith.addf %51, %54 : vector<32x1xf32>
    %56 = math.rsqrt %55 : vector<32x1xf32>
    %57 = vector.broadcast %56 : vector<32x1xf32> to vector<32x128xf32>
    %58 = arith.mulf %53, %57 : vector<32x128xf32>
    %59 = vector.broadcast %34 : vector<1x128xf32> to vector<32x128xf32>
    %60 = arith.mulf %58, %59 : vector<32x128xf32>
    %61 = vector.broadcast %35 : vector<1x128xf32> to vector<32x128xf32>
    %62 = arith.addf %60, %61 : vector<32x128xf32>
    %c0_30 = arith.constant 0 : index
    %c0_31 = arith.constant 0 : index
    %c0_32 = arith.constant 0 : index
    %63 = vector.load %arg10[%c0_30, %c0_31, %c0_32] : memref<1x128x384xf32, #tpu.memory_space<vmem>>, vector<1x128x384xf32>
    %64 = vector.shape_cast %63 : vector<1x128x384xf32> to vector<128x384xf32>
    %cst_33 = arith.constant dense<0.000000e+00> : vector<32x384xf32>
    %65 = tpu.matmul %62, %64, %cst_33 {dimension_numbers = #tpu.dot_dimension_numbers<[1], [0], [0], [1], [0, 0, 1, 1], [], []>} : vector<32x128xf32>, vector<128x384xf32>, vector<32x384xf32> -> vector<32x384xf32>
    %c0_34 = arith.constant 0 : index
    %c0_35 = arith.constant 0 : index
    %c0_36 = arith.constant 0 : index
    %66 = vector.load %arg12[%c0_34, %c0_35, %c0_36] : memref<1x1x384xf32, #tpu.memory_space<vmem>>, vector<1x1x384xf32>
    %67 = vector.shape_cast %66 : vector<1x1x384xf32> to vector<1x384xf32>
    %68 = vector.broadcast %67 : vector<1x384xf32> to vector<32x384xf32>
    %69 = arith.addf %65, %68 : vector<32x384xf32>
    %c0_37 = arith.constant 0 : index
    %c0_38 = arith.constant 0 : index
    %c0_39 = arith.constant 0 : index
    %70 = vector.load %arg1[%c0_37, %c0_38, %c0_39] : memref<1x8x128xf32, #tpu.memory_space<vmem>>, vector<1x8x128xf32>
    %71 = vector.shape_cast %70 : vector<1x8x128xf32> to vector<8x128xf32>
    %72 = vector.extract_strided_slice %69 {offsets = [0, 0], sizes = [8, 384], strides = [1, 1]} : vector<32x384xf32> to vector<8x384xf32>
    %c0_40 = arith.constant 0 : index
    %c0_41 = arith.constant 0 : index
    %c0_42 = arith.constant 0 : index
    %73 = vector.load %arg11[%c0_40, %c0_41, %c0_42] : memref<1x128x384xf32, #tpu.memory_space<vmem>>, vector<1x128x384xf32>
    %74 = vector.shape_cast %73 : vector<1x128x384xf32> to vector<128x384xf32>
    %cst_43 = arith.constant dense<0.000000e+00> : vector<8x384xf32>
    %75 = tpu.matmul %71, %74, %cst_43 {dimension_numbers = #tpu.dot_dimension_numbers<[1], [0], [0], [1], [0, 0, 1, 1], [], []>} : vector<8x128xf32>, vector<128x384xf32>, vector<8x384xf32> -> vector<8x384xf32>
    %c0_44 = arith.constant 0 : index
    %c0_45 = arith.constant 0 : index
    %c0_46 = arith.constant 0 : index
    %76 = vector.load %arg13[%c0_44, %c0_45, %c0_46] : memref<1x1x384xf32, #tpu.memory_space<vmem>>, vector<1x1x384xf32>
    %77 = vector.shape_cast %76 : vector<1x1x384xf32> to vector<1x384xf32>
    %78 = vector.broadcast %77 : vector<1x384xf32> to vector<8x384xf32>
    %79 = arith.addf %75, %78 : vector<8x384xf32>
    %80 = vector.extract_strided_slice %72 {offsets = [0, 0], sizes = [8, 128], strides = [1, 1]} : vector<8x384xf32> to vector<8x128xf32>
    %81 = vector.extract_strided_slice %79 {offsets = [0, 0], sizes = [8, 128], strides = [1, 1]} : vector<8x384xf32> to vector<8x128xf32>
    %82 = arith.addf %80, %81 : vector<8x128xf32>
    %83 = arith.negf %82 : vector<8x128xf32>
    %84 = math.exp %83 : vector<8x128xf32>
    %cst_47 = arith.constant 1.000000e+00 : f32
    %85 = vector.broadcast %cst_47 : f32 to vector<8x128xf32>
    %86 = arith.addf %85, %84 : vector<8x128xf32>
    %87 = arith.divf %85, %86 : vector<8x128xf32>
    %88 = vector.extract_strided_slice %72 {offsets = [0, 128], sizes = [8, 128], strides = [1, 1]} : vector<8x384xf32> to vector<8x128xf32>
    %89 = vector.extract_strided_slice %79 {offsets = [0, 128], sizes = [8, 128], strides = [1, 1]} : vector<8x384xf32> to vector<8x128xf32>
    %90 = arith.addf %88, %89 : vector<8x128xf32>
    %91 = arith.negf %90 : vector<8x128xf32>
    %92 = math.exp %91 : vector<8x128xf32>
    %cst_48 = arith.constant 1.000000e+00 : f32
    %93 = vector.broadcast %cst_48 : f32 to vector<8x128xf32>
    %94 = arith.addf %93, %92 : vector<8x128xf32>
    %95 = arith.divf %93, %94 : vector<8x128xf32>
    %96 = vector.extract_strided_slice %72 {offsets = [0, 256], sizes = [8, 128], strides = [1, 1]} : vector<8x384xf32> to vector<8x128xf32>
    %97 = vector.extract_strided_slice %79 {offsets = [0, 256], sizes = [8, 128], strides = [1, 1]} : vector<8x384xf32> to vector<8x128xf32>
    %98 = arith.mulf %87, %97 : vector<8x128xf32>
    %99 = arith.addf %96, %98 : vector<8x128xf32>
    %100 = math.tanh %99 : vector<8x128xf32>
    %cst_49 = arith.constant 1.000000e+00 : f32
    %101 = vector.broadcast %cst_49 : f32 to vector<8x128xf32>
    %102 = arith.subf %101, %95 : vector<8x128xf32>
    %103 = arith.mulf %102, %100 : vector<8x128xf32>
    %104 = arith.mulf %95, %71 : vector<8x128xf32>
    %105 = arith.addf %103, %104 : vector<8x128xf32>
    %106 = vector.extract_strided_slice %69 {offsets = [8, 0], sizes = [8, 384], strides = [1, 1]} : vector<32x384xf32> to vector<8x384xf32>
    %c0_50 = arith.constant 0 : index
    %c0_51 = arith.constant 0 : index
    %c0_52 = arith.constant 0 : index
    %107 = vector.load %arg11[%c0_50, %c0_51, %c0_52] : memref<1x128x384xf32, #tpu.memory_space<vmem>>, vector<1x128x384xf32>
    %108 = vector.shape_cast %107 : vector<1x128x384xf32> to vector<128x384xf32>
    %cst_53 = arith.constant dense<0.000000e+00> : vector<8x384xf32>
    %109 = tpu.matmul %105, %108, %cst_53 {dimension_numbers = #tpu.dot_dimension_numbers<[1], [0], [0], [1], [0, 0, 1, 1], [], []>} : vector<8x128xf32>, vector<128x384xf32>, vector<8x384xf32> -> vector<8x384xf32>
    %c0_54 = arith.constant 0 : index
    %c0_55 = arith.constant 0 : index
    %c0_56 = arith.constant 0 : index
    %110 = vector.load %arg13[%c0_54, %c0_55, %c0_56] : memref<1x1x384xf32, #tpu.memory_space<vmem>>, vector<1x1x384xf32>
    %111 = vector.shape_cast %110 : vector<1x1x384xf32> to vector<1x384xf32>
    %112 = vector.broadcast %111 : vector<1x384xf32> to vector<8x384xf32>
    %113 = arith.addf %109, %112 : vector<8x384xf32>
    %114 = vector.extract_strided_slice %106 {offsets = [0, 0], sizes = [8, 128], strides = [1, 1]} : vector<8x384xf32> to vector<8x128xf32>
    %115 = vector.extract_strided_slice %113 {offsets = [0, 0], sizes = [8, 128], strides = [1, 1]} : vector<8x384xf32> to vector<8x128xf32>
    %116 = arith.addf %114, %115 : vector<8x128xf32>
    %117 = arith.negf %116 : vector<8x128xf32>
    %118 = math.exp %117 : vector<8x128xf32>
    %cst_57 = arith.constant 1.000000e+00 : f32
    %119 = vector.broadcast %cst_57 : f32 to vector<8x128xf32>
    %120 = arith.addf %119, %118 : vector<8x128xf32>
    %121 = arith.divf %119, %120 : vector<8x128xf32>
    %122 = vector.extract_strided_slice %106 {offsets = [0, 128], sizes = [8, 128], strides = [1, 1]} : vector<8x384xf32> to vector<8x128xf32>
    %123 = vector.extract_strided_slice %113 {offsets = [0, 128], sizes = [8, 128], strides = [1, 1]} : vector<8x384xf32> to vector<8x128xf32>
    %124 = arith.addf %122, %123 : vector<8x128xf32>
    %125 = arith.negf %124 : vector<8x128xf32>
    %126 = math.exp %125 : vector<8x128xf32>
    %cst_58 = arith.constant 1.000000e+00 : f32
    %127 = vector.broadcast %cst_58 : f32 to vector<8x128xf32>
    %128 = arith.addf %127, %126 : vector<8x128xf32>
    %129 = arith.divf %127, %128 : vector<8x128xf32>
    %130 = vector.extract_strided_slice %106 {offsets = [0, 256], sizes = [8, 128], strides = [1, 1]} : vector<8x384xf32> to vector<8x128xf32>
    %131 = vector.extract_strided_slice %113 {offsets = [0, 256], sizes = [8, 128], strides = [1, 1]} : vector<8x384xf32> to vector<8x128xf32>
    %132 = arith.mulf %121, %131 : vector<8x128xf32>
    %133 = arith.addf %130, %132 : vector<8x128xf32>
    %134 = math.tanh %133 : vector<8x128xf32>
    %cst_59 = arith.constant 1.000000e+00 : f32
    %135 = vector.broadcast %cst_59 : f32 to vector<8x128xf32>
    %136 = arith.subf %135, %129 : vector<8x128xf32>
    %137 = arith.mulf %136, %134 : vector<8x128xf32>
    %138 = arith.mulf %129, %105 : vector<8x128xf32>
    %139 = arith.addf %137, %138 : vector<8x128xf32>
    %140 = vector.extract_strided_slice %69 {offsets = [16, 0], sizes = [8, 384], strides = [1, 1]} : vector<32x384xf32> to vector<8x384xf32>
    %c0_60 = arith.constant 0 : index
    %c0_61 = arith.constant 0 : index
    %c0_62 = arith.constant 0 : index
    %141 = vector.load %arg11[%c0_60, %c0_61, %c0_62] : memref<1x128x384xf32, #tpu.memory_space<vmem>>, vector<1x128x384xf32>
    %142 = vector.shape_cast %141 : vector<1x128x384xf32> to vector<128x384xf32>
    %cst_63 = arith.constant dense<0.000000e+00> : vector<8x384xf32>
    %143 = tpu.matmul %139, %142, %cst_63 {dimension_numbers = #tpu.dot_dimension_numbers<[1], [0], [0], [1], [0, 0, 1, 1], [], []>} : vector<8x128xf32>, vector<128x384xf32>, vector<8x384xf32> -> vector<8x384xf32>
    %c0_64 = arith.constant 0 : index
    %c0_65 = arith.constant 0 : index
    %c0_66 = arith.constant 0 : index
    %144 = vector.load %arg13[%c0_64, %c0_65, %c0_66] : memref<1x1x384xf32, #tpu.memory_space<vmem>>, vector<1x1x384xf32>
    %145 = vector.shape_cast %144 : vector<1x1x384xf32> to vector<1x384xf32>
    %146 = vector.broadcast %145 : vector<1x384xf32> to vector<8x384xf32>
    %147 = arith.addf %143, %146 : vector<8x384xf32>
    %148 = vector.extract_strided_slice %140 {offsets = [0, 0], sizes = [8, 128], strides = [1, 1]} : vector<8x384xf32> to vector<8x128xf32>
    %149 = vector.extract_strided_slice %147 {offsets = [0, 0], sizes = [8, 128], strides = [1, 1]} : vector<8x384xf32> to vector<8x128xf32>
    %150 = arith.addf %148, %149 : vector<8x128xf32>
    %151 = arith.negf %150 : vector<8x128xf32>
    %152 = math.exp %151 : vector<8x128xf32>
    %cst_67 = arith.constant 1.000000e+00 : f32
    %153 = vector.broadcast %cst_67 : f32 to vector<8x128xf32>
    %154 = arith.addf %153, %152 : vector<8x128xf32>
    %155 = arith.divf %153, %154 : vector<8x128xf32>
    %156 = vector.extract_strided_slice %140 {offsets = [0, 128], sizes = [8, 128], strides = [1, 1]} : vector<8x384xf32> to vector<8x128xf32>
    %157 = vector.extract_strided_slice %147 {offsets = [0, 128], sizes = [8, 128], strides = [1, 1]} : vector<8x384xf32> to vector<8x128xf32>
    %158 = arith.addf %156, %157 : vector<8x128xf32>
    %159 = arith.negf %158 : vector<8x128xf32>
    %160 = math.exp %159 : vector<8x128xf32>
    %cst_68 = arith.constant 1.000000e+00 : f32
    %161 = vector.broadcast %cst_68 : f32 to vector<8x128xf32>
    %162 = arith.addf %161, %160 : vector<8x128xf32>
    %163 = arith.divf %161, %162 : vector<8x128xf32>
    %164 = vector.extract_strided_slice %140 {offsets = [0, 256], sizes = [8, 128], strides = [1, 1]} : vector<8x384xf32> to vector<8x128xf32>
    %165 = vector.extract_strided_slice %147 {offsets = [0, 256], sizes = [8, 128], strides = [1, 1]} : vector<8x384xf32> to vector<8x128xf32>
    %166 = arith.mulf %155, %165 : vector<8x128xf32>
    %167 = arith.addf %164, %166 : vector<8x128xf32>
    %168 = math.tanh %167 : vector<8x128xf32>
    %cst_69 = arith.constant 1.000000e+00 : f32
    %169 = vector.broadcast %cst_69 : f32 to vector<8x128xf32>
    %170 = arith.subf %169, %163 : vector<8x128xf32>
    %171 = arith.mulf %170, %168 : vector<8x128xf32>
    %172 = arith.mulf %163, %139 : vector<8x128xf32>
    %173 = arith.addf %171, %172 : vector<8x128xf32>
    %174 = vector.extract_strided_slice %69 {offsets = [24, 0], sizes = [8, 384], strides = [1, 1]} : vector<32x384xf32> to vector<8x384xf32>
    %c0_70 = arith.constant 0 : index
    %c0_71 = arith.constant 0 : index
    %c0_72 = arith.constant 0 : index
    %175 = vector.load %arg11[%c0_70, %c0_71, %c0_72] : memref<1x128x384xf32, #tpu.memory_space<vmem>>, vector<1x128x384xf32>
    %176 = vector.shape_cast %175 : vector<1x128x384xf32> to vector<128x384xf32>
    %cst_73 = arith.constant dense<0.000000e+00> : vector<8x384xf32>
    %177 = tpu.matmul %173, %176, %cst_73 {dimension_numbers = #tpu.dot_dimension_numbers<[1], [0], [0], [1], [0, 0, 1, 1], [], []>} : vector<8x128xf32>, vector<128x384xf32>, vector<8x384xf32> -> vector<8x384xf32>
    %c0_74 = arith.constant 0 : index
    %c0_75 = arith.constant 0 : index
    %c0_76 = arith.constant 0 : index
    %178 = vector.load %arg13[%c0_74, %c0_75, %c0_76] : memref<1x1x384xf32, #tpu.memory_space<vmem>>, vector<1x1x384xf32>
    %179 = vector.shape_cast %178 : vector<1x1x384xf32> to vector<1x384xf32>
    %180 = vector.broadcast %179 : vector<1x384xf32> to vector<8x384xf32>
    %181 = arith.addf %177, %180 : vector<8x384xf32>
    %182 = vector.extract_strided_slice %174 {offsets = [0, 0], sizes = [8, 128], strides = [1, 1]} : vector<8x384xf32> to vector<8x128xf32>
    %183 = vector.extract_strided_slice %181 {offsets = [0, 0], sizes = [8, 128], strides = [1, 1]} : vector<8x384xf32> to vector<8x128xf32>
    %184 = arith.addf %182, %183 : vector<8x128xf32>
    %185 = arith.negf %184 : vector<8x128xf32>
    %186 = math.exp %185 : vector<8x128xf32>
    %cst_77 = arith.constant 1.000000e+00 : f32
    %187 = vector.broadcast %cst_77 : f32 to vector<8x128xf32>
    %188 = arith.addf %187, %186 : vector<8x128xf32>
    %189 = arith.divf %187, %188 : vector<8x128xf32>
    %190 = vector.extract_strided_slice %174 {offsets = [0, 128], sizes = [8, 128], strides = [1, 1]} : vector<8x384xf32> to vector<8x128xf32>
    %191 = vector.extract_strided_slice %181 {offsets = [0, 128], sizes = [8, 128], strides = [1, 1]} : vector<8x384xf32> to vector<8x128xf32>
    %192 = arith.addf %190, %191 : vector<8x128xf32>
    %193 = arith.negf %192 : vector<8x128xf32>
    %194 = math.exp %193 : vector<8x128xf32>
    %cst_78 = arith.constant 1.000000e+00 : f32
    %195 = vector.broadcast %cst_78 : f32 to vector<8x128xf32>
    %196 = arith.addf %195, %194 : vector<8x128xf32>
    %197 = arith.divf %195, %196 : vector<8x128xf32>
    %198 = vector.extract_strided_slice %174 {offsets = [0, 256], sizes = [8, 128], strides = [1, 1]} : vector<8x384xf32> to vector<8x128xf32>
    %199 = vector.extract_strided_slice %181 {offsets = [0, 256], sizes = [8, 128], strides = [1, 1]} : vector<8x384xf32> to vector<8x128xf32>
    %200 = arith.mulf %189, %199 : vector<8x128xf32>
    %201 = arith.addf %198, %200 : vector<8x128xf32>
    %202 = math.tanh %201 : vector<8x128xf32>
    %cst_79 = arith.constant 1.000000e+00 : f32
    %203 = vector.broadcast %cst_79 : f32 to vector<8x128xf32>
    %204 = arith.subf %203, %197 : vector<8x128xf32>
    %205 = arith.mulf %204, %202 : vector<8x128xf32>
    %206 = arith.mulf %197, %173 : vector<8x128xf32>
    %207 = arith.addf %205, %206 : vector<8x128xf32>
    %208 = tpu.concatenate %105, %139, %173, %207 in 0 : vector<8x128xf32>, vector<8x128xf32>, vector<8x128xf32>, vector<8x128xf32> -> vector<32x128xf32>
    %c0_80 = arith.constant 0 : index
    %c0_81 = arith.constant 0 : index
    %c0_82 = arith.constant 0 : index
    %209 = vector.load %arg19[%c0_80, %c0_81, %c0_82] : memref<1x8x128xf32, #tpu.memory_space<vmem>>, vector<1x8x128xf32>
    %210 = vector.shape_cast %209 : vector<1x8x128xf32> to vector<8x128xf32>
    %211 = vector.shape_cast %207 : vector<8x128xf32> to vector<1x8x128xf32>
    tpu.vector_store %arg19[%c0_80, %c0_81, %c0_82], %211 {strides = array<i32>} : memref<1x8x128xf32, #tpu.memory_space<vmem>>, vector<1x8x128xf32>,
    %c0_83 = arith.constant 0 : index
    %c0_84 = arith.constant 0 : index
    %212 = vector.load %arg14[%c0_83, %c0_84] : memref<128x128xf32, #tpu.memory_space<vmem>>, vector<128x128xf32>
    %cst_85 = arith.constant dense<0.000000e+00> : vector<32x128xf32>
    %213 = tpu.matmul %62, %212, %cst_85 {dimension_numbers = #tpu.dot_dimension_numbers<[1], [0], [0], [1], [0, 0, 1, 1], [], []>} : vector<32x128xf32>, vector<128x128xf32>, vector<32x128xf32> -> vector<32x128xf32>
    %c0_86 = arith.constant 0 : index
    %c0_87 = arith.constant 0 : index
    %214 = vector.load %arg15[%c0_86, %c0_87] : memref<1x128xf32, #tpu.memory_space<vmem>>, vector<1x128xf32>
    %215 = vector.broadcast %214 : vector<1x128xf32> to vector<32x128xf32>
    %216 = arith.addf %213, %215 : vector<32x128xf32>
    %217 = arith.negf %216 : vector<32x128xf32>
    %218 = math.exp %217 : vector<32x128xf32>
    %cst_88 = arith.constant 1.000000e+00 : f32
    %219 = vector.broadcast %cst_88 : f32 to vector<32x128xf32>
    %220 = arith.addf %219, %218 : vector<32x128xf32>
    %221 = arith.divf %219, %220 : vector<32x128xf32>
    %222 = arith.mulf %221, %208 : vector<32x128xf32>
    %223 = arith.addf %62, %222 : vector<32x128xf32>
    %c0_89 = arith.constant 0 : index
    %c0_90 = arith.constant 0 : index
    %224 = vector.load %arg16[%c0_89, %c0_90] : memref<128x128xf32, #tpu.memory_space<vmem>>, vector<128x128xf32>
    %cst_91 = arith.constant dense<0.000000e+00> : vector<32x128xf32>
    %225 = tpu.matmul %223, %224, %cst_91 {dimension_numbers = #tpu.dot_dimension_numbers<[1], [0], [0], [1], [0, 0, 1, 1], [], []>} : vector<32x128xf32>, vector<128x128xf32>, vector<32x128xf32> -> vector<32x128xf32>
    %c0_92 = arith.constant 0 : index
    %c0_93 = arith.constant 0 : index
    %226 = vector.load %arg17[%c0_92, %c0_93] : memref<1x128xf32, #tpu.memory_space<vmem>>, vector<1x128xf32>
    %227 = vector.broadcast %226 : vector<1x128xf32> to vector<32x128xf32>
    %228 = arith.addf %225, %227 : vector<32x128xf32>
    %c0_94 = arith.constant 0 : index
    %c0_95 = arith.constant 0 : index
    %229 = vector.load %arg18[%c0_94, %c0_95] : memref<32x128xf32, #tpu.memory_space<vmem>>, vector<32x128xf32>
    tpu.vector_store %arg18[%c0_94, %c0_95], %228 {strides = array<i32>} : memref<32x128xf32, #tpu.memory_space<vmem>>, vector<32x128xf32>,
    return
  }
}

</mosaic_0001>

<llo_original>
// kernel: actor_critic_forward.3
$region0: #{actor_critic_forward.3}
  #allocation0 [shape = 'u32[]', space=smem, size = 0x4, offset = 0x4, fixed_abs, tag = 'smem constant byte address 0x4 - core index']
  #allocation1 [shape = 'u32[144,128]{1,0:T(1,128)}', space=vmem, size = 0x12000, scoped, tag = 'internal scratch']
  %s0 = inlined_call_operand.vmem [shape: f32[32,128], index: 0, kind: input, shape index: {}]
  %s1 = inlined_call_operand.vmem [shape: f32[1,8,128], index: 1, kind: input, shape index: {}]
  %s2 = inlined_call_operand.vmem [shape: f32[128,128], index: 2, kind: input, shape index: {}]
  %s3 = inlined_call_operand.vmem [shape: f32[1,128], index: 3, kind: input, shape index: {}]
  %s4 = inlined_call_operand.vmem [shape: f32[1,128], index: 4, kind: input, shape index: {}]
  %s5 = inlined_call_operand.vmem [shape: f32[1,128], index: 5, kind: input, shape index: {}]
  %s6 = inlined_call_operand.vmem [shape: f32[128,128], index: 6, kind: input, shape index: {}]
  %s7 = inlined_call_operand.vmem [shape: f32[1,128], index: 7, kind: input, shape index: {}]
  %s8 = inlined_call_operand.vmem [shape: f32[1,128], index: 8, kind: input, shape index: {}]
  %s9 = inlined_call_operand.vmem [shape: f32[1,128], index: 9, kind: input, shape index: {}]
  %s10 = inlined_call_operand.vmem [shape: f32[1,128,384], index: 10, kind: input, shape index: {}]
  %s11 = inlined_call_operand.vmem [shape: f32[1,128,384], index: 11, kind: input, shape index: {}]
  %s12 = inlined_call_operand.vmem [shape: f32[1,1,384], index: 12, kind: input, shape index: {}]
  %s13 = inlined_call_operand.vmem [shape: f32[1,1,384], index: 13, kind: input, shape index: {}]
  %s14 = inlined_call_operand.vmem [shape: f32[128,128], index: 14, kind: input, shape index: {}]
  %s15 = inlined_call_operand.vmem [shape: f32[1,128], index: 15, kind: input, shape index: {}]
  %s16 = inlined_call_operand.vmem [shape: f32[128,128], index: 16, kind: input, shape index: {}]
  %s17 = inlined_call_operand.vmem [shape: f32[1,128], index: 17, kind: input, shape index: {}]
  %s18 = inlined_call_operand.vmem [shape: f32[32,128], index: 18, kind: output, shape index: {0}]
  %s19 = inlined_call_operand.vmem [shape: f32[1,8,128], index: 19, kind: output, shape index: {1}]
  %20 = xla_tuple %s18, %s19
  %s21 = sld [smem:[#allocation0]]
  $region90: #{actor_critic_forward.3} parent=0
    _
  %s23 = ssub.s32 1, %s21
  %s24 = scalar_select 0, %s23, %s21
  // Predicated region
  $region2: #{actor_critic_forward.3} parent=0 // pred_check
    _
  $region3: #{actor_critic_forward.3} parent=0 // pred_check_branch
    %26 = sbr.rel (0) target = $region5
  $region4: #{actor_critic_forward.3} parent=0 // pred_region
    _
  $region5: #{actor_critic_forward.3} parent=0 // pred_fallthru
    _
  // Predicated region
  $region6: #{actor_critic_forward.3} parent=0 // pred_check
    _
  $region7: #{actor_critic_forward.3} parent=0 // pred_check_branch
    %28 = sbr.rel (0) target = $region9
  $region8: #{actor_critic_forward.3} parent=0 // pred_region
    _
  $region9: #{actor_critic_forward.3} parent=0 // pred_fallthru
    _
  // Predicated region
  $region10: #{actor_critic_forward.3} parent=0 // pred_check
    _
  $region11: #{actor_critic_forward.3} parent=0 // pred_check_branch
    %30 = sbr.rel (0) target = $region13
  $region12: #{actor_critic_forward.3} parent=0 // pred_region
    _
  $region13: #{actor_critic_forward.3} parent=0 // pred_fallthru
    _
  // Predicated region
  $region14: #{actor_critic_forward.3} parent=0 // pred_check
    _
  $region15: #{actor_critic_forward.3} parent=0 // pred_check_branch
    %32 = sbr.rel (0) target = $region17
  $region16: #{actor_critic_forward.3} parent=0 // pred_region
    _
  $region17: #{actor_critic_forward.3} parent=0 // pred_fallthru
    _
  // Predicated region
  $region18: #{actor_critic_forward.3} parent=0 // pred_check
    _
  $region19: #{actor_critic_forward.3} parent=0 // pred_check_branch
    %34 = sbr.rel (0) target = $region21
  $region20: #{actor_critic_forward.3} parent=0 // pred_region
    _
  $region21: #{actor_critic_forward.3} parent=0 // pred_fallthru
    _
  // Predicated region
  $region22: #{actor_critic_forward.3} parent=0 // pred_check
    _
  $region23: #{actor_critic_forward.3} parent=0 // pred_check_branch
    %36 = sbr.rel (0) target = $region25
  $region24: #{actor_critic_forward.3} parent=0 // pred_region
    _
  $region25: #{actor_critic_forward.3} parent=0 // pred_fallthru
    _
  // Predicated region
  $region26: #{actor_critic_forward.3} parent=0 // pred_check
    _
  $region27: #{actor_critic_forward.3} parent=0 // pred_check_branch
    %38 = sbr.rel (0) target = $region29
  $region28: #{actor_critic_forward.3} parent=0 // pred_region
    _
  $region29: #{actor_critic_forward.3} parent=0 // pred_fallthru
    _
  // Predicated region
  $region30: #{actor_critic_forward.3} parent=0 // pred_check
    _
  $region31: #{actor_critic_forward.3} parent=0 // pred_check_branch
    %40 = sbr.rel (0) target = $region33
  $region32: #{actor_critic_forward.3} parent=0 // pred_region
    _
  $region33: #{actor_critic_forward.3} parent=0 // pred_fallthru
    _
  // Predicated region
  $region34: #{actor_critic_forward.3} parent=0 // pred_check
    _
  $region35: #{actor_critic_forward.3} parent=0 // pred_check_branch
    %42 = sbr.rel (0) target = $region37
  $region36: #{actor_critic_forward.3} parent=0 // pred_region
    _
  $region37: #{actor_critic_forward.3} parent=0 // pred_fallthru
    _
  // Predicated region
  $region38: #{actor_critic_forward.3} parent=0 // pred_check
    _
  $region39: #{actor_critic_forward.3} parent=0 // pred_check_branch
    %44 = sbr.rel (0) target = $region41
  $region40: #{actor_critic_forward.3} parent=0 // pred_region
    _
  $region41: #{actor_critic_forward.3} parent=0 // pred_fallthru
    _
  // Predicated region
  $region42: #{actor_critic_forward.3} parent=0 // pred_check
    _
  $region43: #{actor_critic_forward.3} parent=0 // pred_check_branch
    %46 = sbr.rel (0) target = $region45
  $region44: #{actor_critic_forward.3} parent=0 // pred_region
    _
  $region45: #{actor_critic_forward.3} parent=0 // pred_fallthru
    _
  // Predicated region
  $region46: #{actor_critic_forward.3} parent=0 // pred_check
    _
  $region47: #{actor_critic_forward.3} parent=0 // pred_check_branch
    %48 = sbr.rel (0) target = $region49
  $region48: #{actor_critic_forward.3} parent=0 // pred_region
    _
  $region49: #{actor_critic_forward.3} parent=0 // pred_fallthru
    _
  // Predicated region
  $region50: #{actor_critic_forward.3} parent=0 // pred_check
    _
  $region51: #{actor_critic_forward.3} parent=0 // pred_check_branch
    %50 = sbr.rel (0) target = $region53
  $region52: #{actor_critic_forward.3} parent=0 // pred_region
    _
  $region53: #{actor_critic_forward.3} parent=0 // pred_fallthru
    _
  // Predicated region
  $region54: #{actor_critic_forward.3} parent=0 // pred_check
    _
  $region55: #{actor_critic_forward.3} parent=0 // pred_check_branch
    %52 = sbr.rel (0) target = $region57
  $region56: #{actor_critic_forward.3} parent=0 // pred_region
    _
  $region57: #{actor_critic_forward.3} parent=0 // pred_fallthru
    _
  // Predicated region
  $region58: #{actor_critic_forward.3} parent=0 // pred_check
    _
  $region59: #{actor_critic_forward.3} parent=0 // pred_check_branch
    %54 = sbr.rel (0) target = $region61
  $region60: #{actor_critic_forward.3} parent=0 // pred_region
    _
  $region61: #{actor_critic_forward.3} parent=0 // pred_fallthru
    _
  // Predicated region
  $region62: #{actor_critic_forward.3} parent=0 // pred_check
    _
  $region63: #{actor_critic_forward.3} parent=0 // pred_check_branch
    %56 = sbr.rel (0) target = $region65
  $region64: #{actor_critic_forward.3} parent=0 // pred_region
    _
  $region65: #{actor_critic_forward.3} parent=0 // pred_fallthru
    _
  // Predicated region
  $region66: #{actor_critic_forward.3} parent=0 // pred_check
    _
  $region67: #{actor_critic_forward.3} parent=0 // pred_check_branch
    %58 = sbr.rel (0) target = $region69
  $region68: #{actor_critic_forward.3} parent=0 // pred_region
    _
  $region69: #{actor_critic_forward.3} parent=0 // pred_fallthru
    _
  // Predicated region
  $region70: #{actor_critic_forward.3} parent=0 // pred_check
    _
  $region71: #{actor_critic_forward.3} parent=0 // pred_check_branch
    %60 = sbr.rel (0) target = $region73
  $region72: #{actor_critic_forward.3} parent=0 // pred_region
    _
  $region73: #{actor_critic_forward.3} parent=0 // pred_fallthru
    _
  %v61 = vld [vmem:[%s0] sm:$0xff]
  %v62 = vld [vmem:[%s0 + $0x8] sm:$0xff]
  %v63 = vld [vmem:[%s0 + $0x10] sm:$0xff]
  %v64 = vld [vmem:[%s0 + $0x18] sm:$0xff]
  %v65 = vld [vmem:[%s2] sm:$0xff]
  %v66 = vld [vmem:[%s2 + $0x8] sm:$0xff]
  %v67 = vld [vmem:[%s2 + $0x10] sm:$0xff]
  %v68 = vld [vmem:[%s2 + $0x18] sm:$0xff]
  %v69 = vld [vmem:[%s2 + $0x20] sm:$0xff]
  %v70 = vld [vmem:[%s2 + $0x28] sm:$0xff]
  %v71 = vld [vmem:[%s2 + $0x30] sm:$0xff]
  %v72 = vld [vmem:[%s2 + $0x38] sm:$0xff]
  %v73 = vld [vmem:[%s2 + $0x40] sm:$0xff]
  %v74 = vld [vmem:[%s2 + $0x48] sm:$0xff]
  %v75 = vld [vmem:[%s2 + $0x50] sm:$0xff]
  %v76 = vld [vmem:[%s2 + $0x58] sm:$0xff]
  %v77 = vld [vmem:[%s2 + $0x60] sm:$0xff]
  %v78 = vld [vmem:[%s2 + $0x68] sm:$0xff]
  %v79 = vld [vmem:[%s2 + $0x70] sm:$0xff]
  %v80 = vld [vmem:[%s2 + $0x78] sm:$0xff]
  %v81 = vld [vmem:[%s3] sm:$0x1]
  %v82 = vld [vmem:[%s4] sm:$0x1]
  %v83 = vld [vmem:[%s5] sm:$0x1]
  %v85 = vlaneseq
  %v86 = vshrl.u32 %v85, 7
  %v87 = vsub.s32 0, %v86
  %v88 = vrot.slane %v81, %v87
  %90 = vmatprep.subr.mxu0 0.0
  %91 = vmatpush1.msra.mxu0 %v65
  %92 = vmatprep.subr.mxu0 0.0
  %93 = vmatpush1.msra.mxu0 %v66
  %94 = vmatprep.subr.mxu0 0.0
  %95 = vmatpush1.msra.mxu0 %v67
  %96 = vmatprep.subr.mxu0 0.0
  %97 = vmatpush1.msra.mxu0 %v68
  %98 = vmatprep.subr.mxu0 0.0
  %99 = vmatpush1.msra.mxu0 %v69
  %100 = vmatprep.subr.mxu0 0.0
  %101 = vmatpush1.msra.mxu0 %v70
  %102 = vmatprep.subr.mxu0 0.0
  %103 = vmatpush1.msra.mxu0 %v71
  %104 = vmatprep.subr.mxu0 0.0
  %105 = vmatpush1.msra.mxu0 %v72
  %106 = vmatprep.subr.mxu0 0.0
  %107 = vmatpush1.msra.mxu0 %v73
  %108 = vmatprep.subr.mxu0 0.0
  %109 = vmatpush1.msra.mxu0 %v74
  %110 = vmatprep.subr.mxu0 0.0
  %111 = vmatpush1.msra.mxu0 %v75
  %112 = vmatprep.subr.mxu0 0.0
  %113 = vmatpush1.msra.mxu0 %v76
  %114 = vmatprep.subr.mxu0 0.0
  %115 = vmatpush1.msra.mxu0 %v77
  %116 = vmatprep.subr.mxu0 0.0
  %117 = vmatpush1.msra.mxu0 %v78
  %118 = vmatprep.subr.mxu0 0.0
  %119 = vmatpush1.msra.mxu0 %v79
  %120 = vmatprep.subr.mxu0 0.0
  %121 = vmatpush1.msra.mxu0 %v80
  %122 = vmatprep.subr.mxu0 0.0
  %123 = vmatpush1.msra.mxu0 0.0
  %124 = vmatprep.subr.mxu0 0.0
  %125 = vmatpush1.msra.mxu0 0.0
  %126 = vmatprep.subr.mxu0 0.0
  %127 = vmatpush1.msra.mxu0 0.0
  %128 = vmatprep.subr.mxu0 0.0
  %129 = vmatpush1.msra.mxu0 0.0
  %130 = vmatprep.subr.mxu0 0.0
  %131 = vmatpush1.msra.mxu0 0.0
  %132 = vmatprep.subr.mxu0 0.0
  %133 = vmatpush1.msra.mxu0 0.0
  %134 = vmatprep.subr.mxu0 0.0
  %135 = vmatpush1.msra.mxu0 0.0
  %136 = vmatprep.subr.mxu0 0.0
  %137 = vmatpush1.msra.mxu0 0.0
  %138 = vmatprep.subr.mxu0 0.0
  %139 = vmatpush1.msra.mxu0 0.0
  %140 = vmatprep.subr.mxu0 0.0
  %141 = vmatpush1.msra.mxu0 0.0
  %142 = vmatprep.subr.mxu0 0.0
  %143 = vmatpush1.msra.mxu0 0.0
  %144 = vmatprep.subr.mxu0 0.0
  %145 = vmatpush1.msra.mxu0 0.0
  %146 = vmatprep.subr.mxu0 0.0
  %147 = vmatpush1.msra.mxu0 0.0
  %148 = vmatprep.subr.mxu0 0.0
  %149 = vmatpush1.msra.mxu0 0.0
  %150 = vmatprep.subr.mxu0 0.0
  %151 = vmatpush1.msra.mxu0 0.0
  %152 = vmatprep.subr.mxu0 0.0
  %153 = vmatpush1.msra.mxu0 0.0
  %154 = vmatprep.mubr.f32.mxu0 0.0
  %155 = vmatmul.mubr.f32.gmra.mrb[0].mxu0 %v61
  %v156 = vpop.f32.mrb[0].mxu0
  %v157 = vadd.f32 %v88, %v156
  %v158 = vpop.f32.mrb[0].mxu0
  %159 = vmatprep.mubr.f32.mxu0 0.0
  %160 = vmatmul.mubr.f32.gmra.mrb[0].mxu0 %v62
  %v161 = vpop.f32.mrb[0].mxu0
  %v162 = vadd.f32 %v88, %v161
  %v163 = vpop.f32.mrb[0].mxu0
  %164 = vmatprep.mubr.f32.mxu0 0.0
  %165 = vmatmul.mubr.f32.gmra.mrb[0].mxu0 %v63
  %v166 = vpop.f32.mrb[0].mxu0
  %v167 = vadd.f32 %v88, %v166
  %v168 = vpop.f32.mrb[0].mxu0
  %169 = vmatprep.mubr.f32.mxu0 0.0
  %170 = vmatmul.mubr.f32.gmra.mrb[0].mxu0 %v64
  %v171 = vpop.f32.mrb[0].mxu0
  %v172 = vadd.f32 %v88, %v171
  %v173 = vpop.f32.mrb[0].mxu0
  %174 = vdwg.mxu0
  %v175 = vmax.f32 %v157, 0.0
  %v176 = vmax.f32 %v162, 0.0
  %v177 = vmax.f32 %v167, 0.0
  %v178 = vmax.f32 %v172, 0.0
  %179 = vadd.xlane.f32.xlu0 %v175
  %v180 = vpop.xlane.xlu0 %179
  %181 = vadd.xlane.f32.xlu0 %v176
  %v182 = vpop.xlane.xlu0 %181
  %183 = vadd.xlane.f32.xlu0 %v177
  %v184 = vpop.xlane.xlu0 %183
  %185 = vadd.xlane.f32.xlu0 %v178
  %v186 = vpop.xlane.xlu0 %185
  %v187 = vmul.f32 %v180, 0.03125
  %v188 = vmul.f32 %v182, 0.03125
  %v189 = vmul.f32 %v184, 0.03125
  %v190 = vmul.f32 %v186, 0.03125
  %v191 = vmul.f32 %v175, %v175
  %v192 = vmul.f32 %v176, %v176
  %v193 = vmul.f32 %v177, %v177
  %v194 = vmul.f32 %v178, %v178
  %195 = vadd.xlane.f32.xlu0 %v191
  %v196 = vpop.xlane.xlu0 %195
  %197 = vadd.xlane.f32.xlu0 %v192
  %v198 = vpop.xlane.xlu0 %197
  %199 = vadd.xlane.f32.xlu0 %v193
  %v200 = vpop.xlane.xlu0 %199
  %201 = vadd.xlane.f32.xlu0 %v194
  %v202 = vpop.xlane.xlu0 %201
  %v203 = vmul.f32 %v196, 0.03125
  %v204 = vmul.f32 %v198, 0.03125
  %v205 = vmul.f32 %v200, 0.03125
  %v206 = vmul.f32 %v202, 0.03125
  %v207 = vmul.f32 %v187, %v187
  %v208 = vmul.f32 %v188, %v188
  %v209 = vmul.f32 %v189, %v189
  %v210 = vmul.f32 %v190, %v190
  %v211 = vsub.f32 %v203, %v207
  %v212 = vsub.f32 %v204, %v208
  %v213 = vsub.f32 %v205, %v209
  %v214 = vsub.f32 %v206, %v210
  %v215 = vsub.f32 %v175, %v187
  %v216 = vsub.f32 %v176, %v188
  %v217 = vsub.f32 %v177, %v189
  %v218 = vsub.f32 %v178, %v190
  %v219 = vadd.f32 %v211, 1e-05
  %v220 = vadd.f32 %v212, 1e-05
  %v221 = vadd.f32 %v213, 1e-05
  %v222 = vadd.f32 %v214, 1e-05
  %v223 = vrsqrt.pop %v219
  %v224 = vrsqrt.pop %v220
  %v225 = vrsqrt.pop %v221
  %v226 = vrsqrt.pop %v222
  %v227 = vmul.f32 %v215, %v223
  %v228 = vmul.f32 %v216, %v224
  %v229 = vmul.f32 %v217, %v225
  %v230 = vmul.f32 %v218, %v226
  %v232 = vlaneseq
  %v233 = vshrl.u32 %v232, 7
  %v234 = vsub.s32 0, %v233
  %v235 = vrot.slane %v82, %v234
  %v237 = vmul.f32 %v227, %v235
  %v238 = vmul.f32 %v228, %v235
  %v239 = vmul.f32 %v229, %v235
  %v240 = vmul.f32 %v230, %v235
  %v242 = vlaneseq
  %v243 = vshrl.u32 %v242, 7
  %v244 = vsub.s32 0, %v243
  %v245 = vrot.slane %v83, %v244
  %v247 = vadd.f32 %v237, %v245
  %v248 = vadd.f32 %v238, %v245
  %v249 = vadd.f32 %v239, %v245
  %v250 = vadd.f32 %v240, %v245
  %v251 = vld [vmem:[%s6] sm:$0xff]
  %v252 = vld [vmem:[%s6 + $0x8] sm:$0xff]
  %v253 = vld [vmem:[%s6 + $0x10] sm:$0xff]
  %v254 = vld [vmem:[%s6 + $0x18] sm:$0xff]
  %v255 = vld [vmem:[%s6 + $0x20] sm:$0xff]
  %v256 = vld [vmem:[%s6 + $0x28] sm:$0xff]
  %v257 = vld [vmem:[%s6 + $0x30] sm:$0xff]
  %v258 = vld [vmem:[%s6 + $0x38] sm:$0xff]
  %v259 = vld [vmem:[%s6 + $0x40] sm:$0xff]
  %v260 = vld [vmem:[%s6 + $0x48] sm:$0xff]
  %v261 = vld [vmem:[%s6 + $0x50] sm:$0xff]
  %v262 = vld [vmem:[%s6 + $0x58] sm:$0xff]
  %v263 = vld [vmem:[%s6 + $0x60] sm:$0xff]
  %v264 = vld [vmem:[%s6 + $0x68] sm:$0xff]
  %v265 = vld [vmem:[%s6 + $0x70] sm:$0xff]
  %v266 = vld [vmem:[%s6 + $0x78] sm:$0xff]
  %v267 = vld [vmem:[%s7] sm:$0x1]
  %v268 = vld [vmem:[%s8] sm:$0x1]
  %v269 = vld [vmem:[%s9] sm:$0x1]
  %v271 = vlaneseq
  %v272 = vshrl.u32 %v271, 7
  %v273 = vsub.s32 0, %v272
  %v274 = vrot.slane %v267, %v273
  %276 = vmatprep.subr.mxu0 0.0
  %277 = vmatpush1.msra.mxu0 %v251
  %278 = vmatprep.subr.mxu0 0.0
  %279 = vmatpush1.msra.mxu0 %v252
  %280 = vmatprep.subr.mxu0 0.0
  %281 = vmatpush1.msra.mxu0 %v253
  %282 = vmatprep.subr.mxu0 0.0
  %283 = vmatpush1.msra.mxu0 %v254
  %284 = vmatprep.subr.mxu0 0.0
  %285 = vmatpush1.msra.mxu0 %v255
  %286 = vmatprep.subr.mxu0 0.0
  %287 = vmatpush1.msra.mxu0 %v256
  %288 = vmatprep.subr.mxu0 0.0
  %289 = vmatpush1.msra.mxu0 %v257
  %290 = vmatprep.subr.mxu0 0.0
  %291 = vmatpush1.msra.mxu0 %v258
  %292 = vmatprep.subr.mxu0 0.0
  %293 = vmatpush1.msra.mxu0 %v259
  %294 = vmatprep.subr.mxu0 0.0
  %295 = vmatpush1.msra.mxu0 %v260
  %296 = vmatprep.subr.mxu0 0.0
  %297 = vmatpush1.msra.mxu0 %v261
  %298 = vmatprep.subr.mxu0 0.0
  %299 = vmatpush1.msra.mxu0 %v262
  %300 = vmatprep.subr.mxu0 0.0
  %301 = vmatpush1.msra.mxu0 %v263
  %302 = vmatprep.subr.mxu0 0.0
  %303 = vmatpush1.msra.mxu0 %v264
  %304 = vmatprep.subr.mxu0 0.0
  %305 = vmatpush1.msra.mxu0 %v265
  %306 = vmatprep.subr.mxu0 0.0
  %307 = vmatpush1.msra.mxu0 %v266
  %308 = vmatprep.subr.mxu0 0.0
  %309 = vmatpush1.msra.mxu0 0.0
  %310 = vmatprep.subr.mxu0 0.0
  %311 = vmatpush1.msra.mxu0 0.0
  %312 = vmatprep.subr.mxu0 0.0
  %313 = vmatpush1.msra.mxu0 0.0
  %314 = vmatprep.subr.mxu0 0.0
  %315 = vmatpush1.msra.mxu0 0.0
  %316 = vmatprep.subr.mxu0 0.0
  %317 = vmatpush1.msra.mxu0 0.0
  %318 = vmatprep.subr.mxu0 0.0
  %319 = vmatpush1.msra.mxu0 0.0
  %320 = vmatprep.subr.mxu0 0.0
  %321 = vmatpush1.msra.mxu0 0.0
  %322 = vmatprep.subr.mxu0 0.0
  %323 = vmatpush1.msra.mxu0 0.0
  %324 = vmatprep.subr.mxu0 0.0
  %325 = vmatpush1.msra.mxu0 0.0
  %326 = vmatprep.subr.mxu0 0.0
  %327 = vmatpush1.msra.mxu0 0.0
  %328 = vmatprep.subr.mxu0 0.0
  %329 = vmatpush1.msra.mxu0 0.0
  %330 = vmatprep.subr.mxu0 0.0
  %331 = vmatpush1.msra.mxu0 0.0
  %332 = vmatprep.subr.mxu0 0.0
  %333 = vmatpush1.msra.mxu0 0.0
  %334 = vmatprep.subr.mxu0 0.0
  %335 = vmatpush1.msra.mxu0 0.0
  %336 = vmatprep.subr.mxu0 0.0
  %337 = vmatpush1.msra.mxu0 0.0
  %338 = vmatprep.subr.mxu0 0.0
  %339 = vmatpush1.msra.mxu0 0.0
  %340 = vmatprep.mubr.f32.mxu0 0.0
  %341 = vmatmul.mubr.f32.gmra.mrb[0].mxu0 %v247
  %v342 = vpop.f32.mrb[0].mxu0
  %v343 = vadd.f32 %v274, %v342
  %v344 = vpop.f32.mrb[0].mxu0
  %345 = vmatprep.mubr.f32.mxu0 0.0
  %346 = vmatmul.mubr.f32.gmra.mrb[0].mxu0 %v248
  %v347 = vpop.f32.mrb[0].mxu0
  %v348 = vadd.f32 %v274, %v347
  %v349 = vpop.f32.mrb[0].mxu0
  %350 = vmatprep.mubr.f32.mxu0 0.0
  %351 = vmatmul.mubr.f32.gmra.mrb[0].mxu0 %v249
  %v352 = vpop.f32.mrb[0].mxu0
  %v353 = vadd.f32 %v274, %v352
  %v354 = vpop.f32.mrb[0].mxu0
  %355 = vmatprep.mubr.f32.mxu0 0.0
  %356 = vmatmul.mubr.f32.gmra.mrb[0].mxu0 %v250
  %v357 = vpop.f32.mrb[0].mxu0
  %v358 = vadd.f32 %v274, %v357
  %v359 = vpop.f32.mrb[0].mxu0
  %360 = vdwg.mxu0
  %v361 = vmax.f32 %v343, 0.0
  %v362 = vmax.f32 %v348, 0.0
  %v363 = vmax.f32 %v353, 0.0
  %v364 = vmax.f32 %v358, 0.0
  %365 = vadd.xlane.f32.xlu0 %v361
  %v366 = vpop.xlane.xlu0 %365
  %367 = vadd.xlane.f32.xlu0 %v362
  %v368 = vpop.xlane.xlu0 %367
  %369 = vadd.xlane.f32.xlu0 %v363
  %v370 = vpop.xlane.xlu0 %369
  %371 = vadd.xlane.f32.xlu0 %v364
  %v372 = vpop.xlane.xlu0 %371
  %v373 = vmul.f32 %v366, 0.03125
  %v374 = vmul.f32 %v368, 0.03125
  %v375 = vmul.f32 %v370, 0.03125
  %v376 = vmul.f32 %v372, 0.03125
  %v377 = vmul.f32 %v361, %v361
  %v378 = vmul.f32 %v362, %v362
  %v379 = vmul.f32 %v363, %v363
  %v380 = vmul.f32 %v364, %v364
  %381 = vadd.xlane.f32.xlu0 %v377
  %v382 = vpop.xlane.xlu0 %381
  %383 = vadd.xlane.f32.xlu0 %v378
  %v384 = vpop.xlane.xlu0 %383
  %385 = vadd.xlane.f32.xlu0 %v379
  %v386 = vpop.xlane.xlu0 %385
  %387 = vadd.xlane.f32.xlu0 %v380
  %v388 = vpop.xlane.xlu0 %387
  %v389 = vmul.f32 %v382, 0.03125
  %v390 = vmul.f32 %v384, 0.03125
  %v391 = vmul.f32 %v386, 0.03125
  %v392 = vmul.f32 %v388, 0.03125
  %v393 = vmul.f32 %v373, %v373
  %v394 = vmul.f32 %v374, %v374
  %v395 = vmul.f32 %v375, %v375
  %v396 = vmul.f32 %v376, %v376
  %v397 = vsub.f32 %v389, %v393
  %v398 = vsub.f32 %v390, %v394
  %v399 = vsub.f32 %v391, %v395
  %v400 = vsub.f32 %v392, %v396
  %v401 = vsub.f32 %v361, %v373
  %v402 = vsub.f32 %v362, %v374
  %v403 = vsub.f32 %v363, %v375
  %v404 = vsub.f32 %v364, %v376
  %v405 = vadd.f32 %v397, 1e-05
  %v406 = vadd.f32 %v398, 1e-05
  %v407 = vadd.f32 %v399, 1e-05
  %v408 = vadd.f32 %v400, 1e-05
  %v409 = vrsqrt.pop %v405
  %v410 = vrsqrt.pop %v406
  %v411 = vrsqrt.pop %v407
  %v412 = vrsqrt.pop %v408
  %v413 = vmul.f32 %v401, %v409
  %v414 = vmul.f32 %v402, %v410
  %v415 = vmul.f32 %v403, %v411
  %v416 = vmul.f32 %v404, %v412
  %v418 = vlaneseq
  %v419 = vshrl.u32 %v418, 7
  %v420 = vsub.s32 0, %v419
  %v421 = vrot.slane %v268, %v420
  %v423 = vmul.f32 %v413, %v421
  %v424 = vmul.f32 %v414, %v421
  %v425 = vmul.f32 %v415, %v421
  %v426 = vmul.f32 %v416, %v421
  %v428 = vlaneseq
  %v429 = vshrl.u32 %v428, 7
  %v430 = vsub.s32 0, %v429
  %v431 = vrot.slane %v269, %v430
  %v433 = vadd.f32 %v423, %v431
  %v434 = vadd.f32 %v424, %v431
  %v435 = vadd.f32 %v425, %v431
  %v436 = vadd.f32 %v426, %v431
  %v437 = vld [vmem:[%s10] sm:$0xff]
  %v438 = vld [vmem:[%s10 + $0x8] sm:$0xff]
  %v439 = vld [vmem:[%s10 + $0x10] sm:$0xff]
  %v440 = vld [vmem:[%s10 + $0x18] sm:$0xff]
  %v441 = vld [vmem:[%s10 + $0x20] sm:$0xff]
  %v442 = vld [vmem:[%s10 + $0x28] sm:$0xff]
  %v443 = vld [vmem:[%s10 + $0x30] sm:$0xff]
  %v444 = vld [vmem:[%s10 + $0x38] sm:$0xff]
  %v445 = vld [vmem:[%s10 + $0x40] sm:$0xff]
  %v446 = vld [vmem:[%s10 + $0x48] sm:$0xff]
  %v447 = vld [vmem:[%s10 + $0x50] sm:$0xff]
  %v448 = vld [vmem:[%s10 + $0x58] sm:$0xff]
  %v449 = vld [vmem:[%s10 + $0x60] sm:$0xff]
  %v450 = vld [vmem:[%s10 + $0x68] sm:$0xff]
  %v451 = vld [vmem:[%s10 + $0x70] sm:$0xff]
  %v452 = vld [vmem:[%s10 + $0x78] sm:$0xff]
  %v453 = vld [vmem:[%s10 + $0x80] sm:$0xff]
  %v454 = vld [vmem:[%s10 + $0x88] sm:$0xff]
  %v455 = vld [vmem:[%s10 + $0x90] sm:$0xff]
  %v456 = vld [vmem:[%s10 + $0x98] sm:$0xff]
  %v457 = vld [vmem:[%s10 + $0xa0] sm:$0xff]
  %v458 = vld [vmem:[%s10 + $0xa8] sm:$0xff]
  %v459 = vld [vmem:[%s10 + $0xb0] sm:$0xff]
  %v460 = vld [vmem:[%s10 + $0xb8] sm:$0xff]
  %v461 = vld [vmem:[%s10 + $0xc0] sm:$0xff]
  %v462 = vld [vmem:[%s10 + $0xc8] sm:$0xff]
  %v463 = vld [vmem:[%s10 + $0xd0] sm:$0xff]
  %v464 = vld [vmem:[%s10 + $0xd8] sm:$0xff]
  %v465 = vld [vmem:[%s10 + $0xe0] sm:$0xff]
  %v466 = vld [vmem:[%s10 + $0xe8] sm:$0xff]
  %v467 = vld [vmem:[%s10 + $0xf0] sm:$0xff]
  %v468 = vld [vmem:[%s10 + $0xf8] sm:$0xff]
  %v469 = vld [vmem:[%s10 + $0x100] sm:$0xff]
  %v470 = vld [vmem:[%s10 + $0x108] sm:$0xff]
  %v471 = vld [vmem:[%s10 + $0x110] sm:$0xff]
  %v472 = vld [vmem:[%s10 + $0x118] sm:$0xff]
  %v473 = vld [vmem:[%s10 + $0x120] sm:$0xff]
  %v474 = vld [vmem:[%s10 + $0x128] sm:$0xff]
  %v475 = vld [vmem:[%s10 + $0x130] sm:$0xff]
  %v476 = vld [vmem:[%s10 + $0x138] sm:$0xff]
  %v477 = vld [vmem:[%s10 + $0x140] sm:$0xff]
  %v478 = vld [vmem:[%s10 + $0x148] sm:$0xff]
  %v479 = vld [vmem:[%s10 + $0x150] sm:$0xff]
  %v480 = vld [vmem:[%s10 + $0x158] sm:$0xff]
  %v481 = vld [vmem:[%s10 + $0x160] sm:$0xff]
  %v482 = vld [vmem:[%s10 + $0x168] sm:$0xff]
  %v483 = vld [vmem:[%s10 + $0x170] sm:$0xff]
  %v484 = vld [vmem:[%s10 + $0x178] sm:$0xff]
  %v485 = vld [vmem:[%s12] sm:$0x7]
  %v487 = vlaneseq
  %v488 = vshrl.u32 %v487, 7
  %v489 = vsub.s32 0, %v488
  %v490 = vrot.slane %v485, %v489
  %v491 = vlaneseq
  %v492 = vshrl.u32 %v491, 7
  %v493 = vsub.s32 1, %v492
  %v494 = vrot.slane %v485, %v493
  %v495 = vlaneseq
  %v496 = vshrl.u32 %v495, 7
  %v497 = vsub.s32 2, %v496
  %v498 = vrot.slane %v485, %v497
  %502 = vmatprep.subr.mxu0 %v438
  %503 = vmatpush1.msra.mxu0 %v437
  %504 = vmatprep.subr.mxu0 %v441
  %505 = vmatpush1.msra.mxu0 %v440
  %506 = vmatprep.subr.mxu0 %v444
  %507 = vmatpush1.msra.mxu0 %v443
  %508 = vmatprep.subr.mxu0 %v447
  %509 = vmatpush1.msra.mxu0 %v446
  %510 = vmatprep.subr.mxu0 %v450
  %511 = vmatpush1.msra.mxu0 %v449
  %512 = vmatprep.subr.mxu0 %v453
  %513 = vmatpush1.msra.mxu0 %v452
  %514 = vmatprep.subr.mxu0 %v456
  %515 = vmatpush1.msra.mxu0 %v455
  %516 = vmatprep.subr.mxu0 %v459
  %517 = vmatpush1.msra.mxu0 %v458
  %518 = vmatprep.subr.mxu0 %v462
  %519 = vmatpush1.msra.mxu0 %v461
  %520 = vmatprep.subr.mxu0 %v465
  %521 = vmatpush1.msra.mxu0 %v464
  %522 = vmatprep.subr.mxu0 %v468
  %523 = vmatpush1.msra.mxu0 %v467
  %524 = vmatprep.subr.mxu0 %v471
  %525 = vmatpush1.msra.mxu0 %v470
  %526 = vmatprep.subr.mxu0 %v474
  %527 = vmatpush1.msra.mxu0 %v473
  %528 = vmatprep.subr.mxu0 %v477
  %529 = vmatpush1.msra.mxu0 %v476
  %530 = vmatprep.subr.mxu0 %v480
  %531 = vmatpush1.msra.mxu0 %v479
  %532 = vmatprep.subr.mxu0 %v483
  %533 = vmatpush1.msra.mxu0 %v482
  %534 = vmatprep.subr.mxu0 0.0
  %535 = vmatpush1.msra.mxu0 0.0
  %536 = vmatprep.subr.mxu0 0.0
  %537 = vmatpush1.msra.mxu0 0.0
  %538 = vmatprep.subr.mxu0 0.0
  %539 = vmatpush1.msra.mxu0 0.0
  %540 = vmatprep.subr.mxu0 0.0
  %541 = vmatpush1.msra.mxu0 0.0
  %542 = vmatprep.subr.mxu0 0.0
  %543 = vmatpush1.msra.mxu0 0.0
  %544 = vmatprep.subr.mxu0 0.0
  %545 = vmatpush1.msra.mxu0 0.0
  %546 = vmatprep.subr.mxu0 0.0
  %547 = vmatpush1.msra.mxu0 0.0
  %548 = vmatprep.subr.mxu0 0.0
  %549 = vmatpush1.msra.mxu0 0.0
  %550 = vmatprep.subr.mxu0 0.0
  %551 = vmatpush1.msra.mxu0 0.0
  %552 = vmatprep.subr.mxu0 0.0
  %553 = vmatpush1.msra.mxu0 0.0
  %554 = vmatprep.subr.mxu0 0.0
  %555 = vmatpush1.msra.mxu0 0.0
  %556 = vmatprep.subr.mxu0 0.0
  %557 = vmatpush1.msra.mxu0 0.0
  %558 = vmatprep.subr.mxu0 0.0
  %559 = vmatpush1.msra.mxu0 0.0
  %560 = vmatprep.subr.mxu0 0.0
  %561 = vmatpush1.msra.mxu0 0.0
  %562 = vmatprep.subr.mxu0 0.0
  %563 = vmatpush1.msra.mxu0 0.0
  %564 = vmatprep.subr.mxu0 0.0
  %565 = vmatpush1.msra.mxu0 0.0
  %566 = vmatprep.mubr.f32.mxu0 0.0
  %567 = vmatmul.mubr.f32.gmra.mrb[0].mxu0 %v433
  %v568 = vpop.f32.mrb[0].mxu0
  %v569 = vadd.f32 %v490, %v568
  %v570 = vpop.f32.mrb[0].mxu0
  %v571 = vadd.f32 %v494, %v570
  %572 = vmatprep.mubr.f32.mxu0 0.0
  %573 = vmatmul.mubr.f32.gmra.mrb[0].mxu0 %v434
  %v574 = vpop.f32.mrb[0].mxu0
  %v575 = vadd.f32 %v490, %v574
  %v576 = vpop.f32.mrb[0].mxu0
  %v577 = vadd.f32 %v494, %v576
  %578 = vmatprep.mubr.f32.mxu0 0.0
  %579 = vmatmul.mubr.f32.gmra.mrb[0].mxu0 %v435
  %v580 = vpop.f32.mrb[0].mxu0
  %v581 = vadd.f32 %v490, %v580
  %v582 = vpop.f32.mrb[0].mxu0
  %v583 = vadd.f32 %v494, %v582
  %584 = vmatprep.mubr.f32.mxu0 0.0
  %585 = vmatmul.mubr.f32.gmra.mrb[0].mxu0 %v436
  %v586 = vpop.f32.mrb[0].mxu0
  %v587 = vadd.f32 %v490, %v586
  %v588 = vpop.f32.mrb[0].mxu0
  %v589 = vadd.f32 %v494, %v588
  %590 = vdwg.mxu0
  %591 = vmatprep.subr.mxu0 0.0
  %592 = vmatpush1.msra.mxu0 %v439
  %593 = vmatprep.subr.mxu0 0.0
  %594 = vmatpush1.msra.mxu0 %v442
  %595 = vmatprep.subr.mxu0 0.0
  %596 = vmatpush1.msra.mxu0 %v445
  %597 = vmatprep.subr.mxu0 0.0
  %598 = vmatpush1.msra.mxu0 %v448
  %599 = vmatprep.subr.mxu0 0.0
  %600 = vmatpush1.msra.mxu0 %v451
  %601 = vmatprep.subr.mxu0 0.0
  %602 = vmatpush1.msra.mxu0 %v454
  %603 = vmatprep.subr.mxu0 0.0
  %604 = vmatpush1.msra.mxu0 %v457
  %605 = vmatprep.subr.mxu0 0.0
  %606 = vmatpush1.msra.mxu0 %v460
  %607 = vmatprep.subr.mxu0 0.0
  %608 = vmatpush1.msra.mxu0 %v463
  %609 = vmatprep.subr.mxu0 0.0
  %610 = vmatpush1.msra.mxu0 %v466
  %611 = vmatprep.subr.mxu0 0.0
  %612 = vmatpush1.msra.mxu0 %v469
  %613 = vmatprep.subr.mxu0 0.0
  %614 = vmatpush1.msra.mxu0 %v472
  %615 = vmatprep.subr.mxu0 0.0
  %616 = vmatpush1.msra.mxu0 %v475
  %617 = vmatprep.subr.mxu0 0.0
  %618 = vmatpush1.msra.mxu0 %v478
  %619 = vmatprep.subr.mxu0 0.0
  %620 = vmatpush1.msra.mxu0 %v481
  %621 = vmatprep.subr.mxu0 0.0
  %622 = vmatpush1.msra.mxu0 %v484
  %623 = vmatprep.subr.mxu0 0.0
  %624 = vmatpush1.msra.mxu0 0.0
  %625 = vmatprep.subr.mxu0 0.0
  %626 = vmatpush1.msra.mxu0 0.0
  %627 = vmatprep.subr.mxu0 0.0
  %628 = vmatpush1.msra.mxu0 0.0
  %629 = vmatprep.subr.mxu0 0.0
  %630 = vmatpush1.msra.mxu0 0.0
  %631 = vmatprep.subr.mxu0 0.0
  %632 = vmatpush1.msra.mxu0 0.0
  %633 = vmatprep.subr.mxu0 0.0
  %634 = vmatpush1.msra.mxu0 0.0
  %635 = vmatprep.subr.mxu0 0.0
  %636 = vmatpush1.msra.mxu0 0.0
  %637 = vmatprep.subr.mxu0 0.0
  %638 = vmatpush1.msra.mxu0 0.0
  %639 = vmatprep.subr.mxu0 0.0
  %640 = vmatpush1.msra.mxu0 0.0
  %641 = vmatprep.subr.mxu0 0.0
  %642 = vmatpush1.msra.mxu0 0.0
  %643 = vmatprep.subr.mxu0 0.0
  %644 = vmatpush1.msra.mxu0 0.0
  %645 = vmatprep.subr.mxu0 0.0
  %646 = vmatpush1.msra.mxu0 0.0
  %647 = vmatprep.subr.mxu0 0.0
  %648 = vmatpush1.msra.mxu0 0.0
  %649 = vmatprep.subr.mxu0 0.0
  %650 = vmatpush1.msra.mxu0 0.0
  %651 = vmatprep.subr.mxu0 0.0
  %652 = vmatpush1.msra.mxu0 0.0
  %653 = vmatprep.subr.mxu0 0.0
  %654 = vmatpush1.msra.mxu0 0.0
  %655 = vmatprep.mubr.f32.mxu0 0.0
  %656 = vmatmul.mubr.f32.gmra.mrb[0].mxu0 %v433
  %v657 = vpop.f32.mrb[0].mxu0
  %v658 = vadd.f32 %v498, %v657
  %v659 = vpop.f32.mrb[0].mxu0
  %660 = vmatprep.mubr.f32.mxu0 0.0
  %661 = vmatmul.mubr.f32.gmra.mrb[0].mxu0 %v434
  %v662 = vpop.f32.mrb[0].mxu0
  %v663 = vadd.f32 %v498, %v662
  %v664 = vpop.f32.mrb[0].mxu0
  %665 = vmatprep.mubr.f32.mxu0 0.0
  %666 = vmatmul.mubr.f32.gmra.mrb[0].mxu0 %v435
  %v667 = vpop.f32.mrb[0].mxu0
  %v668 = vadd.f32 %v498, %v667
  %v669 = vpop.f32.mrb[0].mxu0
  %670 = vmatprep.mubr.f32.mxu0 0.0
  %671 = vmatmul.mubr.f32.gmra.mrb[0].mxu0 %v436
  %v672 = vpop.f32.mrb[0].mxu0
  %v673 = vadd.f32 %v498, %v672
  %v674 = vpop.f32.mrb[0].mxu0
  %675 = vdwg.mxu0
  %v676 = vld [vmem:[%s1] sm:$0xff]
  %v677 = vld [vmem:[%s11] sm:$0xff]
  %v678 = vld [vmem:[%s11 + $0x8] sm:$0xff]
  %v679 = vld [vmem:[%s11 + $0x10] sm:$0xff]
  %v680 = vld [vmem:[%s11 + $0x18] sm:$0xff]
  %v681 = vld [vmem:[%s11 + $0x20] sm:$0xff]
  %v682 = vld [vmem:[%s11 + $0x28] sm:$0xff]
  %v683 = vld [vmem:[%s11 + $0x30] sm:$0xff]
  %v684 = vld [vmem:[%s11 + $0x38] sm:$0xff]
  %v685 = vld [vmem:[%s11 + $0x40] sm:$0xff]
  %v686 = vld [vmem:[%s11 + $0x48] sm:$0xff]
  %v687 = vld [vmem:[%s11 + $0x50] sm:$0xff]
  %v688 = vld [vmem:[%s11 + $0x58] sm:$0xff]
  %v689 = vld [vmem:[%s11 + $0x60] sm:$0xff]
  %v690 = vld [vmem:[%s11 + $0x68] sm:$0xff]
  %v691 = vld [vmem:[%s11 + $0x70] sm:$0xff]
  %v692 = vld [vmem:[%s11 + $0x78] sm:$0xff]
  %v693 = vld [vmem:[%s11 + $0x80] sm:$0xff]
  %v694 = vld [vmem:[%s11 + $0x88] sm:$0xff]
  %v695 = vld [vmem:[%s11 + $0x90] sm:$0xff]
  %v696 = vld [vmem:[%s11 + $0x98] sm:$0xff]
  %v697 = vld [vmem:[%s11 + $0xa0] sm:$0xff]
  %v698 = vld [vmem:[%s11 + $0xa8] sm:$0xff]
  %v699 = vld [vmem:[%s11 + $0xb0] sm:$0xff]
  %v700 = vld [vmem:[%s11 + $0xb8] sm:$0xff]
  %v701 = vld [vmem:[%s11 + $0xc0] sm:$0xff]
  %v702 = vld [vmem:[%s11 + $0xc8] sm:$0xff]
  %v703 = vld [vmem:[%s11 + $0xd0] sm:$0xff]
  %v704 = vld [vmem:[%s11 + $0xd8] sm:$0xff]
  %v705 = vld [vmem:[%s11 + $0xe0] sm:$0xff]
  %v706 = vld [vmem:[%s11 + $0xe8] sm:$0xff]
  %v707 = vld [vmem:[%s11 + $0xf0] sm:$0xff]
  %v708 = vld [vmem:[%s11 + $0xf8] sm:$0xff]
  %v709 = vld [vmem:[%s11 + $0x100] sm:$0xff]
  %v710 = vld [vmem:[%s11 + $0x108] sm:$0xff]
  %v711 = vld [vmem:[%s11 + $0x110] sm:$0xff]
  %v712 = vld [vmem:[%s11 + $0x118] sm:$0xff]
  %v713 = vld [vmem:[%s11 + $0x120] sm:$0xff]
  %v714 = vld [vmem:[%s11 + $0x128] sm:$0xff]
  %v715 = vld [vmem:[%s11 + $0x130] sm:$0xff]
  %v716 = vld [vmem:[%s11 + $0x138] sm:$0xff]
  %v717 = vld [vmem:[%s11 + $0x140] sm:$0xff]
  %v718 = vld [vmem:[%s11 + $0x148] sm:$0xff]
  %v719 = vld [vmem:[%s11 + $0x150] sm:$0xff]
  %v720 = vld [vmem:[%s11 + $0x158] sm:$0xff]
  %v721 = vld [vmem:[%s11 + $0x160] sm:$0xff]
  %v722 = vld [vmem:[%s11 + $0x168] sm:$0xff]
  %v723 = vld [vmem:[%s11 + $0x170] sm:$0xff]
  %v724 = vld [vmem:[%s11 + $0x178] sm:$0xff]
  %v725 = vld [vmem:[%s13] sm:$0x7]
  %v727 = vlaneseq
  %v728 = vshrl.u32 %v727, 7
  %v729 = vsub.s32 0, %v728
  %v730 = vrot.slane %v725, %v729
  %v731 = vlaneseq
  %v732 = vshrl.u32 %v731, 7
  %v733 = vsub.s32 1, %v732
  %v734 = vrot.slane %v725, %v733
  %v735 = vlaneseq
  %v736 = vshrl.u32 %v735, 7
  %v737 = vsub.s32 2, %v736
  %v738 = vrot.slane %v725, %v737
  %742 = vmatprep.subr.mxu0 %v678
  %743 = vmatpush1.msra.mxu0 %v677
  %744 = vmatprep.subr.mxu0 %v681
  %745 = vmatpush1.msra.mxu0 %v680
  %746 = vmatprep.subr.mxu0 %v684
  %747 = vmatpush1.msra.mxu0 %v683
  %748 = vmatprep.subr.mxu0 %v687
  %749 = vmatpush1.msra.mxu0 %v686
  %750 = vmatprep.subr.mxu0 %v690
  %751 = vmatpush1.msra.mxu0 %v689
  %752 = vmatprep.subr.mxu0 %v693
  %753 = vmatpush1.msra.mxu0 %v692
  %754 = vmatprep.subr.mxu0 %v696
  %755 = vmatpush1.msra.mxu0 %v695
  %756 = vmatprep.subr.mxu0 %v699
  %757 = vmatpush1.msra.mxu0 %v698
  %758 = vmatprep.subr.mxu0 %v702
  %759 = vmatpush1.msra.mxu0 %v701
  %760 = vmatprep.subr.mxu0 %v705
  %761 = vmatpush1.msra.mxu0 %v704
  %762 = vmatprep.subr.mxu0 %v708
  %763 = vmatpush1.msra.mxu0 %v707
  %764 = vmatprep.subr.mxu0 %v711
  %765 = vmatpush1.msra.mxu0 %v710
  %766 = vmatprep.subr.mxu0 %v714
  %767 = vmatpush1.msra.mxu0 %v713
  %768 = vmatprep.subr.mxu0 %v717
  %769 = vmatpush1.msra.mxu0 %v716
  %770 = vmatprep.subr.mxu0 %v720
  %771 = vmatpush1.msra.mxu0 %v719
  %772 = vmatprep.subr.mxu0 %v723
  %773 = vmatpush1.msra.mxu0 %v722
  %774 = vmatprep.subr.mxu0 0.0
  %775 = vmatpush1.msra.mxu0 0.0
  %776 = vmatprep.subr.mxu0 0.0
  %777 = vmatpush1.msra.mxu0 0.0
  %778 = vmatprep.subr.mxu0 0.0
  %779 = vmatpush1.msra.mxu0 0.0
  %780 = vmatprep.subr.mxu0 0.0
  %781 = vmatpush1.msra.mxu0 0.0
  %782 = vmatprep.subr.mxu0 0.0
  %783 = vmatpush1.msra.mxu0 0.0
  %784 = vmatprep.subr.mxu0 0.0
  %785 = vmatpush1.msra.mxu0 0.0
  %786 = vmatprep.subr.mxu0 0.0
  %787 = vmatpush1.msra.mxu0 0.0
  %788 = vmatprep.subr.mxu0 0.0
  %789 = vmatpush1.msra.mxu0 0.0
  %790 = vmatprep.subr.mxu0 0.0
  %791 = vmatpush1.msra.mxu0 0.0
  %792 = vmatprep.subr.mxu0 0.0
  %793 = vmatpush1.msra.mxu0 0.0
  %794 = vmatprep.subr.mxu0 0.0
  %795 = vmatpush1.msra.mxu0 0.0
  %796 = vmatprep.subr.mxu0 0.0
  %797 = vmatpush1.msra.mxu0 0.0
  %798 = vmatprep.subr.mxu0 0.0
  %799 = vmatpush1.msra.mxu0 0.0
  %800 = vmatprep.subr.mxu0 0.0
  %801 = vmatpush1.msra.mxu0 0.0
  %802 = vmatprep.subr.mxu0 0.0
  %803 = vmatpush1.msra.mxu0 0.0
  %804 = vmatprep.subr.mxu0 0.0
  %805 = vmatpush1.msra.mxu0 0.0
  %806 = vmatprep.mubr.f32.mxu0 0.0
  %807 = vmatmul.mubr.f32.gmra.mrb[0].mxu0 %v676
  %v808 = vpop.f32.mrb[0].mxu0
  %v809 = vadd.f32 %v730, %v808
  %v810 = vpop.f32.mrb[0].mxu0
  %v811 = vadd.f32 %v734, %v810
  %812 = vdwg.mxu0
  %813 = vmatprep.subr.mxu0 0.0
  %814 = vmatpush1.msra.mxu0 %v679
  %815 = vmatprep.subr.mxu0 0.0
  %816 = vmatpush1.msra.mxu0 %v682
  %817 = vmatprep.subr.mxu0 0.0
  %818 = vmatpush1.msra.mxu0 %v685
  %819 = vmatprep.subr.mxu0 0.0
  %820 = vmatpush1.msra.mxu0 %v688
  %821 = vmatprep.subr.mxu0 0.0
  %822 = vmatpush1.msra.mxu0 %v691
  %823 = vmatprep.subr.mxu0 0.0
  %824 = vmatpush1.msra.mxu0 %v694
  %825 = vmatprep.subr.mxu0 0.0
  %826 = vmatpush1.msra.mxu0 %v697
  %827 = vmatprep.subr.mxu0 0.0
  %828 = vmatpush1.msra.mxu0 %v700
  %829 = vmatprep.subr.mxu0 0.0
  %830 = vmatpush1.msra.mxu0 %v703
  %831 = vmatprep.subr.mxu0 0.0
  %832 = vmatpush1.msra.mxu0 %v706
  %833 = vmatprep.subr.mxu0 0.0
  %834 = vmatpush1.msra.mxu0 %v709
  %835 = vmatprep.subr.mxu0 0.0
  %836 = vmatpush1.msra.mxu0 %v712
  %837 = vmatprep.subr.mxu0 0.0
  %838 = vmatpush1.msra.mxu0 %v715
  %839 = vmatprep.subr.mxu0 0.0
  %840 = vmatpush1.msra.mxu0 %v718
  %841 = vmatprep.subr.mxu0 0.0
  %842 = vmatpush1.msra.mxu0 %v721
  %843 = vmatprep.subr.mxu0 0.0
  %844 = vmatpush1.msra.mxu0 %v724
  %845 = vmatprep.subr.mxu0 0.0
  %846 = vmatpush1.msra.mxu0 0.0
  %847 = vmatprep.subr.mxu0 0.0
  %848 = vmatpush1.msra.mxu0 0.0
  %849 = vmatprep.subr.mxu0 0.0
  %850 = vmatpush1.msra.mxu0 0.0
  %851 = vmatprep.subr.mxu0 0.0
  %852 = vmatpush1.msra.mxu0 0.0
  %853 = vmatprep.subr.mxu0 0.0
  %854 = vmatpush1.msra.mxu0 0.0
  %855 = vmatprep.subr.mxu0 0.0
  %856 = vmatpush1.msra.mxu0 0.0
  %857 = vmatprep.subr.mxu0 0.0
  %858 = vmatpush1.msra.mxu0 0.0
  %859 = vmatprep.subr.mxu0 0.0
  %860 = vmatpush1.msra.mxu0 0.0
  %861 = vmatprep.subr.mxu0 0.0
  %862 = vmatpush1.msra.mxu0 0.0
  %863 = vmatprep.subr.mxu0 0.0
  %864 = vmatpush1.msra.mxu0 0.0
  %865 = vmatprep.subr.mxu0 0.0
  %866 = vmatpush1.msra.mxu0 0.0
  %867 = vmatprep.subr.mxu0 0.0
  %868 = vmatpush1.msra.mxu0 0.0
  %869 = vmatprep.subr.mxu0 0.0
  %870 = vmatpush1.msra.mxu0 0.0
  %871 = vmatprep.subr.mxu0 0.0
  %872 = vmatpush1.msra.mxu0 0.0
  %873 = vmatprep.subr.mxu0 0.0
  %874 = vmatpush1.msra.mxu0 0.0
  %875 = vmatprep.subr.mxu0 0.0
  %876 = vmatpush1.msra.mxu0 0.0
  %877 = vmatprep.mubr.f32.mxu0 0.0
  %878 = vmatmul.mubr.f32.gmra.mrb[0].mxu0 %v676
  %v879 = vpop.f32.mrb[0].mxu0
  %v880 = vadd.f32 %v738, %v879
  %v881 = vpop.f32.mrb[0].mxu0
  %882 = vdwg.mxu0
  %v883 = vadd.f32 %v569, %v809
  %v884 = vxor.u32 %v883, 2147483648
  %v885 = vmul.f32 %v884, 1.442695
  %v886 = vpow.pop %v885
  %v887 = vadd.f32 %v886, 1.0
  %v888 = vrcp.pop %v887
  %v889 = vmul.f32 1.0, %v888
  %v890 = vadd.f32 %v571, %v811
  %v891 = vxor.u32 %v890, 2147483648
  %v892 = vmul.f32 %v891, 1.442695
  %v893 = vpow.pop %v892
  %v894 = vadd.f32 %v893, 1.0
  %v895 = vrcp.pop %v894
  %v896 = vmul.f32 1.0, %v895
  %v897 = vmul.f32 %v889, %v880
  %v898 = vadd.f32 %v658, %v897
  %v899 = vtanh.pop %v898
  %v900 = vsub.f32 1.0, %v896
  %v901 = vmul.f32 %v900, %v899
  %v902 = vmul.f32 %v896, %v676
  %v903 = vadd.f32 %v901, %v902
  %904 = vmatprep.subr.mxu0 %v678
  %905 = vmatpush1.msra.mxu0 %v677
  %906 = vmatprep.subr.mxu0 %v681
  %907 = vmatpush1.msra.mxu0 %v680
  %908 = vmatprep.subr.mxu0 %v684
  %909 = vmatpush1.msra.mxu0 %v683
  %910 = vmatprep.subr.mxu0 %v687
  %911 = vmatpush1.msra.mxu0 %v686
  %912 = vmatprep.subr.mxu0 %v690
  %913 = vmatpush1.msra.mxu0 %v689
  %914 = vmatprep.subr.mxu0 %v693
  %915 = vmatpush1.msra.mxu0 %v692
  %916 = vmatprep.subr.mxu0 %v696
  %917 = vmatpush1.msra.mxu0 %v695
  %918 = vmatprep.subr.mxu0 %v699
  %919 = vmatpush1.msra.mxu0 %v698
  %920 = vmatprep.subr.mxu0 %v702
  %921 = vmatpush1.msra.mxu0 %v701
  %922 = vmatprep.subr.mxu0 %v705
  %923 = vmatpush1.msra.mxu0 %v704
  %924 = vmatprep.subr.mxu0 %v708
  %925 = vmatpush1.msra.mxu0 %v707
  %926 = vmatprep.subr.mxu0 %v711
  %927 = vmatpush1.msra.mxu0 %v710
  %928 = vmatprep.subr.mxu0 %v714
  %929 = vmatpush1.msra.mxu0 %v713
  %930 = vmatprep.subr.mxu0 %v717
  %931 = vmatpush1.msra.mxu0 %v716
  %932 = vmatprep.subr.mxu0 %v720
  %933 = vmatpush1.msra.mxu0 %v719
  %934 = vmatprep.subr.mxu0 %v723
  %935 = vmatpush1.msra.mxu0 %v722
  %936 = vmatprep.subr.mxu0 0.0
  %937 = vmatpush1.msra.mxu0 0.0
  %938 = vmatprep.subr.mxu0 0.0
  %939 = vmatpush1.msra.mxu0 0.0
  %940 = vmatprep.subr.mxu0 0.0
  %941 = vmatpush1.msra.mxu0 0.0
  %942 = vmatprep.subr.mxu0 0.0
  %943 = vmatpush1.msra.mxu0 0.0
  %944 = vmatprep.subr.mxu0 0.0
  %945 = vmatpush1.msra.mxu0 0.0
  %946 = vmatprep.subr.mxu0 0.0
  %947 = vmatpush1.msra.mxu0 0.0
  %948 = vmatprep.subr.mxu0 0.0
  %949 = vmatpush1.msra.mxu0 0.0
  %950 = vmatprep.subr.mxu0 0.0
  %951 = vmatpush1.msra.mxu0 0.0
  %952 = vmatprep.subr.mxu0 0.0
  %953 = vmatpush1.msra.mxu0 0.0
  %954 = vmatprep.subr.mxu0 0.0
  %955 = vmatpush1.msra.mxu0 0.0
  %956 = vmatprep.subr.mxu0 0.0
  %957 = vmatpush1.msra.mxu0 0.0
  %958 = vmatprep.subr.mxu0 0.0
  %959 = vmatpush1.msra.mxu0 0.0
  %960 = vmatprep.subr.mxu0 0.0
  %961 = vmatpush1.msra.mxu0 0.0
  %962 = vmatprep.subr.mxu0 0.0
  %963 = vmatpush1.msra.mxu0 0.0
  %964 = vmatprep.subr.mxu0 0.0
  %965 = vmatpush1.msra.mxu0 0.0
  %966 = vmatprep.subr.mxu0 0.0
  %967 = vmatpush1.msra.mxu0 0.0
  %968 = vmatprep.mubr.f32.mxu0 0.0
  %969 = vmatmul.mubr.f32.gmra.mrb[0].mxu0 %v903
  %v970 = vpop.f32.mrb[0].mxu0
  %v971 = vadd.f32 %v730, %v970
  %v972 = vpop.f32.mrb[0].mxu0
  %v973 = vadd.f32 %v734, %v972
  %974 = vdwg.mxu0
  %975 = vmatprep.subr.mxu0 0.0
  %976 = vmatpush1.msra.mxu0 %v679
  %977 = vmatprep.subr.mxu0 0.0
  %978 = vmatpush1.msra.mxu0 %v682
  %979 = vmatprep.subr.mxu0 0.0
  %980 = vmatpush1.msra.mxu0 %v685
  %981 = vmatprep.subr.mxu0 0.0
  %982 = vmatpush1.msra.mxu0 %v688
  %983 = vmatprep.subr.mxu0 0.0
  %984 = vmatpush1.msra.mxu0 %v691
  %985 = vmatprep.subr.mxu0 0.0
  %986 = vmatpush1.msra.mxu0 %v694
  %987 = vmatprep.subr.mxu0 0.0
  %988 = vmatpush1.msra.mxu0 %v697
  %989 = vmatprep.subr.mxu0 0.0
  %990 = vmatpush1.msra.mxu0 %v700
  %991 = vmatprep.subr.mxu0 0.0
  %992 = vmatpush1.msra.mxu0 %v703
  %993 = vmatprep.subr.mxu0 0.0
  %994 = vmatpush1.msra.mxu0 %v706
  %995 = vmatprep.subr.mxu0 0.0
  %996 = vmatpush1.msra.mxu0 %v709
  %997 = vmatprep.subr.mxu0 0.0
  %998 = vmatpush1.msra.mxu0 %v712
  %999 = vmatprep.subr.mxu0 0.0
  %1000 = vmatpush1.msra.mxu0 %v715
  %1001 = vmatprep.subr.mxu0 0.0
  %1002 = vmatpush1.msra.mxu0 %v718
  %1003 = vmatprep.subr.mxu0 0.0
  %1004 = vmatpush1.msra.mxu0 %v721
  %1005 = vmatprep.subr.mxu0 0.0
  %1006 = vmatpush1.msra.mxu0 %v724
  %1007 = vmatprep.subr.mxu0 0.0
  %1008 = vmatpush1.msra.mxu0 0.0
  %1009 = vmatprep.subr.mxu0 0.0
  %1010 = vmatpush1.msra.mxu0 0.0
  %1011 = vmatprep.subr.mxu0 0.0
  %1012 = vmatpush1.msra.mxu0 0.0
  %1013 = vmatprep.subr.mxu0 0.0
  %1014 = vmatpush1.msra.mxu0 0.0
  %1015 = vmatprep.subr.mxu0 0.0
  %1016 = vmatpush1.msra.mxu0 0.0
  %1017 = vmatprep.subr.mxu0 0.0
  %1018 = vmatpush1.msra.mxu0 0.0
  %1019 = vmatprep.subr.mxu0 0.0
  %1020 = vmatpush1.msra.mxu0 0.0
  %1021 = vmatprep.subr.mxu0 0.0
  %1022 = vmatpush1.msra.mxu0 0.0
  %1023 = vmatprep.subr.mxu0 0.0
  %1024 = vmatpush1.msra.mxu0 0.0
  %1025 = vmatprep.subr.mxu0 0.0
  %1026 = vmatpush1.msra.mxu0 0.0
  %1027 = vmatprep.subr.mxu0 0.0
  %1028 = vmatpush1.msra.mxu0 0.0
  %1029 = vmatprep.subr.mxu0 0.0
  %1030 = vmatpush1.msra.mxu0 0.0
  %1031 = vmatprep.subr.mxu0 0.0
  %1032 = vmatpush1.msra.mxu0 0.0
  %1033 = vmatprep.subr.mxu0 0.0
  %1034 = vmatpush1.msra.mxu0 0.0
  %1035 = vmatprep.subr.mxu0 0.0
  %1036 = vmatpush1.msra.mxu0 0.0
  %1037 = vmatprep.subr.mxu0 0.0
  %1038 = vmatpush1.msra.mxu0 0.0
  %1039 = vmatprep.mubr.f32.mxu0 0.0
  %1040 = vmatmul.mubr.f32.gmra.mrb[0].mxu0 %v903
  %v1041 = vpop.f32.mrb[0].mxu0
  %v1042 = vadd.f32 %v738, %v1041
  %v1043 = vpop.f32.mrb[0].mxu0
  %1044 = vdwg.mxu0
  %v1045 = vadd.f32 %v575, %v971
  %v1046 = vxor.u32 %v1045, 2147483648
  %v1047 = vmul.f32 %v1046, 1.442695
  %v1048 = vpow.pop %v1047
  %v1049 = vadd.f32 %v1048, 1.0
  %v1050 = vrcp.pop %v1049
  %v1051 = vmul.f32 1.0, %v1050
  %v1052 = vadd.f32 %v577, %v973
  %v1053 = vxor.u32 %v1052, 2147483648
  %v1054 = vmul.f32 %v1053, 1.442695
  %v1055 = vpow.pop %v1054
  %v1056 = vadd.f32 %v1055, 1.0
  %v1057 = vrcp.pop %v1056
  %v1058 = vmul.f32 1.0, %v1057
  %v1059 = vmul.f32 %v1051, %v1042
  %v1060 = vadd.f32 %v663, %v1059
  %v1061 = vtanh.pop %v1060
  %v1062 = vsub.f32 1.0, %v1058
  %v1063 = vmul.f32 %v1062, %v1061
  %v1064 = vmul.f32 %v1058, %v903
  %v1065 = vadd.f32 %v1063, %v1064
  %1066 = vmatprep.subr.mxu0 %v678
  %1067 = vmatpush1.msra.mxu0 %v677
  %1068 = vmatprep.subr.mxu0 %v681
  %1069 = vmatpush1.msra.mxu0 %v680
  %1070 = vmatprep.subr.mxu0 %v684
  %1071 = vmatpush1.msra.mxu0 %v683
  %1072 = vmatprep.subr.mxu0 %v687
  %1073 = vmatpush1.msra.mxu0 %v686
  %1074 = vmatprep.subr.mxu0 %v690
  %1075 = vmatpush1.msra.mxu0 %v689
  %1076 = vmatprep.subr.mxu0 %v693
  %1077 = vmatpush1.msra.mxu0 %v692
  %1078 = vmatprep.subr.mxu0 %v696
  %1079 = vmatpush1.msra.mxu0 %v695
  %1080 = vmatprep.subr.mxu0 %v699
  %1081 = vmatpush1.msra.mxu0 %v698
  %1082 = vmatprep.subr.mxu0 %v702
  %1083 = vmatpush1.msra.mxu0 %v701
  %1084 = vmatprep.subr.mxu0 %v705
  %1085 = vmatpush1.msra.mxu0 %v704
  %1086 = vmatprep.subr.mxu0 %v708
  %1087 = vmatpush1.msra.mxu0 %v707
  %1088 = vmatprep.subr.mxu0 %v711
  %1089 = vmatpush1.msra.mxu0 %v710
  %1090 = vmatprep.subr.mxu0 %v714
  %1091 = vmatpush1.msra.mxu0 %v713
  %1092 = vmatprep.subr.mxu0 %v717
  %1093 = vmatpush1.msra.mxu0 %v716
  %1094 = vmatprep.subr.mxu0 %v720
  %1095 = vmatpush1.msra.mxu0 %v719
  %1096 = vmatprep.subr.mxu0 %v723
  %1097 = vmatpush1.msra.mxu0 %v722
  %1098 = vmatprep.subr.mxu0 0.0
  %1099 = vmatpush1.msra.mxu0 0.0
  %1100 = vmatprep.subr.mxu0 0.0
  %1101 = vmatpush1.msra.mxu0 0.0
  %1102 = vmatprep.subr.mxu0 0.0
  %1103 = vmatpush1.msra.mxu0 0.0
  %1104 = vmatprep.subr.mxu0 0.0
  %1105 = vmatpush1.msra.mxu0 0.0
  %1106 = vmatprep.subr.mxu0 0.0
  %1107 = vmatpush1.msra.mxu0 0.0
  %1108 = vmatprep.subr.mxu0 0.0
  %1109 = vmatpush1.msra.mxu0 0.0
  %1110 = vmatprep.subr.mxu0 0.0
  %1111 = vmatpush1.msra.mxu0 0.0
  %1112 = vmatprep.subr.mxu0 0.0
  %1113 = vmatpush1.msra.mxu0 0.0
  %1114 = vmatprep.subr.mxu0 0.0
  %1115 = vmatpush1.msra.mxu0 0.0
  %1116 = vmatprep.subr.mxu0 0.0
  %1117 = vmatpush1.msra.mxu0 0.0
  %1118 = vmatprep.subr.mxu0 0.0
  %1119 = vmatpush1.msra.mxu0 0.0
  %1120 = vmatprep.subr.mxu0 0.0
  %1121 = vmatpush1.msra.mxu0 0.0
  %1122 = vmatprep.subr.mxu0 0.0
  %1123 = vmatpush1.msra.mxu0 0.0
  %1124 = vmatprep.subr.mxu0 0.0
  %1125 = vmatpush1.msra.mxu0 0.0
  %1126 = vmatprep.subr.mxu0 0.0
  %1127 = vmatpush1.msra.mxu0 0.0
  %1128 = vmatprep.subr.mxu0 0.0
  %1129 = vmatpush1.msra.mxu0 0.0
  %1130 = vmatprep.mubr.f32.mxu0 0.0
  %1131 = vmatmul.mubr.f32.gmra.mrb[0].mxu0 %v1065
  %v1132 = vpop.f32.mrb[0].mxu0
  %v1133 = vadd.f32 %v730, %v1132
  %v1134 = vpop.f32.mrb[0].mxu0
  %v1135 = vadd.f32 %v734, %v1134
  %1136 = vdwg.mxu0
  %1137 = vmatprep.subr.mxu0 0.0
  %1138 = vmatpush1.msra.mxu0 %v679
  %1139 = vmatprep.subr.mxu0 0.0
  %1140 = vmatpush1.msra.mxu0 %v682
  %1141 = vmatprep.subr.mxu0 0.0
  %1142 = vmatpush1.msra.mxu0 %v685
  %1143 = vmatprep.subr.mxu0 0.0
  %1144 = vmatpush1.msra.mxu0 %v688
  %1145 = vmatprep.subr.mxu0 0.0
  %1146 = vmatpush1.msra.mxu0 %v691
  %1147 = vmatprep.subr.mxu0 0.0
  %1148 = vmatpush1.msra.mxu0 %v694
  %1149 = vmatprep.subr.mxu0 0.0
  %1150 = vmatpush1.msra.mxu0 %v697
  %1151 = vmatprep.subr.mxu0 0.0
  %1152 = vmatpush1.msra.mxu0 %v700
  %1153 = vmatprep.subr.mxu0 0.0
  %1154 = vmatpush1.msra.mxu0 %v703
  %1155 = vmatprep.subr.mxu0 0.0
  %1156 = vmatpush1.msra.mxu0 %v706
  %1157 = vmatprep.subr.mxu0 0.0
  %1158 = vmatpush1.msra.mxu0 %v709
  %1159 = vmatprep.subr.mxu0 0.0
  %1160 = vmatpush1.msra.mxu0 %v712
  %1161 = vmatprep.subr.mxu0 0.0
  %1162 = vmatpush1.msra.mxu0 %v715
  %1163 = vmatprep.subr.mxu0 0.0
  %1164 = vmatpush1.msra.mxu0 %v718
  %1165 = vmatprep.subr.mxu0 0.0
  %1166 = vmatpush1.msra.mxu0 %v721
  %1167 = vmatprep.subr.mxu0 0.0
  %1168 = vmatpush1.msra.mxu0 %v724
  %1169 = vmatprep.subr.mxu0 0.0
  %1170 = vmatpush1.msra.mxu0 0.0
  %1171 = vmatprep.subr.mxu0 0.0
  %1172 = vmatpush1.msra.mxu0 0.0
  %1173 = vmatprep.subr.mxu0 0.0
  %1174 = vmatpush1.msra.mxu0 0.0
  %1175 = vmatprep.subr.mxu0 0.0
  %1176 = vmatpush1.msra.mxu0 0.0
  %1177 = vmatprep.subr.mxu0 0.0
  %1178 = vmatpush1.msra.mxu0 0.0
  %1179 = vmatprep.subr.mxu0 0.0
  %1180 = vmatpush1.msra.mxu0 0.0
  %1181 = vmatprep.subr.mxu0 0.0
  %1182 = vmatpush1.msra.mxu0 0.0
  %1183 = vmatprep.subr.mxu0 0.0
  %1184 = vmatpush1.msra.mxu0 0.0
  %1185 = vmatprep.subr.mxu0 0.0
  %1186 = vmatpush1.msra.mxu0 0.0
  %1187 = vmatprep.subr.mxu0 0.0
  %1188 = vmatpush1.msra.mxu0 0.0
  %1189 = vmatprep.subr.mxu0 0.0
  %1190 = vmatpush1.msra.mxu0 0.0
  %1191 = vmatprep.subr.mxu0 0.0
  %1192 = vmatpush1.msra.mxu0 0.0
  %1193 = vmatprep.subr.mxu0 0.0
  %1194 = vmatpush1.msra.mxu0 0.0
  %1195 = vmatprep.subr.mxu0 0.0
  %1196 = vmatpush1.msra.mxu0 0.0
  %1197 = vmatprep.subr.mxu0 0.0
  %1198 = vmatpush1.msra.mxu0 0.0
  %1199 = vmatprep.subr.mxu0 0.0
  %1200 = vmatpush1.msra.mxu0 0.0
  %1201 = vmatprep.mubr.f32.mxu0 0.0
  %1202 = vmatmul.mubr.f32.gmra.mrb[0].mxu0 %v1065
  %v1203 = vpop.f32.mrb[0].mxu0
  %v1204 = vadd.f32 %v738, %v1203
  %v1205 = vpop.f32.mrb[0].mxu0
  %1206 = vdwg.mxu0
  %v1207 = vadd.f32 %v581, %v1133
  %v1208 = vxor.u32 %v1207, 2147483648
  %v1209 = vmul.f32 %v1208, 1.442695
  %v1210 = vpow.pop %v1209
  %v1211 = vadd.f32 %v1210, 1.0
  %v1212 = vrcp.pop %v1211
  %v1213 = vmul.f32 1.0, %v1212
  %v1214 = vadd.f32 %v583, %v1135
  %v1215 = vxor.u32 %v1214, 2147483648
  %v1216 = vmul.f32 %v1215, 1.442695
  %v1217 = vpow.pop %v1216
  %v1218 = vadd.f32 %v1217, 1.0
  %v1219 = vrcp.pop %v1218
  %v1220 = vmul.f32 1.0, %v1219
  %v1221 = vmul.f32 %v1213, %v1204
  %v1222 = vadd.f32 %v668, %v1221
  %v1223 = vtanh.pop %v1222
  %v1224 = vsub.f32 1.0, %v1220
  %v1225 = vmul.f32 %v1224, %v1223
  %v1226 = vmul.f32 %v1220, %v1065
  %v1227 = vadd.f32 %v1225, %v1226
  %1228 = vmatprep.subr.mxu0 %v678
  %1229 = vmatpush1.msra.mxu0 %v677
  %1230 = vmatprep.subr.mxu0 %v681
  %1231 = vmatpush1.msra.mxu0 %v680
  %1232 = vmatprep.subr.mxu0 %v684
  %1233 = vmatpush1.msra.mxu0 %v683
  %1234 = vmatprep.subr.mxu0 %v687
  %1235 = vmatpush1.msra.mxu0 %v686
  %1236 = vmatprep.subr.mxu0 %v690
  %1237 = vmatpush1.msra.mxu0 %v689
  %1238 = vmatprep.subr.mxu0 %v693
  %1239 = vmatpush1.msra.mxu0 %v692
  %1240 = vmatprep.subr.mxu0 %v696
  %1241 = vmatpush1.msra.mxu0 %v695
  %1242 = vmatprep.subr.mxu0 %v699
  %1243 = vmatpush1.msra.mxu0 %v698
  %1244 = vmatprep.subr.mxu0 %v702
  %1245 = vmatpush1.msra.mxu0 %v701
  %1246 = vmatprep.subr.mxu0 %v705
  %1247 = vmatpush1.msra.mxu0 %v704
  %1248 = vmatprep.subr.mxu0 %v708
  %1249 = vmatpush1.msra.mxu0 %v707
  %1250 = vmatprep.subr.mxu0 %v711
  %1251 = vmatpush1.msra.mxu0 %v710
  %1252 = vmatprep.subr.mxu0 %v714
  %1253 = vmatpush1.msra.mxu0 %v713
  %1254 = vmatprep.subr.mxu0 %v717
  %1255 = vmatpush1.msra.mxu0 %v716
  %1256 = vmatprep.subr.mxu0 %v720
  %1257 = vmatpush1.msra.mxu0 %v719
  %1258 = vmatprep.subr.mxu0 %v723
  %1259 = vmatpush1.msra.mxu0 %v722
  %1260 = vmatprep.subr.mxu0 0.0
  %1261 = vmatpush1.msra.mxu0 0.0
  %1262 = vmatprep.subr.mxu0 0.0
  %1263 = vmatpush1.msra.mxu0 0.0
  %1264 = vmatprep.subr.mxu0 0.0
  %1265 = vmatpush1.msra.mxu0 0.0
  %1266 = vmatprep.subr.mxu0 0.0
  %1267 = vmatpush1.msra.mxu0 0.0
  %1268 = vmatprep.subr.mxu0 0.0
  %1269 = vmatpush1.msra.mxu0 0.0
  %1270 = vmatprep.subr.mxu0 0.0
  %1271 = vmatpush1.msra.mxu0 0.0
  %1272 = vmatprep.subr.mxu0 0.0
  %1273 = vmatpush1.msra.mxu0 0.0
  %1274 = vmatprep.subr.mxu0 0.0
  %1275 = vmatpush1.msra.mxu0 0.0
  %1276 = vmatprep.subr.mxu0 0.0
  %1277 = vmatpush1.msra.mxu0 0.0
  %1278 = vmatprep.subr.mxu0 0.0
  %1279 = vmatpush1.msra.mxu0 0.0
  %1280 = vmatprep.subr.mxu0 0.0
  %1281 = vmatpush1.msra.mxu0 0.0
  %1282 = vmatprep.subr.mxu0 0.0
  %1283 = vmatpush1.msra.mxu0 0.0
  %1284 = vmatprep.subr.mxu0 0.0
  %1285 = vmatpush1.msra.mxu0 0.0
  %1286 = vmatprep.subr.mxu0 0.0
  %1287 = vmatpush1.msra.mxu0 0.0
  %1288 = vmatprep.subr.mxu0 0.0
  %1289 = vmatpush1.msra.mxu0 0.0
  %1290 = vmatprep.subr.mxu0 0.0
  %1291 = vmatpush1.msra.mxu0 0.0
  %1292 = vmatprep.mubr.f32.mxu0 0.0
  %1293 = vmatmul.mubr.f32.gmra.mrb[0].mxu0 %v1227
  %v1294 = vpop.f32.mrb[0].mxu0
  %v1295 = vadd.f32 %v730, %v1294
  %v1296 = vpop.f32.mrb[0].mxu0
  %v1297 = vadd.f32 %v734, %v1296
  %1298 = vdwg.mxu0
  %1299 = vmatprep.subr.mxu0 0.0
  %1300 = vmatpush1.msra.mxu0 %v679
  %1301 = vmatprep.subr.mxu0 0.0
  %1302 = vmatpush1.msra.mxu0 %v682
  %1303 = vmatprep.subr.mxu0 0.0
  %1304 = vmatpush1.msra.mxu0 %v685
  %1305 = vmatprep.subr.mxu0 0.0
  %1306 = vmatpush1.msra.mxu0 %v688
  %1307 = vmatprep.subr.mxu0 0.0
  %1308 = vmatpush1.msra.mxu0 %v691
  %1309 = vmatprep.subr.mxu0 0.0
  %1310 = vmatpush1.msra.mxu0 %v694
  %1311 = vmatprep.subr.mxu0 0.0
  %1312 = vmatpush1.msra.mxu0 %v697
  %1313 = vmatprep.subr.mxu0 0.0
  %1314 = vmatpush1.msra.mxu0 %v700
  %1315 = vmatprep.subr.mxu0 0.0
  %1316 = vmatpush1.msra.mxu0 %v703
  %1317 = vmatprep.subr.mxu0 0.0
  %1318 = vmatpush1.msra.mxu0 %v706
  %1319 = vmatprep.subr.mxu0 0.0
  %1320 = vmatpush1.msra.mxu0 %v709
  %1321 = vmatprep.subr.mxu0 0.0
  %1322 = vmatpush1.msra.mxu0 %v712
  %1323 = vmatprep.subr.mxu0 0.0
  %1324 = vmatpush1.msra.mxu0 %v715
  %1325 = vmatprep.subr.mxu0 0.0
  %1326 = vmatpush1.msra.mxu0 %v718
  %1327 = vmatprep.subr.mxu0 0.0
  %1328 = vmatpush1.msra.mxu0 %v721
  %1329 = vmatprep.subr.mxu0 0.0
  %1330 = vmatpush1.msra.mxu0 %v724
  %1331 = vmatprep.subr.mxu0 0.0
  %1332 = vmatpush1.msra.mxu0 0.0
  %1333 = vmatprep.subr.mxu0 0.0
  %1334 = vmatpush1.msra.mxu0 0.0
  %1335 = vmatprep.subr.mxu0 0.0
  %1336 = vmatpush1.msra.mxu0 0.0
  %1337 = vmatprep.subr.mxu0 0.0
  %1338 = vmatpush1.msra.mxu0 0.0
  %1339 = vmatprep.subr.mxu0 0.0
  %1340 = vmatpush1.msra.mxu0 0.0
  %1341 = vmatprep.subr.mxu0 0.0
  %1342 = vmatpush1.msra.mxu0 0.0
  %1343 = vmatprep.subr.mxu0 0.0
  %1344 = vmatpush1.msra.mxu0 0.0
  %1345 = vmatprep.subr.mxu0 0.0
  %1346 = vmatpush1.msra.mxu0 0.0
  %1347 = vmatprep.subr.mxu0 0.0
  %1348 = vmatpush1.msra.mxu0 0.0
  %1349 = vmatprep.subr.mxu0 0.0
  %1350 = vmatpush1.msra.mxu0 0.0
  %1351 = vmatprep.subr.mxu0 0.0
  %1352 = vmatpush1.msra.mxu0 0.0
  %1353 = vmatprep.subr.mxu0 0.0
  %1354 = vmatpush1.msra.mxu0 0.0
  %1355 = vmatprep.subr.mxu0 0.0
  %1356 = vmatpush1.msra.mxu0 0.0
  %1357 = vmatprep.subr.mxu0 0.0
  %1358 = vmatpush1.msra.mxu0 0.0
  %1359 = vmatprep.subr.mxu0 0.0
  %1360 = vmatpush1.msra.mxu0 0.0
  %1361 = vmatprep.subr.mxu0 0.0
  %1362 = vmatpush1.msra.mxu0 0.0
  %1363 = vmatprep.mubr.f32.mxu0 0.0
  %1364 = vmatmul.mubr.f32.gmra.mrb[0].mxu0 %v1227
  %v1365 = vpop.f32.mrb[0].mxu0
  %v1366 = vadd.f32 %v738, %v1365
  %v1367 = vpop.f32.mrb[0].mxu0
  %1368 = vdwg.mxu0
  %v1369 = vadd.f32 %v587, %v1295
  %v1370 = vxor.u32 %v1369, 2147483648
  %v1371 = vmul.f32 %v1370, 1.442695
  %v1372 = vpow.pop %v1371
  %v1373 = vadd.f32 %v1372, 1.0
  %v1374 = vrcp.pop %v1373
  %v1375 = vmul.f32 1.0, %v1374
  %v1376 = vadd.f32 %v589, %v1297
  %v1377 = vxor.u32 %v1376, 2147483648
  %v1378 = vmul.f32 %v1377, 1.442695
  %v1379 = vpow.pop %v1378
  %v1380 = vadd.f32 %v1379, 1.0
  %v1381 = vrcp.pop %v1380
  %v1382 = vmul.f32 1.0, %v1381
  %v1383 = vmul.f32 %v1375, %v1366
  %v1384 = vadd.f32 %v673, %v1383
  %v1385 = vtanh.pop %v1384
  %v1386 = vsub.f32 1.0, %v1382
  %v1387 = vmul.f32 %v1386, %v1385
  %v1388 = vmul.f32 %v1382, %v1227
  %v1389 = vadd.f32 %v1387, %v1388
  %1390 = vst [vmem:[%s19] sm:$0xff] %v1389
  %v1391 = vld [vmem:[%s14] sm:$0xff]
  %v1392 = vld [vmem:[%s14 + $0x8] sm:$0xff]
  %v1393 = vld [vmem:[%s14 + $0x10] sm:$0xff]
  %v1394 = vld [vmem:[%s14 + $0x18] sm:$0xff]
  %v1395 = vld [vmem:[%s14 + $0x20] sm:$0xff]
  %v1396 = vld [vmem:[%s14 + $0x28] sm:$0xff]
  %v1397 = vld [vmem:[%s14 + $0x30] sm:$0xff]
  %v1398 = vld [vmem:[%s14 + $0x38] sm:$0xff]
  %v1399 = vld [vmem:[%s14 + $0x40] sm:$0xff]
  %v1400 = vld [vmem:[%s14 + $0x48] sm:$0xff]
  %v1401 = vld [vmem:[%s14 + $0x50] sm:$0xff]
  %v1402 = vld [vmem:[%s14 + $0x58] sm:$0xff]
  %v1403 = vld [vmem:[%s14 + $0x60] sm:$0xff]
  %v1404 = vld [vmem:[%s14 + $0x68] sm:$0xff]
  %v1405 = vld [vmem:[%s14 + $0x70] sm:$0xff]
  %v1406 = vld [vmem:[%s14 + $0x78] sm:$0xff]
  %v1407 = vld [vmem:[%s15] sm:$0x1]
  %v1409 = vlaneseq
  %v1410 = vshrl.u32 %v1409, 7
  %v1411 = vsub.s32 0, %v1410
  %v1412 = vrot.slane %v1407, %v1411
  %1414 = vmatprep.subr.mxu0 0.0
  %1415 = vmatpush1.msra.mxu0 %v1391
  %1416 = vmatprep.subr.mxu0 0.0
  %1417 = vmatpush1.msra.mxu0 %v1392
  %1418 = vmatprep.subr.mxu0 0.0
  %1419 = vmatpush1.msra.mxu0 %v1393
  %1420 = vmatprep.subr.mxu0 0.0
  %1421 = vmatpush1.msra.mxu0 %v1394
  %1422 = vmatprep.subr.mxu0 0.0
  %1423 = vmatpush1.msra.mxu0 %v1395
  %1424 = vmatprep.subr.mxu0 0.0
  %1425 = vmatpush1.msra.mxu0 %v1396
  %1426 = vmatprep.subr.mxu0 0.0
  %1427 = vmatpush1.msra.mxu0 %v1397
  %1428 = vmatprep.subr.mxu0 0.0
  %1429 = vmatpush1.msra.mxu0 %v1398
  %1430 = vmatprep.subr.mxu0 0.0
  %1431 = vmatpush1.msra.mxu0 %v1399
  %1432 = vmatprep.subr.mxu0 0.0
  %1433 = vmatpush1.msra.mxu0 %v1400
  %1434 = vmatprep.subr.mxu0 0.0
  %1435 = vmatpush1.msra.mxu0 %v1401
  %1436 = vmatprep.subr.mxu0 0.0
  %1437 = vmatpush1.msra.mxu0 %v1402
  %1438 = vmatprep.subr.mxu0 0.0
  %1439 = vmatpush1.msra.mxu0 %v1403
  %1440 = vmatprep.subr.mxu0 0.0
  %1441 = vmatpush1.msra.mxu0 %v1404
  %1442 = vmatprep.subr.mxu0 0.0
  %1443 = vmatpush1.msra.mxu0 %v1405
  %1444 = vmatprep.subr.mxu0 0.0
  %1445 = vmatpush1.msra.mxu0 %v1406
  %1446 = vmatprep.subr.mxu0 0.0
  %1447 = vmatpush1.msra.mxu0 0.0
  %1448 = vmatprep.subr.mxu0 0.0
  %1449 = vmatpush1.msra.mxu0 0.0
  %1450 = vmatprep.subr.mxu0 0.0
  %1451 = vmatpush1.msra.mxu0 0.0
  %1452 = vmatprep.subr.mxu0 0.0
  %1453 = vmatpush1.msra.mxu0 0.0
  %1454 = vmatprep.subr.mxu0 0.0
  %1455 = vmatpush1.msra.mxu0 0.0
  %1456 = vmatprep.subr.mxu0 0.0
  %1457 = vmatpush1.msra.mxu0 0.0
  %1458 = vmatprep.subr.mxu0 0.0
  %1459 = vmatpush1.msra.mxu0 0.0
  %1460 = vmatprep.subr.mxu0 0.0
  %1461 = vmatpush1.msra.mxu0 0.0
  %1462 = vmatprep.subr.mxu0 0.0
  %1463 = vmatpush1.msra.mxu0 0.0
  %1464 = vmatprep.subr.mxu0 0.0
  %1465 = vmatpush1.msra.mxu0 0.0
  %1466 = vmatprep.subr.mxu0 0.0
  %1467 = vmatpush1.msra.mxu0 0.0
  %1468 = vmatprep.subr.mxu0 0.0
  %1469 = vmatpush1.msra.mxu0 0.0
  %1470 = vmatprep.subr.mxu0 0.0
  %1471 = vmatpush1.msra.mxu0 0.0
  %1472 = vmatprep.subr.mxu0 0.0
  %1473 = vmatpush1.msra.mxu0 0.0
  %1474 = vmatprep.subr.mxu0 0.0
  %1475 = vmatpush1.msra.mxu0 0.0
  %1476 = vmatprep.subr.mxu0 0.0
  %1477 = vmatpush1.msra.mxu0 0.0
  %1478 = vmatprep.mubr.f32.mxu0 0.0
  %1479 = vmatmul.mubr.f32.gmra.mrb[0].mxu0 %v433
  %v1480 = vpop.f32.mrb[0].mxu0
  %v1481 = vadd.f32 %v1412, %v1480
  %v1482 = vpop.f32.mrb[0].mxu0
  %1483 = vmatprep.mubr.f32.mxu0 0.0
  %1484 = vmatmul.mubr.f32.gmra.mrb[0].mxu0 %v434
  %v1485 = vpop.f32.mrb[0].mxu0
  %v1486 = vadd.f32 %v1412, %v1485
  %v1487 = vpop.f32.mrb[0].mxu0
  %1488 = vmatprep.mubr.f32.mxu0 0.0
  %1489 = vmatmul.mubr.f32.gmra.mrb[0].mxu0 %v435
  %v1490 = vpop.f32.mrb[0].mxu0
  %v1491 = vadd.f32 %v1412, %v1490
  %v1492 = vpop.f32.mrb[0].mxu0
  %1493 = vmatprep.mubr.f32.mxu0 0.0
  %1494 = vmatmul.mubr.f32.gmra.mrb[0].mxu0 %v436
  %v1495 = vpop.f32.mrb[0].mxu0
  %v1496 = vadd.f32 %v1412, %v1495
  %v1497 = vpop.f32.mrb[0].mxu0
  %1498 = vdwg.mxu0
  %v1499 = vxor.u32 %v1481, 2147483648
  %v1500 = vxor.u32 %v1486, 2147483648
  %v1501 = vxor.u32 %v1491, 2147483648
  %v1502 = vxor.u32 %v1496, 2147483648
  %v1503 = vmul.f32 %v1499, 1.442695
  %v1504 = vpow.pop %v1503
  %v1505 = vmul.f32 %v1500, 1.442695
  %v1506 = vpow.pop %v1505
  %v1507 = vmul.f32 %v1501, 1.442695
  %v1508 = vpow.pop %v1507
  %v1509 = vmul.f32 %v1502, 1.442695
  %v1510 = vpow.pop %v1509
  %v1511 = vadd.f32 %v1504, 1.0
  %v1512 = vadd.f32 %v1506, 1.0
  %v1513 = vadd.f32 %v1508, 1.0
  %v1514 = vadd.f32 %v1510, 1.0
  %v1515 = vrcp.pop %v1511
  %v1516 = vmul.f32 1.0, %v1515
  %v1517 = vrcp.pop %v1512
  %v1518 = vmul.f32 1.0, %v1517
  %v1519 = vrcp.pop %v1513
  %v1520 = vmul.f32 1.0, %v1519
  %v1521 = vrcp.pop %v1514
  %v1522 = vmul.f32 1.0, %v1521
  %v1523 = vmul.f32 %v1516, %v903
  %v1524 = vmul.f32 %v1518, %v1065
  %v1525 = vmul.f32 %v1520, %v1227
  %v1526 = vmul.f32 %v1522, %v1389
  %v1527 = vadd.f32 %v433, %v1523
  %v1528 = vadd.f32 %v434, %v1524
  %v1529 = vadd.f32 %v435, %v1525
  %v1530 = vadd.f32 %v436, %v1526
  %v1531 = vld [vmem:[%s16] sm:$0xff]
  %v1532 = vld [vmem:[%s16 + $0x8] sm:$0xff]
  %v1533 = vld [vmem:[%s16 + $0x10] sm:$0xff]
  %v1534 = vld [vmem:[%s16 + $0x18] sm:$0xff]
  %v1535 = vld [vmem:[%s16 + $0x20] sm:$0xff]
  %v1536 = vld [vmem:[%s16 + $0x28] sm:$0xff]
  %v1537 = vld [vmem:[%s16 + $0x30] sm:$0xff]
  %v1538 = vld [vmem:[%s16 + $0x38] sm:$0xff]
  %v1539 = vld [vmem:[%s16 + $0x40] sm:$0xff]
  %v1540 = vld [vmem:[%s16 + $0x48] sm:$0xff]
  %v1541 = vld [vmem:[%s16 + $0x50] sm:$0xff]
  %v1542 = vld [vmem:[%s16 + $0x58] sm:$0xff]
  %v1543 = vld [vmem:[%s16 + $0x60] sm:$0xff]
  %v1544 = vld [vmem:[%s16 + $0x68] sm:$0xff]
  %v1545 = vld [vmem:[%s16 + $0x70] sm:$0xff]
  %v1546 = vld [vmem:[%s16 + $0x78] sm:$0xff]
  %v1547 = vld [vmem:[%s17] sm:$0x1]
  %v1549 = vlaneseq
  %v1550 = vshrl.u32 %v1549, 7
  %v1551 = vsub.s32 0, %v1550
  %v1552 = vrot.slane %v1547, %v1551
  %1554 = vmatprep.subr.mxu0 0.0
  %1555 = vmatpush1.msra.mxu0 %v1531
  %1556 = vmatprep.subr.mxu0 0.0
  %1557 = vmatpush1.msra.mxu0 %v1532
  %1558 = vmatprep.subr.mxu0 0.0
  %1559 = vmatpush1.msra.mxu0 %v1533
  %1560 = vmatprep.subr.mxu0 0.0
  %1561 = vmatpush1.msra.mxu0 %v1534
  %1562 = vmatprep.subr.mxu0 0.0
  %1563 = vmatpush1.msra.mxu0 %v1535
  %1564 = vmatprep.subr.mxu0 0.0
  %1565 = vmatpush1.msra.mxu0 %v1536
  %1566 = vmatprep.subr.mxu0 0.0
  %1567 = vmatpush1.msra.mxu0 %v1537
  %1568 = vmatprep.subr.mxu0 0.0
  %1569 = vmatpush1.msra.mxu0 %v1538
  %1570 = vmatprep.subr.mxu0 0.0
  %1571 = vmatpush1.msra.mxu0 %v1539
  %1572 = vmatprep.subr.mxu0 0.0
  %1573 = vmatpush1.msra.mxu0 %v1540
  %1574 = vmatprep.subr.mxu0 0.0
  %1575 = vmatpush1.msra.mxu0 %v1541
  %1576 = vmatprep.subr.mxu0 0.0
  %1577 = vmatpush1.msra.mxu0 %v1542
  %1578 = vmatprep.subr.mxu0 0.0
  %1579 = vmatpush1.msra.mxu0 %v1543
  %1580 = vmatprep.subr.mxu0 0.0
  %1581 = vmatpush1.msra.mxu0 %v1544
  %1582 = vmatprep.subr.mxu0 0.0
  %1583 = vmatpush1.msra.mxu0 %v1545
  %1584 = vmatprep.subr.mxu0 0.0
  %1585 = vmatpush1.msra.mxu0 %v1546
  %1586 = vmatprep.subr.mxu0 0.0
  %1587 = vmatpush1.msra.mxu0 0.0
  %1588 = vmatprep.subr.mxu0 0.0
  %1589 = vmatpush1.msra.mxu0 0.0
  %1590 = vmatprep.subr.mxu0 0.0
  %1591 = vmatpush1.msra.mxu0 0.0
  %1592 = vmatprep.subr.mxu0 0.0
  %1593 = vmatpush1.msra.mxu0 0.0
  %1594 = vmatprep.subr.mxu0 0.0
  %1595 = vmatpush1.msra.mxu0 0.0
  %1596 = vmatprep.subr.mxu0 0.0
  %1597 = vmatpush1.msra.mxu0 0.0
  %1598 = vmatprep.subr.mxu0 0.0
  %1599 = vmatpush1.msra.mxu0 0.0
  %1600 = vmatprep.subr.mxu0 0.0
  %1601 = vmatpush1.msra.mxu0 0.0
  %1602 = vmatprep.subr.mxu0 0.0
  %1603 = vmatpush1.msra.mxu0 0.0
  %1604 = vmatprep.subr.mxu0 0.0
  %1605 = vmatpush1.msra.mxu0 0.0
  %1606 = vmatprep.subr.mxu0 0.0
  %1607 = vmatpush1.msra.mxu0 0.0
  %1608 = vmatprep.subr.mxu0 0.0
  %1609 = vmatpush1.msra.mxu0 0.0
  %1610 = vmatprep.subr.mxu0 0.0
  %1611 = vmatpush1.msra.mxu0 0.0
  %1612 = vmatprep.subr.mxu0 0.0
  %1613 = vmatpush1.msra.mxu0 0.0
  %1614 = vmatprep.subr.mxu0 0.0
  %1615 = vmatpush1.msra.mxu0 0.0
  %1616 = vmatprep.subr.mxu0 0.0
  %1617 = vmatpush1.msra.mxu0 0.0
  %1618 = vmatprep.mubr.f32.mxu0 0.0
  %1619 = vmatmul.mubr.f32.gmra.mrb[0].mxu0 %v1527
  %v1620 = vpop.f32.mrb[0].mxu0
  %v1621 = vadd.f32 %v1552, %v1620
  %v1622 = vpop.f32.mrb[0].mxu0
  %1623 = vmatprep.mubr.f32.mxu0 0.0
  %1624 = vmatmul.mubr.f32.gmra.mrb[0].mxu0 %v1528
  %v1625 = vpop.f32.mrb[0].mxu0
  %v1626 = vadd.f32 %v1552, %v1625
  %v1627 = vpop.f32.mrb[0].mxu0
  %1628 = vmatprep.mubr.f32.mxu0 0.0
  %1629 = vmatmul.mubr.f32.gmra.mrb[0].mxu0 %v1529
  %v1630 = vpop.f32.mrb[0].mxu0
  %v1631 = vadd.f32 %v1552, %v1630
  %v1632 = vpop.f32.mrb[0].mxu0
  %1633 = vmatprep.mubr.f32.mxu0 0.0
  %1634 = vmatmul.mubr.f32.gmra.mrb[0].mxu0 %v1530
  %v1635 = vpop.f32.mrb[0].mxu0
  %v1636 = vadd.f32 %v1552, %v1635
  %v1637 = vpop.f32.mrb[0].mxu0
  %1638 = vdwg.mxu0
  %1639 = vst [vmem:[%s18] sm:$0xff] %v1621
  %1640 = vst [vmem:[%s18 + $0x8] sm:$0xff] %v1626
  %1641 = vst [vmem:[%s18 + $0x10] sm:$0xff] %v1631
  %1642 = vst [vmem:[%s18 + $0x18] sm:$0xff] %v1636
  // Predicated region
  $region74: #{actor_critic_forward.3} parent=0 // pred_check
    _
  $region75: #{actor_critic_forward.3} parent=0 // pred_check_branch
    %1644 = sbr.rel (0) target = $region77
  $region76: #{actor_critic_forward.3} parent=0 // pred_region
    _
  $region77: #{actor_critic_forward.3} parent=0 // pred_fallthru
    _
  // Predicated region
  $region78: #{actor_critic_forward.3} parent=0 // pred_check
    _
  $region79: #{actor_critic_forward.3} parent=0 // pred_check_branch
    %1646 = sbr.rel (0) target = $region81
  $region80: #{actor_critic_forward.3} parent=0 // pred_region
    _
  $region81: #{actor_critic_forward.3} parent=0 // pred_fallthru
    _
  // Predicated region
  $region82: #{actor_critic_forward.3} parent=0 // pred_check
    _
  $region83: #{actor_critic_forward.3} parent=0 // pred_check_branch
    %1648 = sbr.rel (0) target = $region85
  $region84: #{actor_critic_forward.3} parent=0 // pred_region
    _
  $region85: #{actor_critic_forward.3} parent=0 // pred_fallthru
    _
  // Predicated region
  $region86: #{actor_critic_forward.3} parent=0 // pred_check
    _
  $region87: #{actor_critic_forward.3} parent=0 // pred_check_branch
    %1650 = sbr.rel (0) target = $region89
  $region88: #{actor_critic_forward.3} parent=0 // pred_region
    _
  $region89: #{actor_critic_forward.3} parent=0 // pred_fallthru
    _

// kernel: actor_critic_forward.2
$region0: #{actor_critic_forward.2}
  #allocation0 [shape = 'u32[]', space=smem, size = 0x4, offset = 0x4, fixed_abs, tag = 'smem constant byte address 0x4 - core index']
  #allocation1 [shape = 'u32[144,128]{1,0:T(1,128)}', space=vmem, size = 0x12000, scoped, tag = 'internal scratch']
  %s0 = inlined_call_operand.vmem [shape: f32[32,128], index: 0, kind: input, shape index: {}]
  %s1 = inlined_call_operand.vmem [shape: f32[2,8,128], index: 1, kind: input, shape index: {}]
  %s2 = inlined_call_operand.vmem [shape: f32[128,128], index: 2, kind: input, shape index: {}]
  %s3 = inlined_call_operand.hbm [shape: f32[1,128], index: 3, kind: input, shape index: {}]
  %s4 = inlined_call_operand.vmem [shape: f32[1,128], index: 4, kind: input, shape index: {}]
  %s5 = inlined_call_operand.hbm [shape: f32[1,128], index: 5, kind: input, shape index: {}]
  %s6 = inlined_call_operand.vmem [shape: f32[128,128], index: 6, kind: input, shape index: {}]
  %s7 = inlined_call_operand.hbm [shape: f32[1,128], index: 7, kind: input, shape index: {}]
  %s8 = inlined_call_operand.vmem [shape: f32[1,128], index: 8, kind: input, shape index: {}]
  %s9 = inlined_call_operand.hbm [shape: f32[1,128], index: 9, kind: input, shape index: {}]
  %s10 = inlined_call_operand.hbm [shape: f32[2,128,384], index: 10, kind: input, shape index: {}]
  %s11 = inlined_call_operand.hbm [shape: f32[2,128,384], index: 11, kind: input, shape index: {}]
  %s12 = inlined_call_operand.vmem [shape: f32[2,1,384], index: 12, kind: input, shape index: {}]
  %s13 = inlined_call_operand.hbm [shape: f32[2,1,384], index: 13, kind: input, shape index: {}]
  %s14 = inlined_call_operand.hbm [shape: f32[128,128], index: 14, kind: input, shape index: {}]
  %s15 = inlined_call_operand.hbm [shape: f32[1,128], index: 15, kind: input, shape index: {}]
  %s16 = inlined_call_operand.hbm [shape: f32[128,128], index: 16, kind: input, shape index: {}]
  %s17 = inlined_call_operand.hbm [shape: f32[1,128], index: 17, kind: input, shape index: {}]
  %s18 = inlined_call_operand.vmem [shape: f32[32,128], index: 18, kind: output, shape index: {0}]
  %s19 = inlined_call_operand.vmem [shape: f32[2,8,128], index: 19, kind: output, shape index: {1}]
  %20 = xla_tuple %s18, %s19
  %s21 = sld [smem:[#allocation0]]
  $region134: #{actor_critic_forward.2} parent=0
    _
  %s23 = ssub.s32 1, %s21
  %s24 = scalar_select 0, %s23, %s21
  $region1: #{actor_critic_forward.2} parent=0
    #allocation2 [shape = 'u8[512]{0}', space=vmem, size = 0x400, scoped, tag = 'input window, operand 3, single buffered']
    #allocation3 [shape = 's32[1]{0}', space=sflag, size = 0x4, scoped, tag = 'scoped memory for actor_critic_forward.2']
    #allocation4 [shape = 'u8[512]{0}', space=vmem, size = 0x400, scoped, tag = 'input window, operand 5, single buffered']
    #allocation5 [shape = 's32[1]{0}', space=sflag, size = 0x4, scoped, tag = 'scoped memory for actor_critic_forward.2']
    #allocation6 [shape = 'u8[512]{0}', space=vmem, size = 0x400, scoped, tag = 'input window, operand 7, single buffered']
    #allocation7 [shape = 'u8[512]{0}', space=vmem, size = 0x400, scoped, tag = 'input window, operand 9, single buffered']
    #allocation8 [shape = 's32[1]{0}', space=sflag, size = 0x4, scoped, tag = 'scoped memory for actor_critic_forward.2']
    #allocation9 [shape = 'u8[393216]{0}', space=vmem, size = 0x60000, scoped, tag = 'input window, operand 10, single buffered']
    #allocation10 [shape = 'u8[393216]{0}', space=vmem, size = 0x60000, scoped, tag = 'input window, operand 11, single buffered']
    #allocation11 [shape = 's32[1]{0}', space=sflag, size = 0x4, scoped, tag = 'scoped memory for actor_critic_forward.2']
    #allocation12 [shape = 'u8[3072]{0}', space=vmem, size = 0xc00, scoped, tag = 'input window, operand 13, single buffered']
    #allocation13 [shape = 'u8[65536]{0}', space=vmem, size = 0x10000, scoped, tag = 'input window, operand 14, single buffered']
    #allocation14 [shape = 's32[1]{0}', space=sflag, size = 0x4, scoped, tag = 'scoped memory for actor_critic_forward.2']
    #allocation15 [shape = 'u8[512]{0}', space=vmem, size = 0x400, scoped, tag = 'input window, operand 15, single buffered']
    #allocation16 [shape = 'u8[65536]{0}', space=vmem, size = 0x10000, scoped, tag = 'input window, operand 16, single buffered']
    #allocation17 [shape = 's32[1]{0}', space=sflag, size = 0x4, scoped, tag = 'scoped memory for actor_critic_forward.2']
    #allocation18 [shape = 'u8[512]{0}', space=vmem, size = 0x400, scoped, tag = 'input window, operand 17, single buffered']
    %25 = vsyncpa [#allocation3], 0
    %26 = vsyncpa [#allocation5], 0
    %27 = vsyncpa [#allocation8], 0
    %28 = vsyncpa [#allocation11], 0
    %29 = vsyncpa [#allocation14], 0
    %30 = vsyncpa [#allocation17], 0
    // Predicated region
    $region2: #{actor_critic_forward.2} parent=1 // pred_check
      _
    $region3: #{actor_critic_forward.2} parent=1 // pred_check_branch
      %32 = sbr.rel (0) target = $region5
    $region4: #{actor_critic_forward.2} parent=1 // pred_region
      _
    $region5: #{actor_critic_forward.2} parent=1 // pred_fallthru
      _
    // Predicated region
    $region6: #{actor_critic_forward.2} parent=1 // pred_check
      _
    $region7: #{actor_critic_forward.2} parent=1 // pred_check_branch
      %34 = sbr.rel (0) target = $region9
    $region8: #{actor_critic_forward.2} parent=1 // pred_region
      _
    $region9: #{actor_critic_forward.2} parent=1 // pred_fallthru
      _
    // Predicated region
    $region10: #{actor_critic_forward.2} parent=1 // pred_check
      _
    $region11: #{actor_critic_forward.2} parent=1 // pred_check_branch
      %36 = sbr.rel (0) target = $region13
    $region12: #{actor_critic_forward.2} parent=1 // pred_region
      _
    $region13: #{actor_critic_forward.2} parent=1 // pred_fallthru
      _
    // Predicated region
    $region14: #{actor_critic_forward.2} parent=1 // pred_check
      _
    $region15: #{actor_critic_forward.2} parent=1 // pred_check_branch
      %38 = sbr.rel (0) target = $region17
    $region16: #{actor_critic_forward.2} parent=1 // pred_region
      %s40 = ssub.s32 16, 16
      %41 = vsyncadd [#allocation3], %s40
      %s43 = sshll.u32 [#allocation2], 4
      %s44 = int_to_ptr.vmem [resolvable:$true] %s43
      %46 = dma.hbm_to_vmem [thread:$0]  %s3, 16, %s44, [#allocation3]
    $region17: #{actor_critic_forward.2} parent=1 // pred_fallthru
      _
    // Predicated region
    $region18: #{actor_critic_forward.2} parent=1 // pred_check
      _
    $region19: #{actor_critic_forward.2} parent=1 // pred_check_branch
      %48 = sbr.rel (0) target = $region21
    $region20: #{actor_critic_forward.2} parent=1 // pred_region
      _
    $region21: #{actor_critic_forward.2} parent=1 // pred_fallthru
      _
    // Predicated region
    $region22: #{actor_critic_forward.2} parent=1 // pred_check
      _
    $region23: #{actor_critic_forward.2} parent=1 // pred_check_branch
      %50 = sbr.rel (0) target = $region25
    $region24: #{actor_critic_forward.2} parent=1 // pred_region
      %s52 = ssub.s32 16, 16
      %53 = vsyncadd [#allocation5], %s52
      %s55 = sshll.u32 [#allocation4], 4
      %s56 = int_to_ptr.vmem [resolvable:$true] %s55
      %58 = dma.hbm_to_vmem [thread:$0]  %s5, 16, %s56, [#allocation5]
    $region25: #{actor_critic_forward.2} parent=1 // pred_fallthru
      _
    // Predicated region
    $region26: #{actor_critic_forward.2} parent=1 // pred_check
      _
    $region27: #{actor_critic_forward.2} parent=1 // pred_check_branch
      %60 = sbr.rel (0) target = $region29
    $region28: #{actor_critic_forward.2} parent=1 // pred_region
      _
    $region29: #{actor_critic_forward.2} parent=1 // pred_fallthru
      _
    // Predicated region
    $region30: #{actor_critic_forward.2} parent=1 // pred_check
      _
    $region31: #{actor_critic_forward.2} parent=1 // pred_check_branch
      %62 = sbr.rel (0) target = $region33
    $region32: #{actor_critic_forward.2} parent=1 // pred_region
      %s64 = ssub.s32 16, 16
      %65 = vsyncadd [#allocation5], %s64
      %s67 = sshll.u32 [#allocation6], 4
      %s68 = int_to_ptr.vmem [resolvable:$true] %s67
      %70 = dma.hbm_to_vmem [thread:$0]  %s7, 16, %s68, [#allocation5]
    $region33: #{actor_critic_forward.2} parent=1 // pred_fallthru
      _
    // Predicated region
    $region34: #{actor_critic_forward.2} parent=1 // pred_check
      _
    $region35: #{actor_critic_forward.2} parent=1 // pred_check_branch
      %72 = sbr.rel (0) target = $region37
    $region36: #{actor_critic_forward.2} parent=1 // pred_region
      _
    $region37: #{actor_critic_forward.2} parent=1 // pred_fallthru
      _
    // Predicated region
    $region38: #{actor_critic_forward.2} parent=1 // pred_check
      _
    $region39: #{actor_critic_forward.2} parent=1 // pred_check_branch
      %74 = sbr.rel (0) target = $region41
    $region40: #{actor_critic_forward.2} parent=1 // pred_region
      %s76 = ssub.s32 16, 16
      %77 = vsyncadd [#allocation8], %s76
      %s79 = sshll.u32 [#allocation7], 4
      %s80 = int_to_ptr.vmem [resolvable:$true] %s79
      %82 = dma.hbm_to_vmem [thread:$0]  %s9, 16, %s80, [#allocation8]
    $region41: #{actor_critic_forward.2} parent=1 // pred_fallthru
      _
    // Predicated region
    $region42: #{actor_critic_forward.2} parent=1 // pred_check
      _
    $region43: #{actor_critic_forward.2} parent=1 // pred_check_branch
      %84 = sbr.rel (0) target = $region45
    $region44: #{actor_critic_forward.2} parent=1 // pred_region
      %s86 = ssub.s32 12288, 12288
      %87 = vsyncadd [#allocation8], %s86
      %s88 = sshll.u32 [#allocation9], 4
      %s89 = int_to_ptr.vmem [resolvable:$true] %s88
      %94 = dma.hbm_to_vmem [thread:$0]  %s10, 12288, %s89, [#allocation8], 384, 384, 24
    $region45: #{actor_critic_forward.2} parent=1 // pred_fallthru
      _
    // Predicated region
    $region46: #{actor_critic_forward.2} parent=1 // pred_check
      _
    $region47: #{actor_critic_forward.2} parent=1 // pred_check_branch
      %96 = sbr.rel (0) target = $region49
    $region48: #{actor_critic_forward.2} parent=1 // pred_region
      %s98 = ssub.s32 12288, 12288
      %99 = vsyncadd [#allocation11], %s98
      %s100 = sshll.u32 [#allocation10], 4
      %s101 = int_to_ptr.vmem [resolvable:$true] %s100
      %106 = dma.hbm_to_vmem [thread:$0]  %s11, 12288, %s101, [#allocation11], 384, 384, 24
    $region49: #{actor_critic_forward.2} parent=1 // pred_fallthru
      _
    // Predicated region
    $region50: #{actor_critic_forward.2} parent=1 // pred_check
      _
    $region51: #{actor_critic_forward.2} parent=1 // pred_check_branch
      %108 = sbr.rel (0) target = $region53
    $region52: #{actor_critic_forward.2} parent=1 // pred_region
      _
    $region53: #{actor_critic_forward.2} parent=1 // pred_fallthru
      _
    // Predicated region
    $region54: #{actor_critic_forward.2} parent=1 // pred_check
      _
    $region55: #{actor_critic_forward.2} parent=1 // pred_check_branch
      %110 = sbr.rel (0) target = $region57
    $region56: #{actor_critic_forward.2} parent=1 // pred_region
      %s112 = ssub.s32 96, 96
      %113 = vsyncadd [#allocation11], %s112
      %s114 = sshll.u32 [#allocation12], 4
      %s115 = int_to_ptr.vmem [resolvable:$true] %s114
      %120 = dma.hbm_to_vmem [thread:$0]  %s13, 96, %s115, [#allocation11], 48, 48, 3
    $region57: #{actor_critic_forward.2} parent=1 // pred_fallthru
      _
    // Predicated region
    $region58: #{actor_critic_forward.2} parent=1 // pred_check
      _
    $region59: #{actor_critic_forward.2} parent=1 // pred_check_branch
      %122 = sbr.rel (0) target = $region61
    $region60: #{actor_critic_forward.2} parent=1 // pred_region
      %s124 = ssub.s32 2048, 2048
      %125 = vsyncadd [#allocation14], %s124
      %s126 = sshll.u32 [#allocation13], 4
      %s127 = int_to_ptr.vmem [resolvable:$true] %s126
      %132 = dma.hbm_to_vmem [thread:$0]  %s14, 2048, %s127, [#allocation14], 128, 128, 8
    $region61: #{actor_critic_forward.2} parent=1 // pred_fallthru
      _
    // Predicated region
    $region62: #{actor_critic_forward.2} parent=1 // pred_check
      _
    $region63: #{actor_critic_forward.2} parent=1 // pred_check_branch
      %134 = sbr.rel (0) target = $region65
    $region64: #{actor_critic_forward.2} parent=1 // pred_region
      %s136 = ssub.s32 16, 16
      %137 = vsyncadd [#allocation14], %s136
      %s139 = sshll.u32 [#allocation15], 4
      %s140 = int_to_ptr.vmem [resolvable:$true] %s139
      %142 = dma.hbm_to_vmem [thread:$0]  %s15, 16, %s140, [#allocation14]
    $region65: #{actor_critic_forward.2} parent=1 // pred_fallthru
      _
    // Predicated region
    $region66: #{actor_critic_forward.2} parent=1 // pred_check
      _
    $region67: #{actor_critic_forward.2} parent=1 // pred_check_branch
      %144 = sbr.rel (0) target = $region69
    $region68: #{actor_critic_forward.2} parent=1 // pred_region
      %s146 = ssub.s32 2048, 2048
      %147 = vsyncadd [#allocation17], %s146
      %s148 = sshll.u32 [#allocation16], 4
      %s149 = int_to_ptr.vmem [resolvable:$true] %s148
      %154 = dma.hbm_to_vmem [thread:$0]  %s16, 2048, %s149, [#allocation17], 128, 128, 8
    $region69: #{actor_critic_forward.2} parent=1 // pred_fallthru
      _
    // Predicated region
    $region70: #{actor_critic_forward.2} parent=1 // pred_check
      _
    $region71: #{actor_critic_forward.2} parent=1 // pred_check_branch
      %156 = sbr.rel (0) target = $region73
    $region72: #{actor_critic_forward.2} parent=1 // pred_region
      %s158 = ssub.s32 16, 16
      %159 = vsyncadd [#allocation17], %s158
      %s161 = sshll.u32 [#allocation18], 4
      %s162 = int_to_ptr.vmem [resolvable:$true] %s161
      %164 = dma.hbm_to_vmem [thread:$0]  %s17, 16, %s162, [#allocation17]
    $region73: #{actor_critic_forward.2} parent=1 // pred_fallthru
      _
    // Predicated region
    $region74: #{actor_critic_forward.2} parent=1 // pred_check
      _
    $region75: #{actor_critic_forward.2} parent=1 // pred_check_branch
      %166 = sbr.rel (0) target = $region77
    $region76: #{actor_critic_forward.2} parent=1 // pred_region
      %167 = dma.done [#allocation3], 16
    $region77: #{actor_critic_forward.2} parent=1 // pred_fallthru
      _
    // Predicated region
    $region78: #{actor_critic_forward.2} parent=1 // pred_check
      _
    $region79: #{actor_critic_forward.2} parent=1 // pred_check_branch
      %169 = sbr.rel (0) target = $region81
    $region80: #{actor_critic_forward.2} parent=1 // pred_region
      %170 = dma.done [#allocation5], 16
    $region81: #{actor_critic_forward.2} parent=1 // pred_fallthru
      _
    // Predicated region
    $region82: #{actor_critic_forward.2} parent=1 // pred_check
      _
    $region83: #{actor_critic_forward.2} parent=1 // pred_check_branch
      %172 = sbr.rel (0) target = $region85
    $region84: #{actor_critic_forward.2} parent=1 // pred_region
      %173 = dma.done [#allocation5], 16
    $region85: #{actor_critic_forward.2} parent=1 // pred_fallthru
      _
    // Predicated region
    $region86: #{actor_critic_forward.2} parent=1 // pred_check
      _
    $region87: #{actor_critic_forward.2} parent=1 // pred_check_branch
      %175 = sbr.rel (0) target = $region89
    $region88: #{actor_critic_forward.2} parent=1 // pred_region
      %176 = dma.done [#allocation8], 16
    $region89: #{actor_critic_forward.2} parent=1 // pred_fallthru
      _
    // Predicated region
    $region90: #{actor_critic_forward.2} parent=1 // pred_check
      _
    $region91: #{actor_critic_forward.2} parent=1 // pred_check_branch
      %178 = sbr.rel (0) target = $region93
    $region92: #{actor_critic_forward.2} parent=1 // pred_region
      %179 = dma.done [#allocation8], 12288
    $region93: #{actor_critic_forward.2} parent=1 // pred_fallthru
      _
    // Predicated region
    $region94: #{actor_critic_forward.2} parent=1 // pred_check
      _
    $region95: #{actor_critic_forward.2} parent=1 // pred_check_branch
      %181 = sbr.rel (0) target = $region97
    $region96: #{actor_critic_forward.2} parent=1 // pred_region
      %182 = dma.done [#allocation11], 12288
    $region97: #{actor_critic_forward.2} parent=1 // pred_fallthru
      _
    // Predicated region
    $region98: #{actor_critic_forward.2} parent=1 // pred_check
      _
    $region99: #{actor_critic_forward.2} parent=1 // pred_check_branch
      %184 = sbr.rel (0) target = $region101
    $region100: #{actor_critic_forward.2} parent=1 // pred_region
      %185 = dma.done [#allocation11], 96
    $region101: #{actor_critic_forward.2} parent=1 // pred_fallthru
      _
    // Predicated region
    $region102: #{actor_critic_forward.2} parent=1 // pred_check
      _
    $region103: #{actor_critic_forward.2} parent=1 // pred_check_branch
      %187 = sbr.rel (0) target = $region105
    $region104: #{actor_critic_forward.2} parent=1 // pred_region
      %188 = dma.done [#allocation14], 2048
    $region105: #{actor_critic_forward.2} parent=1 // pred_fallthru
      _
    // Predicated region
    $region106: #{actor_critic_forward.2} parent=1 // pred_check
      _
    $region107: #{actor_critic_forward.2} parent=1 // pred_check_branch
      %190 = sbr.rel (0) target = $region109
    $region108: #{actor_critic_forward.2} parent=1 // pred_region
      %191 = dma.done [#allocation14], 16
    $region109: #{actor_critic_forward.2} parent=1 // pred_fallthru
      _
    // Predicated region
    $region110: #{actor_critic_forward.2} parent=1 // pred_check
      _
    $region111: #{actor_critic_forward.2} parent=1 // pred_check_branch
      %193 = sbr.rel (0) target = $region113
    $region112: #{actor_critic_forward.2} parent=1 // pred_region
      %194 = dma.done [#allocation17], 2048
    $region113: #{actor_critic_forward.2} parent=1 // pred_fallthru
      _
    // Predicated region
    $region114: #{actor_critic_forward.2} parent=1 // pred_check
      _
    $region115: #{actor_critic_forward.2} parent=1 // pred_check_branch
      %196 = sbr.rel (0) target = $region117
    $region116: #{actor_critic_forward.2} parent=1 // pred_region
      %197 = dma.done [#allocation17], 16
    $region117: #{actor_critic_forward.2} parent=1 // pred_fallthru
      _
    %v198 = vld [vmem:[%s0] sm:$0xff]
    %v199 = vld [vmem:[%s0 + $0x8] sm:$0xff]
    %v200 = vld [vmem:[%s0 + $0x10] sm:$0xff]
    %v201 = vld [vmem:[%s0 + $0x18] sm:$0xff]
    %v202 = vld [vmem:[%s2] sm:$0xff]
    %v203 = vld [vmem:[%s2 + $0x8] sm:$0xff]
    %v204 = vld [vmem:[%s2 + $0x10] sm:$0xff]
    %v205 = vld [vmem:[%s2 + $0x18] sm:$0xff]
    %v206 = vld [vmem:[%s2 + $0x20] sm:$0xff]
    %v207 = vld [vmem:[%s2 + $0x28] sm:$0xff]
    %v208 = vld [vmem:[%s2 + $0x30] sm:$0xff]
    %v209 = vld [vmem:[%s2 + $0x38] sm:$0xff]
    %v210 = vld [vmem:[%s2 + $0x40] sm:$0xff]
    %v211 = vld [vmem:[%s2 + $0x48] sm:$0xff]
    %v212 = vld [vmem:[%s2 + $0x50] sm:$0xff]
    %v213 = vld [vmem:[%s2 + $0x58] sm:$0xff]
    %v214 = vld [vmem:[%s2 + $0x60] sm:$0xff]
    %v215 = vld [vmem:[%s2 + $0x68] sm:$0xff]
    %v216 = vld [vmem:[%s2 + $0x70] sm:$0xff]
    %v217 = vld [vmem:[%s2 + $0x78] sm:$0xff]
    %v218 = vld [vmem:[#allocation2] sm:$0x1]
    %v219 = vld [vmem:[%s4] sm:$0x1]
    %v220 = vld [vmem:[#allocation4] sm:$0x1]
    %v222 = vlaneseq
    %v223 = vshrl.u32 %v222, 7
    %v224 = vsub.s32 0, %v223
    %v225 = vrot.slane %v218, %v224
    %227 = vmatprep.subr.mxu0 0.0
    %228 = vmatpush1.msra.mxu0 %v202
    %229 = vmatprep.subr.mxu0 0.0
    %230 = vmatpush1.msra.mxu0 %v203
    %231 = vmatprep.subr.mxu0 0.0
    %232 = vmatpush1.msra.mxu0 %v204
    %233 = vmatprep.subr.mxu0 0.0
    %234 = vmatpush1.msra.mxu0 %v205
    %235 = vmatprep.subr.mxu0 0.0
    %236 = vmatpush1.msra.mxu0 %v206
    %237 = vmatprep.subr.mxu0 0.0
    %238 = vmatpush1.msra.mxu0 %v207
    %239 = vmatprep.subr.mxu0 0.0
    %240 = vmatpush1.msra.mxu0 %v208
    %241 = vmatprep.subr.mxu0 0.0
    %242 = vmatpush1.msra.mxu0 %v209
    %243 = vmatprep.subr.mxu0 0.0
    %244 = vmatpush1.msra.mxu0 %v210
    %245 = vmatprep.subr.mxu0 0.0
    %246 = vmatpush1.msra.mxu0 %v211
    %247 = vmatprep.subr.mxu0 0.0
    %248 = vmatpush1.msra.mxu0 %v212
    %249 = vmatprep.subr.mxu0 0.0
    %250 = vmatpush1.msra.mxu0 %v213
    %251 = vmatprep.subr.mxu0 0.0
    %252 = vmatpush1.msra.mxu0 %v214
    %253 = vmatprep.subr.mxu0 0.0
    %254 = vmatpush1.msra.mxu0 %v215
    %255 = vmatprep.subr.mxu0 0.0
    %256 = vmatpush1.msra.mxu0 %v216
    %257 = vmatprep.subr.mxu0 0.0
    %258 = vmatpush1.msra.mxu0 %v217
    %259 = vmatprep.subr.mxu0 0.0
    %260 = vmatpush1.msra.mxu0 0.0
    %261 = vmatprep.subr.mxu0 0.0
    %262 = vmatpush1.msra.mxu0 0.0
    %263 = vmatprep.subr.mxu0 0.0
    %264 = vmatpush1.msra.mxu0 0.0
    %265 = vmatprep.subr.mxu0 0.0
    %266 = vmatpush1.msra.mxu0 0.0
    %267 = vmatprep.subr.mxu0 0.0
    %268 = vmatpush1.msra.mxu0 0.0
    %269 = vmatprep.subr.mxu0 0.0
    %270 = vmatpush1.msra.mxu0 0.0
    %271 = vmatprep.subr.mxu0 0.0
    %272 = vmatpush1.msra.mxu0 0.0
    %273 = vmatprep.subr.mxu0 0.0
    %274 = vmatpush1.msra.mxu0 0.0
    %275 = vmatprep.subr.mxu0 0.0
    %276 = vmatpush1.msra.mxu0 0.0
    %277 = vmatprep.subr.mxu0 0.0
    %278 = vmatpush1.msra.mxu0 0.0
    %279 = vmatprep.subr.mxu0 0.0
    %280 = vmatpush1.msra.mxu0 0.0
    %281 = vmatprep.subr.mxu0 0.0
    %282 = vmatpush1.msra.mxu0 0.0
    %283 = vmatprep.subr.mxu0 0.0
    %284 = vmatpush1.msra.mxu0 0.0
    %285 = vmatprep.subr.mxu0 0.0
    %286 = vmatpush1.msra.mxu0 0.0
    %287 = vmatprep.subr.mxu0 0.0
    %288 = vmatpush1.msra.mxu0 0.0
    %289 = vmatprep.subr.mxu0 0.0
    %290 = vmatpush1.msra.mxu0 0.0
    %291 = vmatprep.mubr.f32.mxu0 0.0
    %292 = vmatmul.mubr.f32.gmra.mrb[0].mxu0 %v198
    %v293 = vpop.f32.mrb[0].mxu0
    %v294 = vadd.f32 %v225, %v293
    %v295 = vpop.f32.mrb[0].mxu0
    %296 = vmatprep.mubr.f32.mxu0 0.0
    %297 = vmatmul.mubr.f32.gmra.mrb[0].mxu0 %v199
    %v298 = vpop.f32.mrb[0].mxu0
    %v299 = vadd.f32 %v225, %v298
    %v300 = vpop.f32.mrb[0].mxu0
    %301 = vmatprep.mubr.f32.mxu0 0.0
    %302 = vmatmul.mubr.f32.gmra.mrb[0].mxu0 %v200
    %v303 = vpop.f32.mrb[0].mxu0
    %v304 = vadd.f32 %v225, %v303
    %v305 = vpop.f32.mrb[0].mxu0
    %306 = vmatprep.mubr.f32.mxu0 0.0
    %307 = vmatmul.mubr.f32.gmra.mrb[0].mxu0 %v201
    %v308 = vpop.f32.mrb[0].mxu0
    %v309 = vadd.f32 %v225, %v308
    %v310 = vpop.f32.mrb[0].mxu0
    %311 = vdwg.mxu0
    %v312 = vmax.f32 %v294, 0.0
    %v313 = vmax.f32 %v299, 0.0
    %v314 = vmax.f32 %v304, 0.0
    %v315 = vmax.f32 %v309, 0.0
    %316 = vadd.xlane.f32.xlu0 %v312
    %v317 = vpop.xlane.xlu0 %316
    %318 = vadd.xlane.f32.xlu0 %v313
    %v319 = vpop.xlane.xlu0 %318
    %320 = vadd.xlane.f32.xlu0 %v314
    %v321 = vpop.xlane.xlu0 %320
    %322 = vadd.xlane.f32.xlu0 %v315
    %v323 = vpop.xlane.xlu0 %322
    %v324 = vmul.f32 %v317, 0.03125
    %v325 = vmul.f32 %v319, 0.03125
    %v326 = vmul.f32 %v321, 0.03125
    %v327 = vmul.f32 %v323, 0.03125
    %v328 = vmul.f32 %v312, %v312
    %v329 = vmul.f32 %v313, %v313
    %v330 = vmul.f32 %v314, %v314
    %v331 = vmul.f32 %v315, %v315
    %332 = vadd.xlane.f32.xlu0 %v328
    %v333 = vpop.xlane.xlu0 %332
    %334 = vadd.xlane.f32.xlu0 %v329
    %v335 = vpop.xlane.xlu0 %334
    %336 = vadd.xlane.f32.xlu0 %v330
    %v337 = vpop.xlane.xlu0 %336
    %338 = vadd.xlane.f32.xlu0 %v331
    %v339 = vpop.xlane.xlu0 %338
    %v340 = vmul.f32 %v333, 0.03125
    %v341 = vmul.f32 %v335, 0.03125
    %v342 = vmul.f32 %v337, 0.03125
    %v343 = vmul.f32 %v339, 0.03125
    %v344 = vmul.f32 %v324, %v324
    %v345 = vmul.f32 %v325, %v325
    %v346 = vmul.f32 %v326, %v326
    %v347 = vmul.f32 %v327, %v327
    %v348 = vsub.f32 %v340, %v344
    %v349 = vsub.f32 %v341, %v345
    %v350 = vsub.f32 %v342, %v346
    %v351 = vsub.f32 %v343, %v347
    %v352 = vsub.f32 %v312, %v324
    %v353 = vsub.f32 %v313, %v325
    %v354 = vsub.f32 %v314, %v326
    %v355 = vsub.f32 %v315, %v327
    %v356 = vadd.f32 %v348, 1e-05
    %v357 = vadd.f32 %v349, 1e-05
    %v358 = vadd.f32 %v350, 1e-05
    %v359 = vadd.f32 %v351, 1e-05
    %v360 = vrsqrt.pop %v356
    %v361 = vrsqrt.pop %v357
    %v362 = vrsqrt.pop %v358
    %v363 = vrsqrt.pop %v359
    %v364 = vmul.f32 %v352, %v360
    %v365 = vmul.f32 %v353, %v361
    %v366 = vmul.f32 %v354, %v362
    %v367 = vmul.f32 %v355, %v363
    %v369 = vlaneseq
    %v370 = vshrl.u32 %v369, 7
    %v371 = vsub.s32 0, %v370
    %v372 = vrot.slane %v219, %v371
    %v374 = vmul.f32 %v364, %v372
    %v375 = vmul.f32 %v365, %v372
    %v376 = vmul.f32 %v366, %v372
    %v377 = vmul.f32 %v367, %v372
    %v379 = vlaneseq
    %v380 = vshrl.u32 %v379, 7
    %v381 = vsub.s32 0, %v380
    %v382 = vrot.slane %v220, %v381
    %v384 = vadd.f32 %v374, %v382
    %v385 = vadd.f32 %v375, %v382
    %v386 = vadd.f32 %v376, %v382
    %v387 = vadd.f32 %v377, %v382
    %v388 = vld [vmem:[%s6] sm:$0xff]
    %v389 = vld [vmem:[%s6 + $0x8] sm:$0xff]
    %v390 = vld [vmem:[%s6 + $0x10] sm:$0xff]
    %v391 = vld [vmem:[%s6 + $0x18] sm:$0xff]
    %v392 = vld [vmem:[%s6 + $0x20] sm:$0xff]
    %v393 = vld [vmem:[%s6 + $0x28] sm:$0xff]
    %v394 = vld [vmem:[%s6 + $0x30] sm:$0xff]
    %v395 = vld [vmem:[%s6 + $0x38] sm:$0xff]
    %v396 = vld [vmem:[%s6 + $0x40] sm:$0xff]
    %v397 = vld [vmem:[%s6 + $0x48] sm:$0xff]
    %v398 = vld [vmem:[%s6 + $0x50] sm:$0xff]
    %v399 = vld [vmem:[%s6 + $0x58] sm:$0xff]
    %v400 = vld [vmem:[%s6 + $0x60] sm:$0xff]
    %v401 = vld [vmem:[%s6 + $0x68] sm:$0xff]
    %v402 = vld [vmem:[%s6 + $0x70] sm:$0xff]
    %v403 = vld [vmem:[%s6 + $0x78] sm:$0xff]
    %v404 = vld [vmem:[#allocation6] sm:$0x1]
    %v405 = vld [vmem:[%s8] sm:$0x1]
    %v406 = vld [vmem:[#allocation7] sm:$0x1]
    %v408 = vlaneseq
    %v409 = vshrl.u32 %v408, 7
    %v410 = vsub.s32 0, %v409
    %v411 = vrot.slane %v404, %v410
    %413 = vmatprep.subr.mxu0 0.0
    %414 = vmatpush1.msra.mxu0 %v388
    %415 = vmatprep.subr.mxu0 0.0
    %416 = vmatpush1.msra.mxu0 %v389
    %417 = vmatprep.subr.mxu0 0.0
    %418 = vmatpush1.msra.mxu0 %v390
    %419 = vmatprep.subr.mxu0 0.0
    %420 = vmatpush1.msra.mxu0 %v391
    %421 = vmatprep.subr.mxu0 0.0
    %422 = vmatpush1.msra.mxu0 %v392
    %423 = vmatprep.subr.mxu0 0.0
    %424 = vmatpush1.msra.mxu0 %v393
    %425 = vmatprep.subr.mxu0 0.0
    %426 = vmatpush1.msra.mxu0 %v394
    %427 = vmatprep.subr.mxu0 0.0
    %428 = vmatpush1.msra.mxu0 %v395
    %429 = vmatprep.subr.mxu0 0.0
    %430 = vmatpush1.msra.mxu0 %v396
    %431 = vmatprep.subr.mxu0 0.0
    %432 = vmatpush1.msra.mxu0 %v397
    %433 = vmatprep.subr.mxu0 0.0
    %434 = vmatpush1.msra.mxu0 %v398
    %435 = vmatprep.subr.mxu0 0.0
    %436 = vmatpush1.msra.mxu0 %v399
    %437 = vmatprep.subr.mxu0 0.0
    %438 = vmatpush1.msra.mxu0 %v400
    %439 = vmatprep.subr.mxu0 0.0
    %440 = vmatpush1.msra.mxu0 %v401
    %441 = vmatprep.subr.mxu0 0.0
    %442 = vmatpush1.msra.mxu0 %v402
    %443 = vmatprep.subr.mxu0 0.0
    %444 = vmatpush1.msra.mxu0 %v403
    %445 = vmatprep.subr.mxu0 0.0
    %446 = vmatpush1.msra.mxu0 0.0
    %447 = vmatprep.subr.mxu0 0.0
    %448 = vmatpush1.msra.mxu0 0.0
    %449 = vmatprep.subr.mxu0 0.0
    %450 = vmatpush1.msra.mxu0 0.0
    %451 = vmatprep.subr.mxu0 0.0
    %452 = vmatpush1.msra.mxu0 0.0
    %453 = vmatprep.subr.mxu0 0.0
    %454 = vmatpush1.msra.mxu0 0.0
    %455 = vmatprep.subr.mxu0 0.0
    %456 = vmatpush1.msra.mxu0 0.0
    %457 = vmatprep.subr.mxu0 0.0
    %458 = vmatpush1.msra.mxu0 0.0
    %459 = vmatprep.subr.mxu0 0.0
    %460 = vmatpush1.msra.mxu0 0.0
    %461 = vmatprep.subr.mxu0 0.0
    %462 = vmatpush1.msra.mxu0 0.0
    %463 = vmatprep.subr.mxu0 0.0
    %464 = vmatpush1.msra.mxu0 0.0
    %465 = vmatprep.subr.mxu0 0.0
    %466 = vmatpush1.msra.mxu0 0.0
    %467 = vmatprep.subr.mxu0 0.0
    %468 = vmatpush1.msra.mxu0 0.0
    %469 = vmatprep.subr.mxu0 0.0
    %470 = vmatpush1.msra.mxu0 0.0
    %471 = vmatprep.subr.mxu0 0.0
    %472 = vmatpush1.msra.mxu0 0.0
    %473 = vmatprep.subr.mxu0 0.0
    %474 = vmatpush1.msra.mxu0 0.0
    %475 = vmatprep.subr.mxu0 0.0
    %476 = vmatpush1.msra.mxu0 0.0
    %477 = vmatprep.mubr.f32.mxu0 0.0
    %478 = vmatmul.mubr.f32.gmra.mrb[0].mxu0 %v384
    %v479 = vpop.f32.mrb[0].mxu0
    %v480 = vadd.f32 %v411, %v479
    %v481 = vpop.f32.mrb[0].mxu0
    %482 = vmatprep.mubr.f32.mxu0 0.0
    %483 = vmatmul.mubr.f32.gmra.mrb[0].mxu0 %v385
    %v484 = vpop.f32.mrb[0].mxu0
    %v485 = vadd.f32 %v411, %v484
    %v486 = vpop.f32.mrb[0].mxu0
    %487 = vmatprep.mubr.f32.mxu0 0.0
    %488 = vmatmul.mubr.f32.gmra.mrb[0].mxu0 %v386
    %v489 = vpop.f32.mrb[0].mxu0
    %v490 = vadd.f32 %v411, %v489
    %v491 = vpop.f32.mrb[0].mxu0
    %492 = vmatprep.mubr.f32.mxu0 0.0
    %493 = vmatmul.mubr.f32.gmra.mrb[0].mxu0 %v387
    %v494 = vpop.f32.mrb[0].mxu0
    %v495 = vadd.f32 %v411, %v494
    %v496 = vpop.f32.mrb[0].mxu0
    %497 = vdwg.mxu0
    %v498 = vmax.f32 %v480, 0.0
    %v499 = vmax.f32 %v485, 0.0
    %v500 = vmax.f32 %v490, 0.0
    %v501 = vmax.f32 %v495, 0.0
    %502 = vadd.xlane.f32.xlu0 %v498
    %v503 = vpop.xlane.xlu0 %502
    %504 = vadd.xlane.f32.xlu0 %v499
    %v505 = vpop.xlane.xlu0 %504
    %506 = vadd.xlane.f32.xlu0 %v500
    %v507 = vpop.xlane.xlu0 %506
    %508 = vadd.xlane.f32.xlu0 %v501
    %v509 = vpop.xlane.xlu0 %508
    %v510 = vmul.f32 %v503, 0.03125
    %v511 = vmul.f32 %v505, 0.03125
    %v512 = vmul.f32 %v507, 0.03125
    %v513 = vmul.f32 %v509, 0.03125
    %v514 = vmul.f32 %v498, %v498
    %v515 = vmul.f32 %v499, %v499
    %v516 = vmul.f32 %v500, %v500
    %v517 = vmul.f32 %v501, %v501
    %518 = vadd.xlane.f32.xlu0 %v514
    %v519 = vpop.xlane.xlu0 %518
    %520 = vadd.xlane.f32.xlu0 %v515
    %v521 = vpop.xlane.xlu0 %520
    %522 = vadd.xlane.f32.xlu0 %v516
    %v523 = vpop.xlane.xlu0 %522
    %524 = vadd.xlane.f32.xlu0 %v517
    %v525 = vpop.xlane.xlu0 %524
    %v526 = vmul.f32 %v519, 0.03125
    %v527 = vmul.f32 %v521, 0.03125
    %v528 = vmul.f32 %v523, 0.03125
    %v529 = vmul.f32 %v525, 0.03125
    %v530 = vmul.f32 %v510, %v510
    %v531 = vmul.f32 %v511, %v511
    %v532 = vmul.f32 %v512, %v512
    %v533 = vmul.f32 %v513, %v513
    %v534 = vsub.f32 %v526, %v530
    %v535 = vsub.f32 %v527, %v531
    %v536 = vsub.f32 %v528, %v532
    %v537 = vsub.f32 %v529, %v533
    %v538 = vsub.f32 %v498, %v510
    %v539 = vsub.f32 %v499, %v511
    %v540 = vsub.f32 %v500, %v512
    %v541 = vsub.f32 %v501, %v513
    %v542 = vadd.f32 %v534, 1e-05
    %v543 = vadd.f32 %v535, 1e-05
    %v544 = vadd.f32 %v536, 1e-05
    %v545 = vadd.f32 %v537, 1e-05
    %v546 = vrsqrt.pop %v542
    %v547 = vrsqrt.pop %v543
    %v548 = vrsqrt.pop %v544
    %v549 = vrsqrt.pop %v545
    %v550 = vmul.f32 %v538, %v546
    %v551 = vmul.f32 %v539, %v547
    %v552 = vmul.f32 %v540, %v548
    %v553 = vmul.f32 %v541, %v549
    %v555 = vlaneseq
    %v556 = vshrl.u32 %v555, 7
    %v557 = vsub.s32 0, %v556
    %v558 = vrot.slane %v405, %v557
    %v560 = vmul.f32 %v550, %v558
    %v561 = vmul.f32 %v551, %v558
    %v562 = vmul.f32 %v552, %v558
    %v563 = vmul.f32 %v553, %v558
    %v565 = vlaneseq
    %v566 = vshrl.u32 %v565, 7
    %v567 = vsub.s32 0, %v566
    %v568 = vrot.slane %v406, %v567
    %v570 = vadd.f32 %v560, %v568
    %v571 = vadd.f32 %v561, %v568
    %v572 = vadd.f32 %v562, %v568
    %v573 = vadd.f32 %v563, %v568
    %v574 = vld [vmem:[#allocation9] sm:$0xff]
    %v575 = vld [vmem:[#allocation9 + $0x8] sm:$0xff]
    %v576 = vld [vmem:[#allocation9 + $0x10] sm:$0xff]
    %v577 = vld [vmem:[#allocation9 + $0x18] sm:$0xff]
    %v578 = vld [vmem:[#allocation9 + $0x20] sm:$0xff]
    %v579 = vld [vmem:[#allocation9 + $0x28] sm:$0xff]
    %v580 = vld [vmem:[#allocation9 + $0x30] sm:$0xff]
    %v581 = vld [vmem:[#allocation9 + $0x38] sm:$0xff]
    %v582 = vld [vmem:[#allocation9 + $0x40] sm:$0xff]
    %v583 = vld [vmem:[#allocation9 + $0x48] sm:$0xff]
    %v584 = vld [vmem:[#allocation9 + $0x50] sm:$0xff]
    %v585 = vld [vmem:[#allocation9 + $0x58] sm:$0xff]
    %v586 = vld [vmem:[#allocation9 + $0x60] sm:$0xff]
    %v587 = vld [vmem:[#allocation9 + $0x68] sm:$0xff]
    %v588 = vld [vmem:[#allocation9 + $0x70] sm:$0xff]
    %v589 = vld [vmem:[#allocation9 + $0x78] sm:$0xff]
    %v590 = vld [vmem:[#allocation9 + $0x80] sm:$0xff]
    %v591 = vld [vmem:[#allocation9 + $0x88] sm:$0xff]
    %v592 = vld [vmem:[#allocation9 + $0x90] sm:$0xff]
    %v593 = vld [vmem:[#allocation9 + $0x98] sm:$0xff]
    %v594 = vld [vmem:[#allocation9 + $0xa0] sm:$0xff]
    %v595 = vld [vmem:[#allocation9 + $0xa8] sm:$0xff]
    %v596 = vld [vmem:[#allocation9 + $0xb0] sm:$0xff]
    %v597 = vld [vmem:[#allocation9 + $0xb8] sm:$0xff]
    %v598 = vld [vmem:[#allocation9 + $0xc0] sm:$0xff]
    %v599 = vld [vmem:[#allocation9 + $0xc8] sm:$0xff]
    %v600 = vld [vmem:[#allocation9 + $0xd0] sm:$0xff]
    %v601 = vld [vmem:[#allocation9 + $0xd8] sm:$0xff]
    %v602 = vld [vmem:[#allocation9 + $0xe0] sm:$0xff]
    %v603 = vld [vmem:[#allocation9 + $0xe8] sm:$0xff]
    %v604 = vld [vmem:[#allocation9 + $0xf0] sm:$0xff]
    %v605 = vld [vmem:[#allocation9 + $0xf8] sm:$0xff]
    %v606 = vld [vmem:[#allocation9 + $0x100] sm:$0xff]
    %v607 = vld [vmem:[#allocation9 + $0x108] sm:$0xff]
    %v608 = vld [vmem:[#allocation9 + $0x110] sm:$0xff]
    %v609 = vld [vmem:[#allocation9 + $0x118] sm:$0xff]
    %v610 = vld [vmem:[#allocation9 + $0x120] sm:$0xff]
    %v611 = vld [vmem:[#allocation9 + $0x128] sm:$0xff]
    %v612 = vld [vmem:[#allocation9 + $0x130] sm:$0xff]
    %v613 = vld [vmem:[#allocation9 + $0x138] sm:$0xff]
    %v614 = vld [vmem:[#allocation9 + $0x140] sm:$0xff]
    %v615 = vld [vmem:[#allocation9 + $0x148] sm:$0xff]
    %v616 = vld [vmem:[#allocation9 + $0x150] sm:$0xff]
    %v617 = vld [vmem:[#allocation9 + $0x158] sm:$0xff]
    %v618 = vld [vmem:[#allocation9 + $0x160] sm:$0xff]
    %v619 = vld [vmem:[#allocation9 + $0x168] sm:$0xff]
    %v620 = vld [vmem:[#allocation9 + $0x170] sm:$0xff]
    %v621 = vld [vmem:[#allocation9 + $0x178] sm:$0xff]
    %v622 = vld [vmem:[%s12] sm:$0x7]
    %v624 = vlaneseq
    %v625 = vshrl.u32 %v624, 7
    %v626 = vsub.s32 0, %v625
    %v627 = vrot.slane %v622, %v626
    %v628 = vlaneseq
    %v629 = vshrl.u32 %v628, 7
    %v630 = vsub.s32 1, %v629
    %v631 = vrot.slane %v622, %v630
    %v632 = vlaneseq
    %v633 = vshrl.u32 %v632, 7
    %v634 = vsub.s32 2, %v633
    %v635 = vrot.slane %v622, %v634
    %639 = vmatprep.subr.mxu0 %v575
    %640 = vmatpush1.msra.mxu0 %v574
    %641 = vmatprep.subr.mxu0 %v578
    %642 = vmatpush1.msra.mxu0 %v577
    %643 = vmatprep.subr.mxu0 %v581
    %644 = vmatpush1.msra.mxu0 %v580
    %645 = vmatprep.subr.mxu0 %v584
    %646 = vmatpush1.msra.mxu0 %v583
    %647 = vmatprep.subr.mxu0 %v587
    %648 = vmatpush1.msra.mxu0 %v586
    %649 = vmatprep.subr.mxu0 %v590
    %650 = vmatpush1.msra.mxu0 %v589
    %651 = vmatprep.subr.mxu0 %v593
    %652 = vmatpush1.msra.mxu0 %v592
    %653 = vmatprep.subr.mxu0 %v596
    %654 = vmatpush1.msra.mxu0 %v595
    %655 = vmatprep.subr.mxu0 %v599
    %656 = vmatpush1.msra.mxu0 %v598
    %657 = vmatprep.subr.mxu0 %v602
    %658 = vmatpush1.msra.mxu0 %v601
    %659 = vmatprep.subr.mxu0 %v605
    %660 = vmatpush1.msra.mxu0 %v604
    %661 = vmatprep.subr.mxu0 %v608
    %662 = vmatpush1.msra.mxu0 %v607
    %663 = vmatprep.subr.mxu0 %v611
    %664 = vmatpush1.msra.mxu0 %v610
    %665 = vmatprep.subr.mxu0 %v614
    %666 = vmatpush1.msra.mxu0 %v613
    %667 = vmatprep.subr.mxu0 %v617
    %668 = vmatpush1.msra.mxu0 %v616
    %669 = vmatprep.subr.mxu0 %v620
    %670 = vmatpush1.msra.mxu0 %v619
    %671 = vmatprep.subr.mxu0 0.0
    %672 = vmatpush1.msra.mxu0 0.0
    %673 = vmatprep.subr.mxu0 0.0
    %674 = vmatpush1.msra.mxu0 0.0
    %675 = vmatprep.subr.mxu0 0.0
    %676 = vmatpush1.msra.mxu0 0.0
    %677 = vmatprep.subr.mxu0 0.0
    %678 = vmatpush1.msra.mxu0 0.0
    %679 = vmatprep.subr.mxu0 0.0
    %680 = vmatpush1.msra.mxu0 0.0
    %681 = vmatprep.subr.mxu0 0.0
    %682 = vmatpush1.msra.mxu0 0.0
    %683 = vmatprep.subr.mxu0 0.0
    %684 = vmatpush1.msra.mxu0 0.0
    %685 = vmatprep.subr.mxu0 0.0
    %686 = vmatpush1.msra.mxu0 0.0
    %687 = vmatprep.subr.mxu0 0.0
    %688 = vmatpush1.msra.mxu0 0.0
    %689 = vmatprep.subr.mxu0 0.0
    %690 = vmatpush1.msra.mxu0 0.0
    %691 = vmatprep.subr.mxu0 0.0
    %692 = vmatpush1.msra.mxu0 0.0
    %693 = vmatprep.subr.mxu0 0.0
    %694 = vmatpush1.msra.mxu0 0.0
    %695 = vmatprep.subr.mxu0 0.0
    %696 = vmatpush1.msra.mxu0 0.0
    %697 = vmatprep.subr.mxu0 0.0
    %698 = vmatpush1.msra.mxu0 0.0
    %699 = vmatprep.subr.mxu0 0.0
    %700 = vmatpush1.msra.mxu0 0.0
    %701 = vmatprep.subr.mxu0 0.0
    %702 = vmatpush1.msra.mxu0 0.0
    %703 = vmatprep.mubr.f32.mxu0 0.0
    %704 = vmatmul.mubr.f32.gmra.mrb[0].mxu0 %v570
    %v705 = vpop.f32.mrb[0].mxu0
    %v706 = vadd.f32 %v627, %v705
    %v707 = vpop.f32.mrb[0].mxu0
    %v708 = vadd.f32 %v631, %v707
    %709 = vmatprep.mubr.f32.mxu0 0.0
    %710 = vmatmul.mubr.f32.gmra.mrb[0].mxu0 %v571
    %v711 = vpop.f32.mrb[0].mxu0
    %v712 = vadd.f32 %v627, %v711
    %v713 = vpop.f32.mrb[0].mxu0
    %v714 = vadd.f32 %v631, %v713
    %715 = vmatprep.mubr.f32.mxu0 0.0
    %716 = vmatmul.mubr.f32.gmra.mrb[0].mxu0 %v572
    %v717 = vpop.f32.mrb[0].mxu0
    %v718 = vadd.f32 %v627, %v717
    %v719 = vpop.f32.mrb[0].mxu0
    %v720 = vadd.f32 %v631, %v719
    %721 = vmatprep.mubr.f32.mxu0 0.0
    %722 = vmatmul.mubr.f32.gmra.mrb[0].mxu0 %v573
    %v723 = vpop.f32.mrb[0].mxu0
    %v724 = vadd.f32 %v627, %v723
    %v725 = vpop.f32.mrb[0].mxu0
    %v726 = vadd.f32 %v631, %v725
    %727 = vdwg.mxu0
    %728 = vmatprep.subr.mxu0 0.0
    %729 = vmatpush1.msra.mxu0 %v576
    %730 = vmatprep.subr.mxu0 0.0
    %731 = vmatpush1.msra.mxu0 %v579
    %732 = vmatprep.subr.mxu0 0.0
    %733 = vmatpush1.msra.mxu0 %v582
    %734 = vmatprep.subr.mxu0 0.0
    %735 = vmatpush1.msra.mxu0 %v585
    %736 = vmatprep.subr.mxu0 0.0
    %737 = vmatpush1.msra.mxu0 %v588
    %738 = vmatprep.subr.mxu0 0.0
    %739 = vmatpush1.msra.mxu0 %v591
    %740 = vmatprep.subr.mxu0 0.0
    %741 = vmatpush1.msra.mxu0 %v594
    %742 = vmatprep.subr.mxu0 0.0
    %743 = vmatpush1.msra.mxu0 %v597
    %744 = vmatprep.subr.mxu0 0.0
    %745 = vmatpush1.msra.mxu0 %v600
    %746 = vmatprep.subr.mxu0 0.0
    %747 = vmatpush1.msra.mxu0 %v603
    %748 = vmatprep.subr.mxu0 0.0
    %749 = vmatpush1.msra.mxu0 %v606
    %750 = vmatprep.subr.mxu0 0.0
    %751 = vmatpush1.msra.mxu0 %v609
    %752 = vmatprep.subr.mxu0 0.0
    %753 = vmatpush1.msra.mxu0 %v612
    %754 = vmatprep.subr.mxu0 0.0
    %755 = vmatpush1.msra.mxu0 %v615
    %756 = vmatprep.subr.mxu0 0.0
    %757 = vmatpush1.msra.mxu0 %v618
    %758 = vmatprep.subr.mxu0 0.0
    %759 = vmatpush1.msra.mxu0 %v621
    %760 = vmatprep.subr.mxu0 0.0
    %761 = vmatpush1.msra.mxu0 0.0
    %762 = vmatprep.subr.mxu0 0.0
    %763 = vmatpush1.msra.mxu0 0.0
    %764 = vmatprep.subr.mxu0 0.0
    %765 = vmatpush1.msra.mxu0 0.0
    %766 = vmatprep.subr.mxu0 0.0
    %767 = vmatpush1.msra.mxu0 0.0
    %768 = vmatprep.subr.mxu0 0.0
    %769 = vmatpush1.msra.mxu0 0.0
    %770 = vmatprep.subr.mxu0 0.0
    %771 = vmatpush1.msra.mxu0 0.0
    %772 = vmatprep.subr.mxu0 0.0
    %773 = vmatpush1.msra.mxu0 0.0
    %774 = vmatprep.subr.mxu0 0.0
    %775 = vmatpush1.msra.mxu0 0.0
    %776 = vmatprep.subr.mxu0 0.0
    %777 = vmatpush1.msra.mxu0 0.0
    %778 = vmatprep.subr.mxu0 0.0
    %779 = vmatpush1.msra.mxu0 0.0
    %780 = vmatprep.subr.mxu0 0.0
    %781 = vmatpush1.msra.mxu0 0.0
    %782 = vmatprep.subr.mxu0 0.0
    %783 = vmatpush1.msra.mxu0 0.0
    %784 = vmatprep.subr.mxu0 0.0
    %785 = vmatpush1.msra.mxu0 0.0
    %786 = vmatprep.subr.mxu0 0.0
    %787 = vmatpush1.msra.mxu0 0.0
    %788 = vmatprep.subr.mxu0 0.0
    %789 = vmatpush1.msra.mxu0 0.0
    %790 = vmatprep.subr.mxu0 0.0
    %791 = vmatpush1.msra.mxu0 0.0
    %792 = vmatprep.mubr.f32.mxu0 0.0
    %793 = vmatmul.mubr.f32.gmra.mrb[0].mxu0 %v570
    %v794 = vpop.f32.mrb[0].mxu0
    %v795 = vadd.f32 %v635, %v794
    %v796 = vpop.f32.mrb[0].mxu0
    %797 = vmatprep.mubr.f32.mxu0 0.0
    %798 = vmatmul.mubr.f32.gmra.mrb[0].mxu0 %v571
    %v799 = vpop.f32.mrb[0].mxu0
    %v800 = vadd.f32 %v635, %v799
    %v801 = vpop.f32.mrb[0].mxu0
    %802 = vmatprep.mubr.f32.mxu0 0.0
    %803 = vmatmul.mubr.f32.gmra.mrb[0].mxu0 %v572
    %v804 = vpop.f32.mrb[0].mxu0
    %v805 = vadd.f32 %v635, %v804
    %v806 = vpop.f32.mrb[0].mxu0
    %807 = vmatprep.mubr.f32.mxu0 0.0
    %808 = vmatmul.mubr.f32.gmra.mrb[0].mxu0 %v573
    %v809 = vpop.f32.mrb[0].mxu0
    %v810 = vadd.f32 %v635, %v809
    %v811 = vpop.f32.mrb[0].mxu0
    %812 = vdwg.mxu0
    %v813 = vld [vmem:[%s1] sm:$0xff]
    %s814 = scalar_lea.vmem %s1, 8
    %v815 = vld [vmem:[%s814] sm:$0xff]
    %v816 = vld [vmem:[#allocation10] sm:$0xff]
    %v817 = vld [vmem:[#allocation10 + $0x8] sm:$0xff]
    %v818 = vld [vmem:[#allocation10 + $0x10] sm:$0xff]
    %v819 = vld [vmem:[#allocation10 + $0x18] sm:$0xff]
    %v820 = vld [vmem:[#allocation10 + $0x20] sm:$0xff]
    %v821 = vld [vmem:[#allocation10 + $0x28] sm:$0xff]
    %v822 = vld [vmem:[#allocation10 + $0x30] sm:$0xff]
    %v823 = vld [vmem:[#allocation10 + $0x38] sm:$0xff]
    %v824 = vld [vmem:[#allocation10 + $0x40] sm:$0xff]
    %v825 = vld [vmem:[#allocation10 + $0x48] sm:$0xff]
    %v826 = vld [vmem:[#allocation10 + $0x50] sm:$0xff]
    %v827 = vld [vmem:[#allocation10 + $0x58] sm:$0xff]
    %v828 = vld [vmem:[#allocation10 + $0x60] sm:$0xff]
    %v829 = vld [vmem:[#allocation10 + $0x68] sm:$0xff]
    %v830 = vld [vmem:[#allocation10 + $0x70] sm:$0xff]
    %v831 = vld [vmem:[#allocation10 + $0x78] sm:$0xff]
    %v832 = vld [vmem:[#allocation10 + $0x80] sm:$0xff]
    %v833 = vld [vmem:[#allocation10 + $0x88] sm:$0xff]
    %v834 = vld [vmem:[#allocation10 + $0x90] sm:$0xff]
    %v835 = vld [vmem:[#allocation10 + $0x98] sm:$0xff]
    %v836 = vld [vmem:[#allocation10 + $0xa0] sm:$0xff]
    %v837 = vld [vmem:[#allocation10 + $0xa8] sm:$0xff]
    %v838 = vld [vmem:[#allocation10 + $0xb0] sm:$0xff]
    %v839 = vld [vmem:[#allocation10 + $0xb8] sm:$0xff]
    %v840 = vld [vmem:[#allocation10 + $0xc0] sm:$0xff]
    %v841 = vld [vmem:[#allocation10 + $0xc8] sm:$0xff]
    %v842 = vld [vmem:[#allocation10 + $0xd0] sm:$0xff]
    %v843 = vld [vmem:[#allocation10 + $0xd8] sm:$0xff]
    %v844 = vld [vmem:[#allocation10 + $0xe0] sm:$0xff]
    %v845 = vld [vmem:[#allocation10 + $0xe8] sm:$0xff]
    %v846 = vld [vmem:[#allocation10 + $0xf0] sm:$0xff]
    %v847 = vld [vmem:[#allocation10 + $0xf8] sm:$0xff]
    %v848 = vld [vmem:[#allocation10 + $0x100] sm:$0xff]
    %v849 = vld [vmem:[#allocation10 + $0x108] sm:$0xff]
    %v850 = vld [vmem:[#allocation10 + $0x110] sm:$0xff]
    %v851 = vld [vmem:[#allocation10 + $0x118] sm:$0xff]
    %v852 = vld [vmem:[#allocation10 + $0x120] sm:$0xff]
    %v853 = vld [vmem:[#allocation10 + $0x128] sm:$0xff]
    %v854 = vld [vmem:[#allocation10 + $0x130] sm:$0xff]
    %v855 = vld [vmem:[#allocation10 + $0x138] sm:$0xff]
    %v856 = vld [vmem:[#allocation10 + $0x140] sm:$0xff]
    %v857 = vld [vmem:[#allocation10 + $0x148] sm:$0xff]
    %v858 = vld [vmem:[#allocation10 + $0x150] sm:$0xff]
    %v859 = vld [vmem:[#allocation10 + $0x158] sm:$0xff]
    %v860 = vld [vmem:[#allocation10 + $0x160] sm:$0xff]
    %v861 = vld [vmem:[#allocation10 + $0x168] sm:$0xff]
    %v862 = vld [vmem:[#allocation10 + $0x170] sm:$0xff]
    %v863 = vld [vmem:[#allocation10 + $0x178] sm:$0xff]
    %v864 = vld [vmem:[#allocation12] sm:$0x7]
    %v866 = vlaneseq
    %v867 = vshrl.u32 %v866, 7
    %v868 = vsub.s32 0, %v867
    %v869 = vrot.slane %v864, %v868
    %v870 = vlaneseq
    %v871 = vshrl.u32 %v870, 7
    %v872 = vsub.s32 1, %v871
    %v873 = vrot.slane %v864, %v872
    %v874 = vlaneseq
    %v875 = vshrl.u32 %v874, 7
    %v876 = vsub.s32 2, %v875
    %v877 = vrot.slane %v864, %v876
    %881 = vmatprep.subr.mxu0 %v817
    %882 = vmatpush1.msra.mxu0 %v816
    %883 = vmatprep.subr.mxu0 %v820
    %884 = vmatpush1.msra.mxu0 %v819
    %885 = vmatprep.subr.mxu0 %v823
    %886 = vmatpush1.msra.mxu0 %v822
    %887 = vmatprep.subr.mxu0 %v826
    %888 = vmatpush1.msra.mxu0 %v825
    %889 = vmatprep.subr.mxu0 %v829
    %890 = vmatpush1.msra.mxu0 %v828
    %891 = vmatprep.subr.mxu0 %v832
    %892 = vmatpush1.msra.mxu0 %v831
    %893 = vmatprep.subr.mxu0 %v835
    %894 = vmatpush1.msra.mxu0 %v834
    %895 = vmatprep.subr.mxu0 %v838
    %896 = vmatpush1.msra.mxu0 %v837
    %897 = vmatprep.subr.mxu0 %v841
    %898 = vmatpush1.msra.mxu0 %v840
    %899 = vmatprep.subr.mxu0 %v844
    %900 = vmatpush1.msra.mxu0 %v843
    %901 = vmatprep.subr.mxu0 %v847
    %902 = vmatpush1.msra.mxu0 %v846
    %903 = vmatprep.subr.mxu0 %v850
    %904 = vmatpush1.msra.mxu0 %v849
    %905 = vmatprep.subr.mxu0 %v853
    %906 = vmatpush1.msra.mxu0 %v852
    %907 = vmatprep.subr.mxu0 %v856
    %908 = vmatpush1.msra.mxu0 %v855
    %909 = vmatprep.subr.mxu0 %v859
    %910 = vmatpush1.msra.mxu0 %v858
    %911 = vmatprep.subr.mxu0 %v862
    %912 = vmatpush1.msra.mxu0 %v861
    %913 = vmatprep.subr.mxu0 0.0
    %914 = vmatpush1.msra.mxu0 0.0
    %915 = vmatprep.subr.mxu0 0.0
    %916 = vmatpush1.msra.mxu0 0.0
    %917 = vmatprep.subr.mxu0 0.0
    %918 = vmatpush1.msra.mxu0 0.0
    %919 = vmatprep.subr.mxu0 0.0
    %920 = vmatpush1.msra.mxu0 0.0
    %921 = vmatprep.subr.mxu0 0.0
    %922 = vmatpush1.msra.mxu0 0.0
    %923 = vmatprep.subr.mxu0 0.0
    %924 = vmatpush1.msra.mxu0 0.0
    %925 = vmatprep.subr.mxu0 0.0
    %926 = vmatpush1.msra.mxu0 0.0
    %927 = vmatprep.subr.mxu0 0.0
    %928 = vmatpush1.msra.mxu0 0.0
    %929 = vmatprep.subr.mxu0 0.0
    %930 = vmatpush1.msra.mxu0 0.0
    %931 = vmatprep.subr.mxu0 0.0
    %932 = vmatpush1.msra.mxu0 0.0
    %933 = vmatprep.subr.mxu0 0.0
    %934 = vmatpush1.msra.mxu0 0.0
    %935 = vmatprep.subr.mxu0 0.0
    %936 = vmatpush1.msra.mxu0 0.0
    %937 = vmatprep.subr.mxu0 0.0
    %938 = vmatpush1.msra.mxu0 0.0
    %939 = vmatprep.subr.mxu0 0.0
    %940 = vmatpush1.msra.mxu0 0.0
    %941 = vmatprep.subr.mxu0 0.0
    %942 = vmatpush1.msra.mxu0 0.0
    %943 = vmatprep.subr.mxu0 0.0
    %944 = vmatpush1.msra.mxu0 0.0
    %945 = vmatprep.mubr.f32.mxu0 0.0
    %946 = vmatmul.mubr.f32.gmra.mrb[0].mxu0 %v813
    %v947 = vpop.f32.mrb[0].mxu0
    %v948 = vadd.f32 %v869, %v947
    %v949 = vpop.f32.mrb[0].mxu0
    %v950 = vadd.f32 %v873, %v949
    %951 = vdwg.mxu0
    %952 = vmatprep.subr.mxu0 0.0
    %953 = vmatpush1.msra.mxu0 %v818
    %954 = vmatprep.subr.mxu0 0.0
    %955 = vmatpush1.msra.mxu0 %v821
    %956 = vmatprep.subr.mxu0 0.0
    %957 = vmatpush1.msra.mxu0 %v824
    %958 = vmatprep.subr.mxu0 0.0
    %959 = vmatpush1.msra.mxu0 %v827
    %960 = vmatprep.subr.mxu0 0.0
    %961 = vmatpush1.msra.mxu0 %v830
    %962 = vmatprep.subr.mxu0 0.0
    %963 = vmatpush1.msra.mxu0 %v833
    %964 = vmatprep.subr.mxu0 0.0
    %965 = vmatpush1.msra.mxu0 %v836
    %966 = vmatprep.subr.mxu0 0.0
    %967 = vmatpush1.msra.mxu0 %v839
    %968 = vmatprep.subr.mxu0 0.0
    %969 = vmatpush1.msra.mxu0 %v842
    %970 = vmatprep.subr.mxu0 0.0
    %971 = vmatpush1.msra.mxu0 %v845
    %972 = vmatprep.subr.mxu0 0.0
    %973 = vmatpush1.msra.mxu0 %v848
    %974 = vmatprep.subr.mxu0 0.0
    %975 = vmatpush1.msra.mxu0 %v851
    %976 = vmatprep.subr.mxu0 0.0
    %977 = vmatpush1.msra.mxu0 %v854
    %978 = vmatprep.subr.mxu0 0.0
    %979 = vmatpush1.msra.mxu0 %v857
    %980 = vmatprep.subr.mxu0 0.0
    %981 = vmatpush1.msra.mxu0 %v860
    %982 = vmatprep.subr.mxu0 0.0
    %983 = vmatpush1.msra.mxu0 %v863
    %984 = vmatprep.subr.mxu0 0.0
    %985 = vmatpush1.msra.mxu0 0.0
    %986 = vmatprep.subr.mxu0 0.0
    %987 = vmatpush1.msra.mxu0 0.0
    %988 = vmatprep.subr.mxu0 0.0
    %989 = vmatpush1.msra.mxu0 0.0
    %990 = vmatprep.subr.mxu0 0.0
    %991 = vmatpush1.msra.mxu0 0.0
    %992 = vmatprep.subr.mxu0 0.0
    %993 = vmatpush1.msra.mxu0 0.0
    %994 = vmatprep.subr.mxu0 0.0
    %995 = vmatpush1.msra.mxu0 0.0
    %996 = vmatprep.subr.mxu0 0.0
    %997 = vmatpush1.msra.mxu0 0.0
    %998 = vmatprep.subr.mxu0 0.0
    %999 = vmatpush1.msra.mxu0 0.0
    %1000 = vmatprep.subr.mxu0 0.0
    %1001 = vmatpush1.msra.mxu0 0.0
    %1002 = vmatprep.subr.mxu0 0.0
    %1003 = vmatpush1.msra.mxu0 0.0
    %1004 = vmatprep.subr.mxu0 0.0
    %1005 = vmatpush1.msra.mxu0 0.0
    %1006 = vmatprep.subr.mxu0 0.0
    %1007 = vmatpush1.msra.mxu0 0.0
    %1008 = vmatprep.subr.mxu0 0.0
    %1009 = vmatpush1.msra.mxu0 0.0
    %1010 = vmatprep.subr.mxu0 0.0
    %1011 = vmatpush1.msra.mxu0 0.0
    %1012 = vmatprep.subr.mxu0 0.0
    %1013 = vmatpush1.msra.mxu0 0.0
    %1014 = vmatprep.subr.mxu0 0.0
    %1015 = vmatpush1.msra.mxu0 0.0
    %1016 = vmatprep.mubr.f32.mxu0 0.0
    %1017 = vmatmul.mubr.f32.gmra.mrb[0].mxu0 %v813
    %v1018 = vpop.f32.mrb[0].mxu0
    %v1019 = vadd.f32 %v877, %v1018
    %v1020 = vpop.f32.mrb[0].mxu0
    %1021 = vdwg.mxu0
    %v1022 = vadd.f32 %v706, %v948
    %v1023 = vxor.u32 %v1022, 2147483648
    %v1024 = vmul.f32 %v1023, 1.442695
    %v1025 = vpow.pop %v1024
    %v1026 = vadd.f32 %v1025, 1.0
    %v1027 = vrcp.pop %v1026
    %v1028 = vmul.f32 1.0, %v1027
    %v1029 = vadd.f32 %v708, %v950
    %v1030 = vxor.u32 %v1029, 2147483648
    %v1031 = vmul.f32 %v1030, 1.442695
    %v1032 = vpow.pop %v1031
    %v1033 = vadd.f32 %v1032, 1.0
    %v1034 = vrcp.pop %v1033
    %v1035 = vmul.f32 1.0, %v1034
    %v1036 = vmul.f32 %v1028, %v1019
    %v1037 = vadd.f32 %v795, %v1036
    %v1038 = vtanh.pop %v1037
    %v1039 = vsub.f32 1.0, %v1035
    %v1040 = vmul.f32 %v1039, %v1038
    %v1041 = vmul.f32 %v1035, %v813
    %v1042 = vadd.f32 %v1040, %v1041
    %s1043 = scalar_lea.vmem [#allocation9], 384
    %v1044 = vld [vmem:[%s1043] sm:$0xff]
    %v1045 = vld [vmem:[%s1043 + $0x8] sm:$0xff]
    %v1046 = vld [vmem:[%s1043 + $0x10] sm:$0xff]
    %v1047 = vld [vmem:[%s1043 + $0x18] sm:$0xff]
    %v1048 = vld [vmem:[%s1043 + $0x20] sm:$0xff]
    %v1049 = vld [vmem:[%s1043 + $0x28] sm:$0xff]
    %v1050 = vld [vmem:[%s1043 + $0x30] sm:$0xff]
    %v1051 = vld [vmem:[%s1043 + $0x38] sm:$0xff]
    %v1052 = vld [vmem:[%s1043 + $0x40] sm:$0xff]
    %v1053 = vld [vmem:[%s1043 + $0x48] sm:$0xff]
    %v1054 = vld [vmem:[%s1043 + $0x50] sm:$0xff]
    %v1055 = vld [vmem:[%s1043 + $0x58] sm:$0xff]
    %v1056 = vld [vmem:[%s1043 + $0x60] sm:$0xff]
    %v1057 = vld [vmem:[%s1043 + $0x68] sm:$0xff]
    %v1058 = vld [vmem:[%s1043 + $0x70] sm:$0xff]
    %v1059 = vld [vmem:[%s1043 + $0x78] sm:$0xff]
    %v1060 = vld [vmem:[%s1043 + $0x80] sm:$0xff]
    %v1061 = vld [vmem:[%s1043 + $0x88] sm:$0xff]
    %v1062 = vld [vmem:[%s1043 + $0x90] sm:$0xff]
    %v1063 = vld [vmem:[%s1043 + $0x98] sm:$0xff]
    %v1064 = vld [vmem:[%s1043 + $0xa0] sm:$0xff]
    %v1065 = vld [vmem:[%s1043 + $0xa8] sm:$0xff]
    %v1066 = vld [vmem:[%s1043 + $0xb0] sm:$0xff]
    %v1067 = vld [vmem:[%s1043 + $0xb8] sm:$0xff]
    %v1068 = vld [vmem:[%s1043 + $0xc0] sm:$0xff]
    %v1069 = vld [vmem:[%s1043 + $0xc8] sm:$0xff]
    %v1070 = vld [vmem:[%s1043 + $0xd0] sm:$0xff]
    %v1071 = vld [vmem:[%s1043 + $0xd8] sm:$0xff]
    %v1072 = vld [vmem:[%s1043 + $0xe0] sm:$0xff]
    %v1073 = vld [vmem:[%s1043 + $0xe8] sm:$0xff]
    %v1074 = vld [vmem:[%s1043 + $0xf0] sm:$0xff]
    %v1075 = vld [vmem:[%s1043 + $0xf8] sm:$0xff]
    %v1076 = vld [vmem:[%s1043 + $0x100] sm:$0xff]
    %v1077 = vld [vmem:[%s1043 + $0x108] sm:$0xff]
    %v1078 = vld [vmem:[%s1043 + $0x110] sm:$0xff]
    %v1079 = vld [vmem:[%s1043 + $0x118] sm:$0xff]
    %v1080 = vld [vmem:[%s1043 + $0x120] sm:$0xff]
    %v1081 = vld [vmem:[%s1043 + $0x128] sm:$0xff]
    %v1082 = vld [vmem:[%s1043 + $0x130] sm:$0xff]
    %v1083 = vld [vmem:[%s1043 + $0x138] sm:$0xff]
    %v1084 = vld [vmem:[%s1043 + $0x140] sm:$0xff]
    %v1085 = vld [vmem:[%s1043 + $0x148] sm:$0xff]
    %v1086 = vld [vmem:[%s1043 + $0x150] sm:$0xff]
    %v1087 = vld [vmem:[%s1043 + $0x158] sm:$0xff]
    %v1088 = vld [vmem:[%s1043 + $0x160] sm:$0xff]
    %v1089 = vld [vmem:[%s1043 + $0x168] sm:$0xff]
    %v1090 = vld [vmem:[%s1043 + $0x170] sm:$0xff]
    %v1091 = vld [vmem:[%s1043 + $0x178] sm:$0xff]
    %s1092 = scalar_lea.vmem %s12, 3
    %v1093 = vld [vmem:[%s1092] sm:$0x7]
    %v1095 = vlaneseq
    %v1096 = vshrl.u32 %v1095, 7
    %v1097 = vsub.s32 0, %v1096
    %v1098 = vrot.slane %v1093, %v1097
    %v1099 = vlaneseq
    %v1100 = vshrl.u32 %v1099, 7
    %v1101 = vsub.s32 1, %v1100
    %v1102 = vrot.slane %v1093, %v1101
    %v1103 = vlaneseq
    %v1104 = vshrl.u32 %v1103, 7
    %v1105 = vsub.s32 2, %v1104
    %v1106 = vrot.slane %v1093, %v1105
    %1110 = vmatprep.subr.mxu0 %v1045
    %1111 = vmatpush1.msra.mxu0 %v1044
    %1112 = vmatprep.subr.mxu0 %v1048
    %1113 = vmatpush1.msra.mxu0 %v1047
    %1114 = vmatprep.subr.mxu0 %v1051
    %1115 = vmatpush1.msra.mxu0 %v1050
    %1116 = vmatprep.subr.mxu0 %v1054
    %1117 = vmatpush1.msra.mxu0 %v1053
    %1118 = vmatprep.subr.mxu0 %v1057
    %1119 = vmatpush1.msra.mxu0 %v1056
    %1120 = vmatprep.subr.mxu0 %v1060
    %1121 = vmatpush1.msra.mxu0 %v1059
    %1122 = vmatprep.subr.mxu0 %v1063
    %1123 = vmatpush1.msra.mxu0 %v1062
    %1124 = vmatprep.subr.mxu0 %v1066
    %1125 = vmatpush1.msra.mxu0 %v1065
    %1126 = vmatprep.subr.mxu0 %v1069
    %1127 = vmatpush1.msra.mxu0 %v1068
    %1128 = vmatprep.subr.mxu0 %v1072
    %1129 = vmatpush1.msra.mxu0 %v1071
    %1130 = vmatprep.subr.mxu0 %v1075
    %1131 = vmatpush1.msra.mxu0 %v1074
    %1132 = vmatprep.subr.mxu0 %v1078
    %1133 = vmatpush1.msra.mxu0 %v1077
    %1134 = vmatprep.subr.mxu0 %v1081
    %1135 = vmatpush1.msra.mxu0 %v1080
    %1136 = vmatprep.subr.mxu0 %v1084
    %1137 = vmatpush1.msra.mxu0 %v1083
    %1138 = vmatprep.subr.mxu0 %v1087
    %1139 = vmatpush1.msra.mxu0 %v1086
    %1140 = vmatprep.subr.mxu0 %v1090
    %1141 = vmatpush1.msra.mxu0 %v1089
    %1142 = vmatprep.subr.mxu0 0.0
    %1143 = vmatpush1.msra.mxu0 0.0
    %1144 = vmatprep.subr.mxu0 0.0
    %1145 = vmatpush1.msra.mxu0 0.0
    %1146 = vmatprep.subr.mxu0 0.0
    %1147 = vmatpush1.msra.mxu0 0.0
    %1148 = vmatprep.subr.mxu0 0.0
    %1149 = vmatpush1.msra.mxu0 0.0
    %1150 = vmatprep.subr.mxu0 0.0
    %1151 = vmatpush1.msra.mxu0 0.0
    %1152 = vmatprep.subr.mxu0 0.0
    %1153 = vmatpush1.msra.mxu0 0.0
    %1154 = vmatprep.subr.mxu0 0.0
    %1155 = vmatpush1.msra.mxu0 0.0
    %1156 = vmatprep.subr.mxu0 0.0
    %1157 = vmatpush1.msra.mxu0 0.0
    %1158 = vmatprep.subr.mxu0 0.0
    %1159 = vmatpush1.msra.mxu0 0.0
    %1160 = vmatprep.subr.mxu0 0.0
    %1161 = vmatpush1.msra.mxu0 0.0
    %1162 = vmatprep.subr.mxu0 0.0
    %1163 = vmatpush1.msra.mxu0 0.0
    %1164 = vmatprep.subr.mxu0 0.0
    %1165 = vmatpush1.msra.mxu0 0.0
    %1166 = vmatprep.subr.mxu0 0.0
    %1167 = vmatpush1.msra.mxu0 0.0
    %1168 = vmatprep.subr.mxu0 0.0
    %1169 = vmatpush1.msra.mxu0 0.0
    %1170 = vmatprep.subr.mxu0 0.0
    %1171 = vmatpush1.msra.mxu0 0.0
    %1172 = vmatprep.subr.mxu0 0.0
    %1173 = vmatpush1.msra.mxu0 0.0
    %1174 = vmatprep.mubr.f32.mxu0 0.0
    %1175 = vmatmul.mubr.f32.gmra.mrb[0].mxu0 %v1042
    %v1176 = vpop.f32.mrb[0].mxu0
    %v1177 = vadd.f32 %v1098, %v1176
    %v1178 = vpop.f32.mrb[0].mxu0
    %v1179 = vadd.f32 %v1102, %v1178
    %1180 = vdwg.mxu0
    %1181 = vmatprep.subr.mxu0 0.0
    %1182 = vmatpush1.msra.mxu0 %v1046
    %1183 = vmatprep.subr.mxu0 0.0
    %1184 = vmatpush1.msra.mxu0 %v1049
    %1185 = vmatprep.subr.mxu0 0.0
    %1186 = vmatpush1.msra.mxu0 %v1052
    %1187 = vmatprep.subr.mxu0 0.0
    %1188 = vmatpush1.msra.mxu0 %v1055
    %1189 = vmatprep.subr.mxu0 0.0
    %1190 = vmatpush1.msra.mxu0 %v1058
    %1191 = vmatprep.subr.mxu0 0.0
    %1192 = vmatpush1.msra.mxu0 %v1061
    %1193 = vmatprep.subr.mxu0 0.0
    %1194 = vmatpush1.msra.mxu0 %v1064
    %1195 = vmatprep.subr.mxu0 0.0
    %1196 = vmatpush1.msra.mxu0 %v1067
    %1197 = vmatprep.subr.mxu0 0.0
    %1198 = vmatpush1.msra.mxu0 %v1070
    %1199 = vmatprep.subr.mxu0 0.0
    %1200 = vmatpush1.msra.mxu0 %v1073
    %1201 = vmatprep.subr.mxu0 0.0
    %1202 = vmatpush1.msra.mxu0 %v1076
    %1203 = vmatprep.subr.mxu0 0.0
    %1204 = vmatpush1.msra.mxu0 %v1079
    %1205 = vmatprep.subr.mxu0 0.0
    %1206 = vmatpush1.msra.mxu0 %v1082
    %1207 = vmatprep.subr.mxu0 0.0
    %1208 = vmatpush1.msra.mxu0 %v1085
    %1209 = vmatprep.subr.mxu0 0.0
    %1210 = vmatpush1.msra.mxu0 %v1088
    %1211 = vmatprep.subr.mxu0 0.0
    %1212 = vmatpush1.msra.mxu0 %v1091
    %1213 = vmatprep.subr.mxu0 0.0
    %1214 = vmatpush1.msra.mxu0 0.0
    %1215 = vmatprep.subr.mxu0 0.0
    %1216 = vmatpush1.msra.mxu0 0.0
    %1217 = vmatprep.subr.mxu0 0.0
    %1218 = vmatpush1.msra.mxu0 0.0
    %1219 = vmatprep.subr.mxu0 0.0
    %1220 = vmatpush1.msra.mxu0 0.0
    %1221 = vmatprep.subr.mxu0 0.0
    %1222 = vmatpush1.msra.mxu0 0.0
    %1223 = vmatprep.subr.mxu0 0.0
    %1224 = vmatpush1.msra.mxu0 0.0
    %1225 = vmatprep.subr.mxu0 0.0
    %1226 = vmatpush1.msra.mxu0 0.0
    %1227 = vmatprep.subr.mxu0 0.0
    %1228 = vmatpush1.msra.mxu0 0.0
    %1229 = vmatprep.subr.mxu0 0.0
    %1230 = vmatpush1.msra.mxu0 0.0
    %1231 = vmatprep.subr.mxu0 0.0
    %1232 = vmatpush1.msra.mxu0 0.0
    %1233 = vmatprep.subr.mxu0 0.0
    %1234 = vmatpush1.msra.mxu0 0.0
    %1235 = vmatprep.subr.mxu0 0.0
    %1236 = vmatpush1.msra.mxu0 0.0
    %1237 = vmatprep.subr.mxu0 0.0
    %1238 = vmatpush1.msra.mxu0 0.0
    %1239 = vmatprep.subr.mxu0 0.0
    %1240 = vmatpush1.msra.mxu0 0.0
    %1241 = vmatprep.subr.mxu0 0.0
    %1242 = vmatpush1.msra.mxu0 0.0
    %1243 = vmatprep.subr.mxu0 0.0
    %1244 = vmatpush1.msra.mxu0 0.0
    %1245 = vmatprep.mubr.f32.mxu0 0.0
    %1246 = vmatmul.mubr.f32.gmra.mrb[0].mxu0 %v1042
    %v1247 = vpop.f32.mrb[0].mxu0
    %v1248 = vadd.f32 %v1106, %v1247
    %v1249 = vpop.f32.mrb[0].mxu0
    %1250 = vdwg.mxu0
    %s1251 = scalar_lea.vmem [#allocation10], 384
    %v1252 = vld [vmem:[%s1251] sm:$0xff]
    %v1253 = vld [vmem:[%s1251 + $0x8] sm:$0xff]
    %v1254 = vld [vmem:[%s1251 + $0x10] sm:$0xff]
    %v1255 = vld [vmem:[%s1251 + $0x18] sm:$0xff]
    %v1256 = vld [vmem:[%s1251 + $0x20] sm:$0xff]
    %v1257 = vld [vmem:[%s1251 + $0x28] sm:$0xff]
    %v1258 = vld [vmem:[%s1251 + $0x30] sm:$0xff]
    %v1259 = vld [vmem:[%s1251 + $0x38] sm:$0xff]
    %v1260 = vld [vmem:[%s1251 + $0x40] sm:$0xff]
    %v1261 = vld [vmem:[%s1251 + $0x48] sm:$0xff]
    %v1262 = vld [vmem:[%s1251 + $0x50] sm:$0xff]
    %v1263 = vld [vmem:[%s1251 + $0x58] sm:$0xff]
    %v1264 = vld [vmem:[%s1251 + $0x60] sm:$0xff]
    %v1265 = vld [vmem:[%s1251 + $0x68] sm:$0xff]
    %v1266 = vld [vmem:[%s1251 + $0x70] sm:$0xff]
    %v1267 = vld [vmem:[%s1251 + $0x78] sm:$0xff]
    %v1268 = vld [vmem:[%s1251 + $0x80] sm:$0xff]
    %v1269 = vld [vmem:[%s1251 + $0x88] sm:$0xff]
    %v1270 = vld [vmem:[%s1251 + $0x90] sm:$0xff]
    %v1271 = vld [vmem:[%s1251 + $0x98] sm:$0xff]
    %v1272 = vld [vmem:[%s1251 + $0xa0] sm:$0xff]
    %v1273 = vld [vmem:[%s1251 + $0xa8] sm:$0xff]
    %v1274 = vld [vmem:[%s1251 + $0xb0] sm:$0xff]
    %v1275 = vld [vmem:[%s1251 + $0xb8] sm:$0xff]
    %v1276 = vld [vmem:[%s1251 + $0xc0] sm:$0xff]
    %v1277 = vld [vmem:[%s1251 + $0xc8] sm:$0xff]
    %v1278 = vld [vmem:[%s1251 + $0xd0] sm:$0xff]
    %v1279 = vld [vmem:[%s1251 + $0xd8] sm:$0xff]
    %v1280 = vld [vmem:[%s1251 + $0xe0] sm:$0xff]
    %v1281 = vld [vmem:[%s1251 + $0xe8] sm:$0xff]
    %v1282 = vld [vmem:[%s1251 + $0xf0] sm:$0xff]
    %v1283 = vld [vmem:[%s1251 + $0xf8] sm:$0xff]
    %v1284 = vld [vmem:[%s1251 + $0x100] sm:$0xff]
    %v1285 = vld [vmem:[%s1251 + $0x108] sm:$0xff]
    %v1286 = vld [vmem:[%s1251 + $0x110] sm:$0xff]
    %v1287 = vld [vmem:[%s1251 + $0x118] sm:$0xff]
    %v1288 = vld [vmem:[%s1251 + $0x120] sm:$0xff]
    %v1289 = vld [vmem:[%s1251 + $0x128] sm:$0xff]
    %v1290 = vld [vmem:[%s1251 + $0x130] sm:$0xff]
    %v1291 = vld [vmem:[%s1251 + $0x138] sm:$0xff]
    %v1292 = vld [vmem:[%s1251 + $0x140] sm:$0xff]
    %v1293 = vld [vmem:[%s1251 + $0x148] sm:$0xff]
    %v1294 = vld [vmem:[%s1251 + $0x150] sm:$0xff]
    %v1295 = vld [vmem:[%s1251 + $0x158] sm:$0xff]
    %v1296 = vld [vmem:[%s1251 + $0x160] sm:$0xff]
    %v1297 = vld [vmem:[%s1251 + $0x168] sm:$0xff]
    %v1298 = vld [vmem:[%s1251 + $0x170] sm:$0xff]
    %v1299 = vld [vmem:[%s1251 + $0x178] sm:$0xff]
    %s1300 = scalar_lea.vmem [#allocation12], 3
    %v1301 = vld [vmem:[%s1300] sm:$0x7]
    %v1303 = vlaneseq
    %v1304 = vshrl.u32 %v1303, 7
    %v1305 = vsub.s32 0, %v1304
    %v1306 = vrot.slane %v1301, %v1305
    %v1307 = vlaneseq
    %v1308 = vshrl.u32 %v1307, 7
    %v1309 = vsub.s32 1, %v1308
    %v1310 = vrot.slane %v1301, %v1309
    %v1311 = vlaneseq
    %v1312 = vshrl.u32 %v1311, 7
    %v1313 = vsub.s32 2, %v1312
    %v1314 = vrot.slane %v1301, %v1313
    %1318 = vmatprep.subr.mxu0 %v1253
    %1319 = vmatpush1.msra.mxu0 %v1252
    %1320 = vmatprep.subr.mxu0 %v1256
    %1321 = vmatpush1.msra.mxu0 %v1255
    %1322 = vmatprep.subr.mxu0 %v1259
    %1323 = vmatpush1.msra.mxu0 %v1258
    %1324 = vmatprep.subr.mxu0 %v1262
    %1325 = vmatpush1.msra.mxu0 %v1261
    %1326 = vmatprep.subr.mxu0 %v1265
    %1327 = vmatpush1.msra.mxu0 %v1264
    %1328 = vmatprep.subr.mxu0 %v1268
    %1329 = vmatpush1.msra.mxu0 %v1267
    %1330 = vmatprep.subr.mxu0 %v1271
    %1331 = vmatpush1.msra.mxu0 %v1270
    %1332 = vmatprep.subr.mxu0 %v1274
    %1333 = vmatpush1.msra.mxu0 %v1273
    %1334 = vmatprep.subr.mxu0 %v1277
    %1335 = vmatpush1.msra.mxu0 %v1276
    %1336 = vmatprep.subr.mxu0 %v1280
    %1337 = vmatpush1.msra.mxu0 %v1279
    %1338 = vmatprep.subr.mxu0 %v1283
    %1339 = vmatpush1.msra.mxu0 %v1282
    %1340 = vmatprep.subr.mxu0 %v1286
    %1341 = vmatpush1.msra.mxu0 %v1285
    %1342 = vmatprep.subr.mxu0 %v1289
    %1343 = vmatpush1.msra.mxu0 %v1288
    %1344 = vmatprep.subr.mxu0 %v1292
    %1345 = vmatpush1.msra.mxu0 %v1291
    %1346 = vmatprep.subr.mxu0 %v1295
    %1347 = vmatpush1.msra.mxu0 %v1294
    %1348 = vmatprep.subr.mxu0 %v1298
    %1349 = vmatpush1.msra.mxu0 %v1297
    %1350 = vmatprep.subr.mxu0 0.0
    %1351 = vmatpush1.msra.mxu0 0.0
    %1352 = vmatprep.subr.mxu0 0.0
    %1353 = vmatpush1.msra.mxu0 0.0
    %1354 = vmatprep.subr.mxu0 0.0
    %1355 = vmatpush1.msra.mxu0 0.0
    %1356 = vmatprep.subr.mxu0 0.0
    %1357 = vmatpush1.msra.mxu0 0.0
    %1358 = vmatprep.subr.mxu0 0.0
    %1359 = vmatpush1.msra.mxu0 0.0
    %1360 = vmatprep.subr.mxu0 0.0
    %1361 = vmatpush1.msra.mxu0 0.0
    %1362 = vmatprep.subr.mxu0 0.0
    %1363 = vmatpush1.msra.mxu0 0.0
    %1364 = vmatprep.subr.mxu0 0.0
    %1365 = vmatpush1.msra.mxu0 0.0
    %1366 = vmatprep.subr.mxu0 0.0
    %1367 = vmatpush1.msra.mxu0 0.0
    %1368 = vmatprep.subr.mxu0 0.0
    %1369 = vmatpush1.msra.mxu0 0.0
    %1370 = vmatprep.subr.mxu0 0.0
    %1371 = vmatpush1.msra.mxu0 0.0
    %1372 = vmatprep.subr.mxu0 0.0
    %1373 = vmatpush1.msra.mxu0 0.0
    %1374 = vmatprep.subr.mxu0 0.0
    %1375 = vmatpush1.msra.mxu0 0.0
    %1376 = vmatprep.subr.mxu0 0.0
    %1377 = vmatpush1.msra.mxu0 0.0
    %1378 = vmatprep.subr.mxu0 0.0
    %1379 = vmatpush1.msra.mxu0 0.0
    %1380 = vmatprep.subr.mxu0 0.0
    %1381 = vmatpush1.msra.mxu0 0.0
    %1382 = vmatprep.mubr.f32.mxu0 0.0
    %1383 = vmatmul.mubr.f32.gmra.mrb[0].mxu0 %v815
    %v1384 = vpop.f32.mrb[0].mxu0
    %v1385 = vadd.f32 %v1306, %v1384
    %v1386 = vpop.f32.mrb[0].mxu0
    %v1387 = vadd.f32 %v1310, %v1386
    %1388 = vdwg.mxu0
    %1389 = vmatprep.subr.mxu0 0.0
    %1390 = vmatpush1.msra.mxu0 %v1254
    %1391 = vmatprep.subr.mxu0 0.0
    %1392 = vmatpush1.msra.mxu0 %v1257
    %1393 = vmatprep.subr.mxu0 0.0
    %1394 = vmatpush1.msra.mxu0 %v1260
    %1395 = vmatprep.subr.mxu0 0.0
    %1396 = vmatpush1.msra.mxu0 %v1263
    %1397 = vmatprep.subr.mxu0 0.0
    %1398 = vmatpush1.msra.mxu0 %v1266
    %1399 = vmatprep.subr.mxu0 0.0
    %1400 = vmatpush1.msra.mxu0 %v1269
    %1401 = vmatprep.subr.mxu0 0.0
    %1402 = vmatpush1.msra.mxu0 %v1272
    %1403 = vmatprep.subr.mxu0 0.0
    %1404 = vmatpush1.msra.mxu0 %v1275
    %1405 = vmatprep.subr.mxu0 0.0
    %1406 = vmatpush1.msra.mxu0 %v1278
    %1407 = vmatprep.subr.mxu0 0.0
    %1408 = vmatpush1.msra.mxu0 %v1281
    %1409 = vmatprep.subr.mxu0 0.0
    %1410 = vmatpush1.msra.mxu0 %v1284
    %1411 = vmatprep.subr.mxu0 0.0
    %1412 = vmatpush1.msra.mxu0 %v1287
    %1413 = vmatprep.subr.mxu0 0.0
    %1414 = vmatpush1.msra.mxu0 %v1290
    %1415 = vmatprep.subr.mxu0 0.0
    %1416 = vmatpush1.msra.mxu0 %v1293
    %1417 = vmatprep.subr.mxu0 0.0
    %1418 = vmatpush1.msra.mxu0 %v1296
    %1419 = vmatprep.subr.mxu0 0.0
    %1420 = vmatpush1.msra.mxu0 %v1299
    %1421 = vmatprep.subr.mxu0 0.0
    %1422 = vmatpush1.msra.mxu0 0.0
    %1423 = vmatprep.subr.mxu0 0.0
    %1424 = vmatpush1.msra.mxu0 0.0
    %1425 = vmatprep.subr.mxu0 0.0
    %1426 = vmatpush1.msra.mxu0 0.0
    %1427 = vmatprep.subr.mxu0 0.0
    %1428 = vmatpush1.msra.mxu0 0.0
    %1429 = vmatprep.subr.mxu0 0.0
    %1430 = vmatpush1.msra.mxu0 0.0
    %1431 = vmatprep.subr.mxu0 0.0
    %1432 = vmatpush1.msra.mxu0 0.0
    %1433 = vmatprep.subr.mxu0 0.0
    %1434 = vmatpush1.msra.mxu0 0.0
    %1435 = vmatprep.subr.mxu0 0.0
    %1436 = vmatpush1.msra.mxu0 0.0
    %1437 = vmatprep.subr.mxu0 0.0
    %1438 = vmatpush1.msra.mxu0 0.0
    %1439 = vmatprep.subr.mxu0 0.0
    %1440 = vmatpush1.msra.mxu0 0.0
    %1441 = vmatprep.subr.mxu0 0.0
    %1442 = vmatpush1.msra.mxu0 0.0
    %1443 = vmatprep.subr.mxu0 0.0
    %1444 = vmatpush1.msra.mxu0 0.0
    %1445 = vmatprep.subr.mxu0 0.0
    %1446 = vmatpush1.msra.mxu0 0.0
    %1447 = vmatprep.subr.mxu0 0.0
    %1448 = vmatpush1.msra.mxu0 0.0
    %1449 = vmatprep.subr.mxu0 0.0
    %1450 = vmatpush1.msra.mxu0 0.0
    %1451 = vmatprep.subr.mxu0 0.0
    %1452 = vmatpush1.msra.mxu0 0.0
    %1453 = vmatprep.mubr.f32.mxu0 0.0
    %1454 = vmatmul.mubr.f32.gmra.mrb[0].mxu0 %v815
    %v1455 = vpop.f32.mrb[0].mxu0
    %v1456 = vadd.f32 %v1314, %v1455
    %v1457 = vpop.f32.mrb[0].mxu0
    %1458 = vdwg.mxu0
    %v1459 = vadd.f32 %v1177, %v1385
    %v1460 = vxor.u32 %v1459, 2147483648
    %v1461 = vmul.f32 %v1460, 1.442695
    %v1462 = vpow.pop %v1461
    %v1463 = vadd.f32 %v1462, 1.0
    %v1464 = vrcp.pop %v1463
    %v1465 = vmul.f32 1.0, %v1464
    %v1466 = vadd.f32 %v1179, %v1387
    %v1467 = vxor.u32 %v1466, 2147483648
    %v1468 = vmul.f32 %v1467, 1.442695
    %v1469 = vpow.pop %v1468
    %v1470 = vadd.f32 %v1469, 1.0
    %v1471 = vrcp.pop %v1470
    %v1472 = vmul.f32 1.0, %v1471
    %v1473 = vmul.f32 %v1465, %v1456
    %v1474 = vadd.f32 %v1248, %v1473
    %v1475 = vtanh.pop %v1474
    %v1476 = vsub.f32 1.0, %v1472
    %v1477 = vmul.f32 %v1476, %v1475
    %v1478 = vmul.f32 %v1472, %v815
    %v1479 = vadd.f32 %v1477, %v1478
    %1480 = vmatprep.subr.mxu0 %v817
    %1481 = vmatpush1.msra.mxu0 %v816
    %1482 = vmatprep.subr.mxu0 %v820
    %1483 = vmatpush1.msra.mxu0 %v819
    %1484 = vmatprep.subr.mxu0 %v823
    %1485 = vmatpush1.msra.mxu0 %v822
    %1486 = vmatprep.subr.mxu0 %v826
    %1487 = vmatpush1.msra.mxu0 %v825
    %1488 = vmatprep.subr.mxu0 %v829
    %1489 = vmatpush1.msra.mxu0 %v828
    %1490 = vmatprep.subr.mxu0 %v832
    %1491 = vmatpush1.msra.mxu0 %v831
    %1492 = vmatprep.subr.mxu0 %v835
    %1493 = vmatpush1.msra.mxu0 %v834
    %1494 = vmatprep.subr.mxu0 %v838
    %1495 = vmatpush1.msra.mxu0 %v837
    %1496 = vmatprep.subr.mxu0 %v841
    %1497 = vmatpush1.msra.mxu0 %v840
    %1498 = vmatprep.subr.mxu0 %v844
    %1499 = vmatpush1.msra.mxu0 %v843
    %1500 = vmatprep.subr.mxu0 %v847
    %1501 = vmatpush1.msra.mxu0 %v846
    %1502 = vmatprep.subr.mxu0 %v850
    %1503 = vmatpush1.msra.mxu0 %v849
    %1504 = vmatprep.subr.mxu0 %v853
    %1505 = vmatpush1.msra.mxu0 %v852
    %1506 = vmatprep.subr.mxu0 %v856
    %1507 = vmatpush1.msra.mxu0 %v855
    %1508 = vmatprep.subr.mxu0 %v859
    %1509 = vmatpush1.msra.mxu0 %v858
    %1510 = vmatprep.subr.mxu0 %v862
    %1511 = vmatpush1.msra.mxu0 %v861
    %1512 = vmatprep.subr.mxu0 0.0
    %1513 = vmatpush1.msra.mxu0 0.0
    %1514 = vmatprep.subr.mxu0 0.0
    %1515 = vmatpush1.msra.mxu0 0.0
    %1516 = vmatprep.subr.mxu0 0.0
    %1517 = vmatpush1.msra.mxu0 0.0
    %1518 = vmatprep.subr.mxu0 0.0
    %1519 = vmatpush1.msra.mxu0 0.0
    %1520 = vmatprep.subr.mxu0 0.0
    %1521 = vmatpush1.msra.mxu0 0.0
    %1522 = vmatprep.subr.mxu0 0.0
    %1523 = vmatpush1.msra.mxu0 0.0
    %1524 = vmatprep.subr.mxu0 0.0
    %1525 = vmatpush1.msra.mxu0 0.0
    %1526 = vmatprep.subr.mxu0 0.0
    %1527 = vmatpush1.msra.mxu0 0.0
    %1528 = vmatprep.subr.mxu0 0.0
    %1529 = vmatpush1.msra.mxu0 0.0
    %1530 = vmatprep.subr.mxu0 0.0
    %1531 = vmatpush1.msra.mxu0 0.0
    %1532 = vmatprep.subr.mxu0 0.0
    %1533 = vmatpush1.msra.mxu0 0.0
    %1534 = vmatprep.subr.mxu0 0.0
    %1535 = vmatpush1.msra.mxu0 0.0
    %1536 = vmatprep.subr.mxu0 0.0
    %1537 = vmatpush1.msra.mxu0 0.0
    %1538 = vmatprep.subr.mxu0 0.0
    %1539 = vmatpush1.msra.mxu0 0.0
    %1540 = vmatprep.subr.mxu0 0.0
    %1541 = vmatpush1.msra.mxu0 0.0
    %1542 = vmatprep.subr.mxu0 0.0
    %1543 = vmatpush1.msra.mxu0 0.0
    %1544 = vmatprep.mubr.f32.mxu0 0.0
    %1545 = vmatmul.mubr.f32.gmra.mrb[0].mxu0 %v1042
    %v1546 = vpop.f32.mrb[0].mxu0
    %v1547 = vadd.f32 %v869, %v1546
    %v1548 = vpop.f32.mrb[0].mxu0
    %v1549 = vadd.f32 %v873, %v1548
    %1550 = vdwg.mxu0
    %1551 = vmatprep.subr.mxu0 0.0
    %1552 = vmatpush1.msra.mxu0 %v818
    %1553 = vmatprep.subr.mxu0 0.0
    %1554 = vmatpush1.msra.mxu0 %v821
    %1555 = vmatprep.subr.mxu0 0.0
    %1556 = vmatpush1.msra.mxu0 %v824
    %1557 = vmatprep.subr.mxu0 0.0
    %1558 = vmatpush1.msra.mxu0 %v827
    %1559 = vmatprep.subr.mxu0 0.0
    %1560 = vmatpush1.msra.mxu0 %v830
    %1561 = vmatprep.subr.mxu0 0.0
    %1562 = vmatpush1.msra.mxu0 %v833
    %1563 = vmatprep.subr.mxu0 0.0
    %1564 = vmatpush1.msra.mxu0 %v836
    %1565 = vmatprep.subr.mxu0 0.0
    %1566 = vmatpush1.msra.mxu0 %v839
    %1567 = vmatprep.subr.mxu0 0.0
    %1568 = vmatpush1.msra.mxu0 %v842
    %1569 = vmatprep.subr.mxu0 0.0
    %1570 = vmatpush1.msra.mxu0 %v845
    %1571 = vmatprep.subr.mxu0 0.0
    %1572 = vmatpush1.msra.mxu0 %v848
    %1573 = vmatprep.subr.mxu0 0.0
    %1574 = vmatpush1.msra.mxu0 %v851
    %1575 = vmatprep.subr.mxu0 0.0
    %1576 = vmatpush1.msra.mxu0 %v854
    %1577 = vmatprep.subr.mxu0 0.0
    %1578 = vmatpush1.msra.mxu0 %v857
    %1579 = vmatprep.subr.mxu0 0.0
    %1580 = vmatpush1.msra.mxu0 %v860
    %1581 = vmatprep.subr.mxu0 0.0
    %1582 = vmatpush1.msra.mxu0 %v863
    %1583 = vmatprep.subr.mxu0 0.0
    %1584 = vmatpush1.msra.mxu0 0.0
    %1585 = vmatprep.subr.mxu0 0.0
    %1586 = vmatpush1.msra.mxu0 0.0
    %1587 = vmatprep.subr.mxu0 0.0
    %1588 = vmatpush1.msra.mxu0 0.0
    %1589 = vmatprep.subr.mxu0 0.0
    %1590 = vmatpush1.msra.mxu0 0.0
    %1591 = vmatprep.subr.mxu0 0.0
    %1592 = vmatpush1.msra.mxu0 0.0
    %1593 = vmatprep.subr.mxu0 0.0
    %1594 = vmatpush1.msra.mxu0 0.0
    %1595 = vmatprep.subr.mxu0 0.0
    %1596 = vmatpush1.msra.mxu0 0.0
    %1597 = vmatprep.subr.mxu0 0.0
    %1598 = vmatpush1.msra.mxu0 0.0
    %1599 = vmatprep.subr.mxu0 0.0
    %1600 = vmatpush1.msra.mxu0 0.0
    %1601 = vmatprep.subr.mxu0 0.0
    %1602 = vmatpush1.msra.mxu0 0.0
    %1603 = vmatprep.subr.mxu0 0.0
    %1604 = vmatpush1.msra.mxu0 0.0
    %1605 = vmatprep.subr.mxu0 0.0
    %1606 = vmatpush1.msra.mxu0 0.0
    %1607 = vmatprep.subr.mxu0 0.0
    %1608 = vmatpush1.msra.mxu0 0.0
    %1609 = vmatprep.subr.mxu0 0.0
    %1610 = vmatpush1.msra.mxu0 0.0
    %1611 = vmatprep.subr.mxu0 0.0
    %1612 = vmatpush1.msra.mxu0 0.0
    %1613 = vmatprep.subr.mxu0 0.0
    %1614 = vmatpush1.msra.mxu0 0.0
    %1615 = vmatprep.mubr.f32.mxu0 0.0
    %1616 = vmatmul.mubr.f32.gmra.mrb[0].mxu0 %v1042
    %v1617 = vpop.f32.mrb[0].mxu0
    %v1618 = vadd.f32 %v877, %v1617
    %v1619 = vpop.f32.mrb[0].mxu0
    %1620 = vdwg.mxu0
    %v1621 = vadd.f32 %v712, %v1547
    %v1622 = vxor.u32 %v1621, 2147483648
    %v1623 = vmul.f32 %v1622, 1.442695
    %v1624 = vpow.pop %v1623
    %v1625 = vadd.f32 %v1624, 1.0
    %v1626 = vrcp.pop %v1625
    %v1627 = vmul.f32 1.0, %v1626
    %v1628 = vadd.f32 %v714, %v1549
    %v1629 = vxor.u32 %v1628, 2147483648
    %v1630 = vmul.f32 %v1629, 1.442695
    %v1631 = vpow.pop %v1630
    %v1632 = vadd.f32 %v1631, 1.0
    %v1633 = vrcp.pop %v1632
    %v1634 = vmul.f32 1.0, %v1633
    %v1635 = vmul.f32 %v1627, %v1618
    %v1636 = vadd.f32 %v800, %v1635
    %v1637 = vtanh.pop %v1636
    %v1638 = vsub.f32 1.0, %v1634
    %v1639 = vmul.f32 %v1638, %v1637
    %v1640 = vmul.f32 %v1634, %v1042
    %v1641 = vadd.f32 %v1639, %v1640
    %1642 = vmatprep.subr.mxu0 %v1045
    %1643 = vmatpush1.msra.mxu0 %v1044
    %1644 = vmatprep.subr.mxu0 %v1048
    %1645 = vmatpush1.msra.mxu0 %v1047
    %1646 = vmatprep.subr.mxu0 %v1051
    %1647 = vmatpush1.msra.mxu0 %v1050
    %1648 = vmatprep.subr.mxu0 %v1054
    %1649 = vmatpush1.msra.mxu0 %v1053
    %1650 = vmatprep.subr.mxu0 %v1057
    %1651 = vmatpush1.msra.mxu0 %v1056
    %1652 = vmatprep.subr.mxu0 %v1060
    %1653 = vmatpush1.msra.mxu0 %v1059
    %1654 = vmatprep.subr.mxu0 %v1063
    %1655 = vmatpush1.msra.mxu0 %v1062
    %1656 = vmatprep.subr.mxu0 %v1066
    %1657 = vmatpush1.msra.mxu0 %v1065
    %1658 = vmatprep.subr.mxu0 %v1069
    %1659 = vmatpush1.msra.mxu0 %v1068
    %1660 = vmatprep.subr.mxu0 %v1072
    %1661 = vmatpush1.msra.mxu0 %v1071
    %1662 = vmatprep.subr.mxu0 %v1075
    %1663 = vmatpush1.msra.mxu0 %v1074
    %1664 = vmatprep.subr.mxu0 %v1078
    %1665 = vmatpush1.msra.mxu0 %v1077
    %1666 = vmatprep.subr.mxu0 %v1081
    %1667 = vmatpush1.msra.mxu0 %v1080
    %1668 = vmatprep.subr.mxu0 %v1084
    %1669 = vmatpush1.msra.mxu0 %v1083
    %1670 = vmatprep.subr.mxu0 %v1087
    %1671 = vmatpush1.msra.mxu0 %v1086
    %1672 = vmatprep.subr.mxu0 %v1090
    %1673 = vmatpush1.msra.mxu0 %v1089
    %1674 = vmatprep.subr.mxu0 0.0
    %1675 = vmatpush1.msra.mxu0 0.0
    %1676 = vmatprep.subr.mxu0 0.0
    %1677 = vmatpush1.msra.mxu0 0.0
    %1678 = vmatprep.subr.mxu0 0.0
    %1679 = vmatpush1.msra.mxu0 0.0
    %1680 = vmatprep.subr.mxu0 0.0
    %1681 = vmatpush1.msra.mxu0 0.0
    %1682 = vmatprep.subr.mxu0 0.0
    %1683 = vmatpush1.msra.mxu0 0.0
    %1684 = vmatprep.subr.mxu0 0.0
    %1685 = vmatpush1.msra.mxu0 0.0
    %1686 = vmatprep.subr.mxu0 0.0
    %1687 = vmatpush1.msra.mxu0 0.0
    %1688 = vmatprep.subr.mxu0 0.0
    %1689 = vmatpush1.msra.mxu0 0.0
    %1690 = vmatprep.subr.mxu0 0.0
    %1691 = vmatpush1.msra.mxu0 0.0
    %1692 = vmatprep.subr.mxu0 0.0
    %1693 = vmatpush1.msra.mxu0 0.0
    %1694 = vmatprep.subr.mxu0 0.0
    %1695 = vmatpush1.msra.mxu0 0.0
    %1696 = vmatprep.subr.mxu0 0.0
    %1697 = vmatpush1.msra.mxu0 0.0
    %1698 = vmatprep.subr.mxu0 0.0
    %1699 = vmatpush1.msra.mxu0 0.0
    %1700 = vmatprep.subr.mxu0 0.0
    %1701 = vmatpush1.msra.mxu0 0.0
    %1702 = vmatprep.subr.mxu0 0.0
    %1703 = vmatpush1.msra.mxu0 0.0
    %1704 = vmatprep.subr.mxu0 0.0
    %1705 = vmatpush1.msra.mxu0 0.0
    %1706 = vmatprep.mubr.f32.mxu0 0.0
    %1707 = vmatmul.mubr.f32.gmra.mrb[0].mxu0 %v1641
    %v1708 = vpop.f32.mrb[0].mxu0
    %v1709 = vadd.f32 %v1098, %v1708
    %v1710 = vpop.f32.mrb[0].mxu0
    %v1711 = vadd.f32 %v1102, %v1710
    %1712 = vdwg.mxu0
    %1713 = vmatprep.subr.mxu0 0.0
    %1714 = vmatpush1.msra.mxu0 %v1046
    %1715 = vmatprep.subr.mxu0 0.0
    %1716 = vmatpush1.msra.mxu0 %v1049
    %1717 = vmatprep.subr.mxu0 0.0
    %1718 = vmatpush1.msra.mxu0 %v1052
    %1719 = vmatprep.subr.mxu0 0.0
    %1720 = vmatpush1.msra.mxu0 %v1055
    %1721 = vmatprep.subr.mxu0 0.0
    %1722 = vmatpush1.msra.mxu0 %v1058
    %1723 = vmatprep.subr.mxu0 0.0
    %1724 = vmatpush1.msra.mxu0 %v1061
    %1725 = vmatprep.subr.mxu0 0.0
    %1726 = vmatpush1.msra.mxu0 %v1064
    %1727 = vmatprep.subr.mxu0 0.0
    %1728 = vmatpush1.msra.mxu0 %v1067
    %1729 = vmatprep.subr.mxu0 0.0
    %1730 = vmatpush1.msra.mxu0 %v1070
    %1731 = vmatprep.subr.mxu0 0.0
    %1732 = vmatpush1.msra.mxu0 %v1073
    %1733 = vmatprep.subr.mxu0 0.0
    %1734 = vmatpush1.msra.mxu0 %v1076
    %1735 = vmatprep.subr.mxu0 0.0
    %1736 = vmatpush1.msra.mxu0 %v1079
    %1737 = vmatprep.subr.mxu0 0.0
    %1738 = vmatpush1.msra.mxu0 %v1082
    %1739 = vmatprep.subr.mxu0 0.0
    %1740 = vmatpush1.msra.mxu0 %v1085
    %1741 = vmatprep.subr.mxu0 0.0
    %1742 = vmatpush1.msra.mxu0 %v1088
    %1743 = vmatprep.subr.mxu0 0.0
    %1744 = vmatpush1.msra.mxu0 %v1091
    %1745 = vmatprep.subr.mxu0 0.0
    %1746 = vmatpush1.msra.mxu0 0.0
    %1747 = vmatprep.subr.mxu0 0.0
    %1748 = vmatpush1.msra.mxu0 0.0
    %1749 = vmatprep.subr.mxu0 0.0
    %1750 = vmatpush1.msra.mxu0 0.0
    %1751 = vmatprep.subr.mxu0 0.0
    %1752 = vmatpush1.msra.mxu0 0.0
    %1753 = vmatprep.subr.mxu0 0.0
    %1754 = vmatpush1.msra.mxu0 0.0
    %1755 = vmatprep.subr.mxu0 0.0
    %1756 = vmatpush1.msra.mxu0 0.0
    %1757 = vmatprep.subr.mxu0 0.0
    %1758 = vmatpush1.msra.mxu0 0.0
    %1759 = vmatprep.subr.mxu0 0.0
    %1760 = vmatpush1.msra.mxu0 0.0
    %1761 = vmatprep.subr.mxu0 0.0
    %1762 = vmatpush1.msra.mxu0 0.0
    %1763 = vmatprep.subr.mxu0 0.0
    %1764 = vmatpush1.msra.mxu0 0.0
    %1765 = vmatprep.subr.mxu0 0.0
    %1766 = vmatpush1.msra.mxu0 0.0
    %1767 = vmatprep.subr.mxu0 0.0
    %1768 = vmatpush1.msra.mxu0 0.0
    %1769 = vmatprep.subr.mxu0 0.0
    %1770 = vmatpush1.msra.mxu0 0.0
    %1771 = vmatprep.subr.mxu0 0.0
    %1772 = vmatpush1.msra.mxu0 0.0
    %1773 = vmatprep.subr.mxu0 0.0
    %1774 = vmatpush1.msra.mxu0 0.0
    %1775 = vmatprep.subr.mxu0 0.0
    %1776 = vmatpush1.msra.mxu0 0.0
    %1777 = vmatprep.mubr.f32.mxu0 0.0
    %1778 = vmatmul.mubr.f32.gmra.mrb[0].mxu0 %v1641
    %v1779 = vpop.f32.mrb[0].mxu0
    %v1780 = vadd.f32 %v1106, %v1779
    %v1781 = vpop.f32.mrb[0].mxu0
    %1782 = vdwg.mxu0
    %1783 = vmatprep.subr.mxu0 %v1253
    %1784 = vmatpush1.msra.mxu0 %v1252
    %1785 = vmatprep.subr.mxu0 %v1256
    %1786 = vmatpush1.msra.mxu0 %v1255
    %1787 = vmatprep.subr.mxu0 %v1259
    %1788 = vmatpush1.msra.mxu0 %v1258
    %1789 = vmatprep.subr.mxu0 %v1262
    %1790 = vmatpush1.msra.mxu0 %v1261
    %1791 = vmatprep.subr.mxu0 %v1265
    %1792 = vmatpush1.msra.mxu0 %v1264
    %1793 = vmatprep.subr.mxu0 %v1268
    %1794 = vmatpush1.msra.mxu0 %v1267
    %1795 = vmatprep.subr.mxu0 %v1271
    %1796 = vmatpush1.msra.mxu0 %v1270
    %1797 = vmatprep.subr.mxu0 %v1274
    %1798 = vmatpush1.msra.mxu0 %v1273
    %1799 = vmatprep.subr.mxu0 %v1277
    %1800 = vmatpush1.msra.mxu0 %v1276
    %1801 = vmatprep.subr.mxu0 %v1280
    %1802 = vmatpush1.msra.mxu0 %v1279
    %1803 = vmatprep.subr.mxu0 %v1283
    %1804 = vmatpush1.msra.mxu0 %v1282
    %1805 = vmatprep.subr.mxu0 %v1286
    %1806 = vmatpush1.msra.mxu0 %v1285
    %1807 = vmatprep.subr.mxu0 %v1289
    %1808 = vmatpush1.msra.mxu0 %v1288
    %1809 = vmatprep.subr.mxu0 %v1292
    %1810 = vmatpush1.msra.mxu0 %v1291
    %1811 = vmatprep.subr.mxu0 %v1295
    %1812 = vmatpush1.msra.mxu0 %v1294
    %1813 = vmatprep.subr.mxu0 %v1298
    %1814 = vmatpush1.msra.mxu0 %v1297
    %1815 = vmatprep.subr.mxu0 0.0
    %1816 = vmatpush1.msra.mxu0 0.0
    %1817 = vmatprep.subr.mxu0 0.0
    %1818 = vmatpush1.msra.mxu0 0.0
    %1819 = vmatprep.subr.mxu0 0.0
    %1820 = vmatpush1.msra.mxu0 0.0
    %1821 = vmatprep.subr.mxu0 0.0
    %1822 = vmatpush1.msra.mxu0 0.0
    %1823 = vmatprep.subr.mxu0 0.0
    %1824 = vmatpush1.msra.mxu0 0.0
    %1825 = vmatprep.subr.mxu0 0.0
    %1826 = vmatpush1.msra.mxu0 0.0
    %1827 = vmatprep.subr.mxu0 0.0
    %1828 = vmatpush1.msra.mxu0 0.0
    %1829 = vmatprep.subr.mxu0 0.0
    %1830 = vmatpush1.msra.mxu0 0.0
    %1831 = vmatprep.subr.mxu0 0.0
    %1832 = vmatpush1.msra.mxu0 0.0
    %1833 = vmatprep.subr.mxu0 0.0
    %1834 = vmatpush1.msra.mxu0 0.0
    %1835 = vmatprep.subr.mxu0 0.0
    %1836 = vmatpush1.msra.mxu0 0.0
    %1837 = vmatprep.subr.mxu0 0.0
    %1838 = vmatpush1.msra.mxu0 0.0
    %1839 = vmatprep.subr.mxu0 0.0
    %1840 = vmatpush1.msra.mxu0 0.0
    %1841 = vmatprep.subr.mxu0 0.0
    %1842 = vmatpush1.msra.mxu0 0.0
    %1843 = vmatprep.subr.mxu0 0.0
    %1844 = vmatpush1.msra.mxu0 0.0
    %1845 = vmatprep.subr.mxu0 0.0
    %1846 = vmatpush1.msra.mxu0 0.0
    %1847 = vmatprep.mubr.f32.mxu0 0.0
    %1848 = vmatmul.mubr.f32.gmra.mrb[0].mxu0 %v1479
    %v1849 = vpop.f32.mrb[0].mxu0
    %v1850 = vadd.f32 %v1306, %v1849
    %v1851 = vpop.f32.mrb[0].mxu0
    %v1852 = vadd.f32 %v1310, %v1851
    %1853 = vdwg.mxu0
    %1854 = vmatprep.subr.mxu0 0.0
    %1855 = vmatpush1.msra.mxu0 %v1254
    %1856 = vmatprep.subr.mxu0 0.0
    %1857 = vmatpush1.msra.mxu0 %v1257
    %1858 = vmatprep.subr.mxu0 0.0
    %1859 = vmatpush1.msra.mxu0 %v1260
    %1860 = vmatprep.subr.mxu0 0.0
    %1861 = vmatpush1.msra.mxu0 %v1263
    %1862 = vmatprep.subr.mxu0 0.0
    %1863 = vmatpush1.msra.mxu0 %v1266
    %1864 = vmatprep.subr.mxu0 0.0
    %1865 = vmatpush1.msra.mxu0 %v1269
    %1866 = vmatprep.subr.mxu0 0.0
    %1867 = vmatpush1.msra.mxu0 %v1272
    %1868 = vmatprep.subr.mxu0 0.0
    %1869 = vmatpush1.msra.mxu0 %v1275
    %1870 = vmatprep.subr.mxu0 0.0
    %1871 = vmatpush1.msra.mxu0 %v1278
    %1872 = vmatprep.subr.mxu0 0.0
    %1873 = vmatpush1.msra.mxu0 %v1281
    %1874 = vmatprep.subr.mxu0 0.0
    %1875 = vmatpush1.msra.mxu0 %v1284
    %1876 = vmatprep.subr.mxu0 0.0
    %1877 = vmatpush1.msra.mxu0 %v1287
    %1878 = vmatprep.subr.mxu0 0.0
    %1879 = vmatpush1.msra.mxu0 %v1290
    %1880 = vmatprep.subr.mxu0 0.0
    %1881 = vmatpush1.msra.mxu0 %v1293
    %1882 = vmatprep.subr.mxu0 0.0
    %1883 = vmatpush1.msra.mxu0 %v1296
    %1884 = vmatprep.subr.mxu0 0.0
    %1885 = vmatpush1.msra.mxu0 %v1299
    %1886 = vmatprep.subr.mxu0 0.0
    %1887 = vmatpush1.msra.mxu0 0.0
    %1888 = vmatprep.subr.mxu0 0.0
    %1889 = vmatpush1.msra.mxu0 0.0
    %1890 = vmatprep.subr.mxu0 0.0
    %1891 = vmatpush1.msra.mxu0 0.0
    %1892 = vmatprep.subr.mxu0 0.0
    %1893 = vmatpush1.msra.mxu0 0.0
    %1894 = vmatprep.subr.mxu0 0.0
    %1895 = vmatpush1.msra.mxu0 0.0
    %1896 = vmatprep.subr.mxu0 0.0
    %1897 = vmatpush1.msra.mxu0 0.0
    %1898 = vmatprep.subr.mxu0 0.0
    %1899 = vmatpush1.msra.mxu0 0.0
    %1900 = vmatprep.subr.mxu0 0.0
    %1901 = vmatpush1.msra.mxu0 0.0
    %1902 = vmatprep.subr.mxu0 0.0
    %1903 = vmatpush1.msra.mxu0 0.0
    %1904 = vmatprep.subr.mxu0 0.0
    %1905 = vmatpush1.msra.mxu0 0.0
    %1906 = vmatprep.subr.mxu0 0.0
    %1907 = vmatpush1.msra.mxu0 0.0
    %1908 = vmatprep.subr.mxu0 0.0
    %1909 = vmatpush1.msra.mxu0 0.0
    %1910 = vmatprep.subr.mxu0 0.0
    %1911 = vmatpush1.msra.mxu0 0.0
    %1912 = vmatprep.subr.mxu0 0.0
    %1913 = vmatpush1.msra.mxu0 0.0
    %1914 = vmatprep.subr.mxu0 0.0
    %1915 = vmatpush1.msra.mxu0 0.0
    %1916 = vmatprep.subr.mxu0 0.0
    %1917 = vmatpush1.msra.mxu0 0.0
    %1918 = vmatprep.mubr.f32.mxu0 0.0
    %1919 = vmatmul.mubr.f32.gmra.mrb[0].mxu0 %v1479
    %v1920 = vpop.f32.mrb[0].mxu0
    %v1921 = vadd.f32 %v1314, %v1920
    %v1922 = vpop.f32.mrb[0].mxu0
    %1923 = vdwg.mxu0
    %v1924 = vadd.f32 %v1709, %v1850
    %v1925 = vxor.u32 %v1924, 2147483648
    %v1926 = vmul.f32 %v1925, 1.442695
    %v1927 = vpow.pop %v1926
    %v1928 = vadd.f32 %v1927, 1.0
    %v1929 = vrcp.pop %v1928
    %v1930 = vmul.f32 1.0, %v1929
    %v1931 = vadd.f32 %v1711, %v1852
    %v1932 = vxor.u32 %v1931, 2147483648
    %v1933 = vmul.f32 %v1932, 1.442695
    %v1934 = vpow.pop %v1933
    %v1935 = vadd.f32 %v1934, 1.0
    %v1936 = vrcp.pop %v1935
    %v1937 = vmul.f32 1.0, %v1936
    %v1938 = vmul.f32 %v1930, %v1921
    %v1939 = vadd.f32 %v1780, %v1938
    %v1940 = vtanh.pop %v1939
    %v1941 = vsub.f32 1.0, %v1937
    %v1942 = vmul.f32 %v1941, %v1940
    %v1943 = vmul.f32 %v1937, %v1479
    %v1944 = vadd.f32 %v1942, %v1943
    %1945 = vmatprep.subr.mxu0 %v817
    %1946 = vmatpush1.msra.mxu0 %v816
    %1947 = vmatprep.subr.mxu0 %v820
    %1948 = vmatpush1.msra.mxu0 %v819
    %1949 = vmatprep.subr.mxu0 %v823
    %1950 = vmatpush1.msra.mxu0 %v822
    %1951 = vmatprep.subr.mxu0 %v826
    %1952 = vmatpush1.msra.mxu0 %v825
    %1953 = vmatprep.subr.mxu0 %v829
    %1954 = vmatpush1.msra.mxu0 %v828
    %1955 = vmatprep.subr.mxu0 %v832
    %1956 = vmatpush1.msra.mxu0 %v831
    %1957 = vmatprep.subr.mxu0 %v835
    %1958 = vmatpush1.msra.mxu0 %v834
    %1959 = vmatprep.subr.mxu0 %v838
    %1960 = vmatpush1.msra.mxu0 %v837
    %1961 = vmatprep.subr.mxu0 %v841
    %1962 = vmatpush1.msra.mxu0 %v840
    %1963 = vmatprep.subr.mxu0 %v844
    %1964 = vmatpush1.msra.mxu0 %v843
    %1965 = vmatprep.subr.mxu0 %v847
    %1966 = vmatpush1.msra.mxu0 %v846
    %1967 = vmatprep.subr.mxu0 %v850
    %1968 = vmatpush1.msra.mxu0 %v849
    %1969 = vmatprep.subr.mxu0 %v853
    %1970 = vmatpush1.msra.mxu0 %v852
    %1971 = vmatprep.subr.mxu0 %v856
    %1972 = vmatpush1.msra.mxu0 %v855
    %1973 = vmatprep.subr.mxu0 %v859
    %1974 = vmatpush1.msra.mxu0 %v858
    %1975 = vmatprep.subr.mxu0 %v862
    %1976 = vmatpush1.msra.mxu0 %v861
    %1977 = vmatprep.subr.mxu0 0.0
    %1978 = vmatpush1.msra.mxu0 0.0
    %1979 = vmatprep.subr.mxu0 0.0
    %1980 = vmatpush1.msra.mxu0 0.0
    %1981 = vmatprep.subr.mxu0 0.0
    %1982 = vmatpush1.msra.mxu0 0.0
    %1983 = vmatprep.subr.mxu0 0.0
    %1984 = vmatpush1.msra.mxu0 0.0
    %1985 = vmatprep.subr.mxu0 0.0
    %1986 = vmatpush1.msra.mxu0 0.0
    %1987 = vmatprep.subr.mxu0 0.0
    %1988 = vmatpush1.msra.mxu0 0.0
    %1989 = vmatprep.subr.mxu0 0.0
    %1990 = vmatpush1.msra.mxu0 0.0
    %1991 = vmatprep.subr.mxu0 0.0
    %1992 = vmatpush1.msra.mxu0 0.0
    %1993 = vmatprep.subr.mxu0 0.0
    %1994 = vmatpush1.msra.mxu0 0.0
    %1995 = vmatprep.subr.mxu0 0.0
    %1996 = vmatpush1.msra.mxu0 0.0
    %1997 = vmatprep.subr.mxu0 0.0
    %1998 = vmatpush1.msra.mxu0 0.0
    %1999 = vmatprep.subr.mxu0 0.0
    %2000 = vmatpush1.msra.mxu0 0.0
    %2001 = vmatprep.subr.mxu0 0.0
    %2002 = vmatpush1.msra.mxu0 0.0
    %2003 = vmatprep.subr.mxu0 0.0
    %2004 = vmatpush1.msra.mxu0 0.0
    %2005 = vmatprep.subr.mxu0 0.0
    %2006 = vmatpush1.msra.mxu0 0.0
    %2007 = vmatprep.subr.mxu0 0.0
    %2008 = vmatpush1.msra.mxu0 0.0
    %2009 = vmatprep.mubr.f32.mxu0 0.0
    %2010 = vmatmul.mubr.f32.gmra.mrb[0].mxu0 %v1641
    %v2011 = vpop.f32.mrb[0].mxu0
    %v2012 = vadd.f32 %v869, %v2011
    %v2013 = vpop.f32.mrb[0].mxu0
    %v2014 = vadd.f32 %v873, %v2013
    %2015 = vdwg.mxu0
    %2016 = vmatprep.subr.mxu0 0.0
    %2017 = vmatpush1.msra.mxu0 %v818
    %2018 = vmatprep.subr.mxu0 0.0
    %2019 = vmatpush1.msra.mxu0 %v821
    %2020 = vmatprep.subr.mxu0 0.0
    %2021 = vmatpush1.msra.mxu0 %v824
    %2022 = vmatprep.subr.mxu0 0.0
    %2023 = vmatpush1.msra.mxu0 %v827
    %2024 = vmatprep.subr.mxu0 0.0
    %2025 = vmatpush1.msra.mxu0 %v830
    %2026 = vmatprep.subr.mxu0 0.0
    %2027 = vmatpush1.msra.mxu0 %v833
    %2028 = vmatprep.subr.mxu0 0.0
    %2029 = vmatpush1.msra.mxu0 %v836
    %2030 = vmatprep.subr.mxu0 0.0
    %2031 = vmatpush1.msra.mxu0 %v839
    %2032 = vmatprep.subr.mxu0 0.0
    %2033 = vmatpush1.msra.mxu0 %v842
    %2034 = vmatprep.subr.mxu0 0.0
    %2035 = vmatpush1.msra.mxu0 %v845
    %2036 = vmatprep.subr.mxu0 0.0
    %2037 = vmatpush1.msra.mxu0 %v848
    %2038 = vmatprep.subr.mxu0 0.0
    %2039 = vmatpush1.msra.mxu0 %v851
    %2040 = vmatprep.subr.mxu0 0.0
    %2041 = vmatpush1.msra.mxu0 %v854
    %2042 = vmatprep.subr.mxu0 0.0
    %2043 = vmatpush1.msra.mxu0 %v857
    %2044 = vmatprep.subr.mxu0 0.0
    %2045 = vmatpush1.msra.mxu0 %v860
    %2046 = vmatprep.subr.mxu0 0.0
    %2047 = vmatpush1.msra.mxu0 %v863
    %2048 = vmatprep.subr.mxu0 0.0
    %2049 = vmatpush1.msra.mxu0 0.0
    %2050 = vmatprep.subr.mxu0 0.0
    %2051 = vmatpush1.msra.mxu0 0.0
    %2052 = vmatprep.subr.mxu0 0.0
    %2053 = vmatpush1.msra.mxu0 0.0
    %2054 = vmatprep.subr.mxu0 0.0
    %2055 = vmatpush1.msra.mxu0 0.0
    %2056 = vmatprep.subr.mxu0 0.0
    %2057 = vmatpush1.msra.mxu0 0.0
    %2058 = vmatprep.subr.mxu0 0.0
    %2059 = vmatpush1.msra.mxu0 0.0
    %2060 = vmatprep.subr.mxu0 0.0
    %2061 = vmatpush1.msra.mxu0 0.0
    %2062 = vmatprep.subr.mxu0 0.0
    %2063 = vmatpush1.msra.mxu0 0.0
    %2064 = vmatprep.subr.mxu0 0.0
    %2065 = vmatpush1.msra.mxu0 0.0
    %2066 = vmatprep.subr.mxu0 0.0
    %2067 = vmatpush1.msra.mxu0 0.0
    %2068 = vmatprep.subr.mxu0 0.0
    %2069 = vmatpush1.msra.mxu0 0.0
    %2070 = vmatprep.subr.mxu0 0.0
    %2071 = vmatpush1.msra.mxu0 0.0
    %2072 = vmatprep.subr.mxu0 0.0
    %2073 = vmatpush1.msra.mxu0 0.0
    %2074 = vmatprep.subr.mxu0 0.0
    %2075 = vmatpush1.msra.mxu0 0.0
    %2076 = vmatprep.subr.mxu0 0.0
    %2077 = vmatpush1.msra.mxu0 0.0
    %2078 = vmatprep.subr.mxu0 0.0
    %2079 = vmatpush1.msra.mxu0 0.0
    %2080 = vmatprep.mubr.f32.mxu0 0.0
    %2081 = vmatmul.mubr.f32.gmra.mrb[0].mxu0 %v1641
    %v2082 = vpop.f32.mrb[0].mxu0
    %v2083 = vadd.f32 %v877, %v2082
    %v2084 = vpop.f32.mrb[0].mxu0
    %2085 = vdwg.mxu0
    %v2086 = vadd.f32 %v718, %v2012
    %v2087 = vxor.u32 %v2086, 2147483648
    %v2088 = vmul.f32 %v2087, 1.442695
    %v2089 = vpow.pop %v2088
    %v2090 = vadd.f32 %v2089, 1.0
    %v2091 = vrcp.pop %v2090
    %v2092 = vmul.f32 1.0, %v2091
    %v2093 = vadd.f32 %v720, %v2014
    %v2094 = vxor.u32 %v2093, 2147483648
    %v2095 = vmul.f32 %v2094, 1.442695
    %v2096 = vpow.pop %v2095
    %v2097 = vadd.f32 %v2096, 1.0
    %v2098 = vrcp.pop %v2097
    %v2099 = vmul.f32 1.0, %v2098
    %v2100 = vmul.f32 %v2092, %v2083
    %v2101 = vadd.f32 %v805, %v2100
    %v2102 = vtanh.pop %v2101
    %v2103 = vsub.f32 1.0, %v2099
    %v2104 = vmul.f32 %v2103, %v2102
    %v2105 = vmul.f32 %v2099, %v1641
    %v2106 = vadd.f32 %v2104, %v2105
    %2107 = vmatprep.subr.mxu0 %v1045
    %2108 = vmatpush1.msra.mxu0 %v1044
    %2109 = vmatprep.subr.mxu0 %v1048
    %2110 = vmatpush1.msra.mxu0 %v1047
    %2111 = vmatprep.subr.mxu0 %v1051
    %2112 = vmatpush1.msra.mxu0 %v1050
    %2113 = vmatprep.subr.mxu0 %v1054
    %2114 = vmatpush1.msra.mxu0 %v1053
    %2115 = vmatprep.subr.mxu0 %v1057
    %2116 = vmatpush1.msra.mxu0 %v1056
    %2117 = vmatprep.subr.mxu0 %v1060
    %2118 = vmatpush1.msra.mxu0 %v1059
    %2119 = vmatprep.subr.mxu0 %v1063
    %2120 = vmatpush1.msra.mxu0 %v1062
    %2121 = vmatprep.subr.mxu0 %v1066
    %2122 = vmatpush1.msra.mxu0 %v1065
    %2123 = vmatprep.subr.mxu0 %v1069
    %2124 = vmatpush1.msra.mxu0 %v1068
    %2125 = vmatprep.subr.mxu0 %v1072
    %2126 = vmatpush1.msra.mxu0 %v1071
    %2127 = vmatprep.subr.mxu0 %v1075
    %2128 = vmatpush1.msra.mxu0 %v1074
    %2129 = vmatprep.subr.mxu0 %v1078
    %2130 = vmatpush1.msra.mxu0 %v1077
    %2131 = vmatprep.subr.mxu0 %v1081
    %2132 = vmatpush1.msra.mxu0 %v1080
    %2133 = vmatprep.subr.mxu0 %v1084
    %2134 = vmatpush1.msra.mxu0 %v1083
    %2135 = vmatprep.subr.mxu0 %v1087
    %2136 = vmatpush1.msra.mxu0 %v1086
    %2137 = vmatprep.subr.mxu0 %v1090
    %2138 = vmatpush1.msra.mxu0 %v1089
    %2139 = vmatprep.subr.mxu0 0.0
    %2140 = vmatpush1.msra.mxu0 0.0
    %2141 = vmatprep.subr.mxu0 0.0
    %2142 = vmatpush1.msra.mxu0 0.0
    %2143 = vmatprep.subr.mxu0 0.0
    %2144 = vmatpush1.msra.mxu0 0.0
    %2145 = vmatprep.subr.mxu0 0.0
    %2146 = vmatpush1.msra.mxu0 0.0
    %2147 = vmatprep.subr.mxu0 0.0
    %2148 = vmatpush1.msra.mxu0 0.0
    %2149 = vmatprep.subr.mxu0 0.0
    %2150 = vmatpush1.msra.mxu0 0.0
    %2151 = vmatprep.subr.mxu0 0.0
    %2152 = vmatpush1.msra.mxu0 0.0
    %2153 = vmatprep.subr.mxu0 0.0
    %2154 = vmatpush1.msra.mxu0 0.0
    %2155 = vmatprep.subr.mxu0 0.0
    %2156 = vmatpush1.msra.mxu0 0.0
    %2157 = vmatprep.subr.mxu0 0.0
    %2158 = vmatpush1.msra.mxu0 0.0
    %2159 = vmatprep.subr.mxu0 0.0
    %2160 = vmatpush1.msra.mxu0 0.0
    %2161 = vmatprep.subr.mxu0 0.0
    %2162 = vmatpush1.msra.mxu0 0.0
    %2163 = vmatprep.subr.mxu0 0.0
    %2164 = vmatpush1.msra.mxu0 0.0
    %2165 = vmatprep.subr.mxu0 0.0
    %2166 = vmatpush1.msra.mxu0 0.0
    %2167 = vmatprep.subr.mxu0 0.0
    %2168 = vmatpush1.msra.mxu0 0.0
    %2169 = vmatprep.subr.mxu0 0.0
    %2170 = vmatpush1.msra.mxu0 0.0
    %2171 = vmatprep.mubr.f32.mxu0 0.0
    %2172 = vmatmul.mubr.f32.gmra.mrb[0].mxu0 %v2106
    %v2173 = vpop.f32.mrb[0].mxu0
    %v2174 = vadd.f32 %v1098, %v2173
    %v2175 = vpop.f32.mrb[0].mxu0
    %v2176 = vadd.f32 %v1102, %v2175
    %2177 = vdwg.mxu0
    %2178 = vmatprep.subr.mxu0 0.0
    %2179 = vmatpush1.msra.mxu0 %v1046
    %2180 = vmatprep.subr.mxu0 0.0
    %2181 = vmatpush1.msra.mxu0 %v1049
    %2182 = vmatprep.subr.mxu0 0.0
    %2183 = vmatpush1.msra.mxu0 %v1052
    %2184 = vmatprep.subr.mxu0 0.0
    %2185 = vmatpush1.msra.mxu0 %v1055
    %2186 = vmatprep.subr.mxu0 0.0
    %2187 = vmatpush1.msra.mxu0 %v1058
    %2188 = vmatprep.subr.mxu0 0.0
    %2189 = vmatpush1.msra.mxu0 %v1061
    %2190 = vmatprep.subr.mxu0 0.0
    %2191 = vmatpush1.msra.mxu0 %v1064
    %2192 = vmatprep.subr.mxu0 0.0
    %2193 = vmatpush1.msra.mxu0 %v1067
    %2194 = vmatprep.subr.mxu0 0.0
    %2195 = vmatpush1.msra.mxu0 %v1070
    %2196 = vmatprep.subr.mxu0 0.0
    %2197 = vmatpush1.msra.mxu0 %v1073
    %2198 = vmatprep.subr.mxu0 0.0
    %2199 = vmatpush1.msra.mxu0 %v1076
    %2200 = vmatprep.subr.mxu0 0.0
    %2201 = vmatpush1.msra.mxu0 %v1079
    %2202 = vmatprep.subr.mxu0 0.0
    %2203 = vmatpush1.msra.mxu0 %v1082
    %2204 = vmatprep.subr.mxu0 0.0
    %2205 = vmatpush1.msra.mxu0 %v1085
    %2206 = vmatprep.subr.mxu0 0.0
    %2207 = vmatpush1.msra.mxu0 %v1088
    %2208 = vmatprep.subr.mxu0 0.0
    %2209 = vmatpush1.msra.mxu0 %v1091
    %2210 = vmatprep.subr.mxu0 0.0
    %2211 = vmatpush1.msra.mxu0 0.0
    %2212 = vmatprep.subr.mxu0 0.0
    %2213 = vmatpush1.msra.mxu0 0.0
    %2214 = vmatprep.subr.mxu0 0.0
    %2215 = vmatpush1.msra.mxu0 0.0
    %2216 = vmatprep.subr.mxu0 0.0
    %2217 = vmatpush1.msra.mxu0 0.0
    %2218 = vmatprep.subr.mxu0 0.0
    %2219 = vmatpush1.msra.mxu0 0.0
    %2220 = vmatprep.subr.mxu0 0.0
    %2221 = vmatpush1.msra.mxu0 0.0
    %2222 = vmatprep.subr.mxu0 0.0
    %2223 = vmatpush1.msra.mxu0 0.0
    %2224 = vmatprep.subr.mxu0 0.0
    %2225 = vmatpush1.msra.mxu0 0.0
    %2226 = vmatprep.subr.mxu0 0.0
    %2227 = vmatpush1.msra.mxu0 0.0
    %2228 = vmatprep.subr.mxu0 0.0
    %2229 = vmatpush1.msra.mxu0 0.0
    %2230 = vmatprep.subr.mxu0 0.0
    %2231 = vmatpush1.msra.mxu0 0.0
    %2232 = vmatprep.subr.mxu0 0.0
    %2233 = vmatpush1.msra.mxu0 0.0
    %2234 = vmatprep.subr.mxu0 0.0
    %2235 = vmatpush1.msra.mxu0 0.0
    %2236 = vmatprep.subr.mxu0 0.0
    %2237 = vmatpush1.msra.mxu0 0.0
    %2238 = vmatprep.subr.mxu0 0.0
    %2239 = vmatpush1.msra.mxu0 0.0
    %2240 = vmatprep.subr.mxu0 0.0
    %2241 = vmatpush1.msra.mxu0 0.0
    %2242 = vmatprep.mubr.f32.mxu0 0.0
    %2243 = vmatmul.mubr.f32.gmra.mrb[0].mxu0 %v2106
    %v2244 = vpop.f32.mrb[0].mxu0
    %v2245 = vadd.f32 %v1106, %v2244
    %v2246 = vpop.f32.mrb[0].mxu0
    %2247 = vdwg.mxu0
    %2248 = vmatprep.subr.mxu0 %v1253
    %2249 = vmatpush1.msra.mxu0 %v1252
    %2250 = vmatprep.subr.mxu0 %v1256
    %2251 = vmatpush1.msra.mxu0 %v1255
    %2252 = vmatprep.subr.mxu0 %v1259
    %2253 = vmatpush1.msra.mxu0 %v1258
    %2254 = vmatprep.subr.mxu0 %v1262
    %2255 = vmatpush1.msra.mxu0 %v1261
    %2256 = vmatprep.subr.mxu0 %v1265
    %2257 = vmatpush1.msra.mxu0 %v1264
    %2258 = vmatprep.subr.mxu0 %v1268
    %2259 = vmatpush1.msra.mxu0 %v1267
    %2260 = vmatprep.subr.mxu0 %v1271
    %2261 = vmatpush1.msra.mxu0 %v1270
    %2262 = vmatprep.subr.mxu0 %v1274
    %2263 = vmatpush1.msra.mxu0 %v1273
    %2264 = vmatprep.subr.mxu0 %v1277
    %2265 = vmatpush1.msra.mxu0 %v1276
    %2266 = vmatprep.subr.mxu0 %v1280
    %2267 = vmatpush1.msra.mxu0 %v1279
    %2268 = vmatprep.subr.mxu0 %v1283
    %2269 = vmatpush1.msra.mxu0 %v1282
    %2270 = vmatprep.subr.mxu0 %v1286
    %2271 = vmatpush1.msra.mxu0 %v1285
    %2272 = vmatprep.subr.mxu0 %v1289
    %2273 = vmatpush1.msra.mxu0 %v1288
    %2274 = vmatprep.subr.mxu0 %v1292
    %2275 = vmatpush1.msra.mxu0 %v1291
    %2276 = vmatprep.subr.mxu0 %v1295
    %2277 = vmatpush1.msra.mxu0 %v1294
    %2278 = vmatprep.subr.mxu0 %v1298
    %2279 = vmatpush1.msra.mxu0 %v1297
    %2280 = vmatprep.subr.mxu0 0.0
    %2281 = vmatpush1.msra.mxu0 0.0
    %2282 = vmatprep.subr.mxu0 0.0
    %2283 = vmatpush1.msra.mxu0 0.0
    %2284 = vmatprep.subr.mxu0 0.0
    %2285 = vmatpush1.msra.mxu0 0.0
    %2286 = vmatprep.subr.mxu0 0.0
    %2287 = vmatpush1.msra.mxu0 0.0
    %2288 = vmatprep.subr.mxu0 0.0
    %2289 = vmatpush1.msra.mxu0 0.0
    %2290 = vmatprep.subr.mxu0 0.0
    %2291 = vmatpush1.msra.mxu0 0.0
    %2292 = vmatprep.subr.mxu0 0.0
    %2293 = vmatpush1.msra.mxu0 0.0
    %2294 = vmatprep.subr.mxu0 0.0
    %2295 = vmatpush1.msra.mxu0 0.0
    %2296 = vmatprep.subr.mxu0 0.0
    %2297 = vmatpush1.msra.mxu0 0.0
    %2298 = vmatprep.subr.mxu0 0.0
    %2299 = vmatpush1.msra.mxu0 0.0
    %2300 = vmatprep.subr.mxu0 0.0
    %2301 = vmatpush1.msra.mxu0 0.0
    %2302 = vmatprep.subr.mxu0 0.0
    %2303 = vmatpush1.msra.mxu0 0.0
    %2304 = vmatprep.subr.mxu0 0.0
    %2305 = vmatpush1.msra.mxu0 0.0
    %2306 = vmatprep.subr.mxu0 0.0
    %2307 = vmatpush1.msra.mxu0 0.0
    %2308 = vmatprep.subr.mxu0 0.0
    %2309 = vmatpush1.msra.mxu0 0.0
    %2310 = vmatprep.subr.mxu0 0.0
    %2311 = vmatpush1.msra.mxu0 0.0
    %2312 = vmatprep.mubr.f32.mxu0 0.0
    %2313 = vmatmul.mubr.f32.gmra.mrb[0].mxu0 %v1944
    %v2314 = vpop.f32.mrb[0].mxu0
    %v2315 = vadd.f32 %v1306, %v2314
    %v2316 = vpop.f32.mrb[0].mxu0
    %v2317 = vadd.f32 %v1310, %v2316
    %2318 = vdwg.mxu0
    %2319 = vmatprep.subr.mxu0 0.0
    %2320 = vmatpush1.msra.mxu0 %v1254
    %2321 = vmatprep.subr.mxu0 0.0
    %2322 = vmatpush1.msra.mxu0 %v1257
    %2323 = vmatprep.subr.mxu0 0.0
    %2324 = vmatpush1.msra.mxu0 %v1260
    %2325 = vmatprep.subr.mxu0 0.0
    %2326 = vmatpush1.msra.mxu0 %v1263
    %2327 = vmatprep.subr.mxu0 0.0
    %2328 = vmatpush1.msra.mxu0 %v1266
    %2329 = vmatprep.subr.mxu0 0.0
    %2330 = vmatpush1.msra.mxu0 %v1269
    %2331 = vmatprep.subr.mxu0 0.0
    %2332 = vmatpush1.msra.mxu0 %v1272
    %2333 = vmatprep.subr.mxu0 0.0
    %2334 = vmatpush1.msra.mxu0 %v1275
    %2335 = vmatprep.subr.mxu0 0.0
    %2336 = vmatpush1.msra.mxu0 %v1278
    %2337 = vmatprep.subr.mxu0 0.0
    %2338 = vmatpush1.msra.mxu0 %v1281
    %2339 = vmatprep.subr.mxu0 0.0
    %2340 = vmatpush1.msra.mxu0 %v1284
    %2341 = vmatprep.subr.mxu0 0.0
    %2342 = vmatpush1.msra.mxu0 %v1287
    %2343 = vmatprep.subr.mxu0 0.0
    %2344 = vmatpush1.msra.mxu0 %v1290
    %2345 = vmatprep.subr.mxu0 0.0
    %2346 = vmatpush1.msra.mxu0 %v1293
    %2347 = vmatprep.subr.mxu0 0.0
    %2348 = vmatpush1.msra.mxu0 %v1296
    %2349 = vmatprep.subr.mxu0 0.0
    %2350 = vmatpush1.msra.mxu0 %v1299
    %2351 = vmatprep.subr.mxu0 0.0
    %2352 = vmatpush1.msra.mxu0 0.0
    %2353 = vmatprep.subr.mxu0 0.0
    %2354 = vmatpush1.msra.mxu0 0.0
    %2355 = vmatprep.subr.mxu0 0.0
    %2356 = vmatpush1.msra.mxu0 0.0
    %2357 = vmatprep.subr.mxu0 0.0
    %2358 = vmatpush1.msra.mxu0 0.0
    %2359 = vmatprep.subr.mxu0 0.0
    %2360 = vmatpush1.msra.mxu0 0.0
    %2361 = vmatprep.subr.mxu0 0.0
    %2362 = vmatpush1.msra.mxu0 0.0
    %2363 = vmatprep.subr.mxu0 0.0
    %2364 = vmatpush1.msra.mxu0 0.0
    %2365 = vmatprep.subr.mxu0 0.0
    %2366 = vmatpush1.msra.mxu0 0.0
    %2367 = vmatprep.subr.mxu0 0.0
    %2368 = vmatpush1.msra.mxu0 0.0
    %2369 = vmatprep.subr.mxu0 0.0
    %2370 = vmatpush1.msra.mxu0 0.0
    %2371 = vmatprep.subr.mxu0 0.0
    %2372 = vmatpush1.msra.mxu0 0.0
    %2373 = vmatprep.subr.mxu0 0.0
    %2374 = vmatpush1.msra.mxu0 0.0
    %2375 = vmatprep.subr.mxu0 0.0
    %2376 = vmatpush1.msra.mxu0 0.0
    %2377 = vmatprep.subr.mxu0 0.0
    %2378 = vmatpush1.msra.mxu0 0.0
    %2379 = vmatprep.subr.mxu0 0.0
    %2380 = vmatpush1.msra.mxu0 0.0
    %2381 = vmatprep.subr.mxu0 0.0
    %2382 = vmatpush1.msra.mxu0 0.0
    %2383 = vmatprep.mubr.f32.mxu0 0.0
    %2384 = vmatmul.mubr.f32.gmra.mrb[0].mxu0 %v1944
    %v2385 = vpop.f32.mrb[0].mxu0
    %v2386 = vadd.f32 %v1314, %v2385
    %v2387 = vpop.f32.mrb[0].mxu0
    %2388 = vdwg.mxu0
    %v2389 = vadd.f32 %v2174, %v2315
    %v2390 = vxor.u32 %v2389, 2147483648
    %v2391 = vmul.f32 %v2390, 1.442695
    %v2392 = vpow.pop %v2391
    %v2393 = vadd.f32 %v2392, 1.0
    %v2394 = vrcp.pop %v2393
    %v2395 = vmul.f32 1.0, %v2394
    %v2396 = vadd.f32 %v2176, %v2317
    %v2397 = vxor.u32 %v2396, 2147483648
    %v2398 = vmul.f32 %v2397, 1.442695
    %v2399 = vpow.pop %v2398
    %v2400 = vadd.f32 %v2399, 1.0
    %v2401 = vrcp.pop %v2400
    %v2402 = vmul.f32 1.0, %v2401
    %v2403 = vmul.f32 %v2395, %v2386
    %v2404 = vadd.f32 %v2245, %v2403
    %v2405 = vtanh.pop %v2404
    %v2406 = vsub.f32 1.0, %v2402
    %v2407 = vmul.f32 %v2406, %v2405
    %v2408 = vmul.f32 %v2402, %v1944
    %v2409 = vadd.f32 %v2407, %v2408
    %2410 = vmatprep.subr.mxu0 %v817
    %2411 = vmatpush1.msra.mxu0 %v816
    %2412 = vmatprep.subr.mxu0 %v820
    %2413 = vmatpush1.msra.mxu0 %v819
    %2414 = vmatprep.subr.mxu0 %v823
    %2415 = vmatpush1.msra.mxu0 %v822
    %2416 = vmatprep.subr.mxu0 %v826
    %2417 = vmatpush1.msra.mxu0 %v825
    %2418 = vmatprep.subr.mxu0 %v829
    %2419 = vmatpush1.msra.mxu0 %v828
    %2420 = vmatprep.subr.mxu0 %v832
    %2421 = vmatpush1.msra.mxu0 %v831
    %2422 = vmatprep.subr.mxu0 %v835
    %2423 = vmatpush1.msra.mxu0 %v834
    %2424 = vmatprep.subr.mxu0 %v838
    %2425 = vmatpush1.msra.mxu0 %v837
    %2426 = vmatprep.subr.mxu0 %v841
    %2427 = vmatpush1.msra.mxu0 %v840
    %2428 = vmatprep.subr.mxu0 %v844
    %2429 = vmatpush1.msra.mxu0 %v843
    %2430 = vmatprep.subr.mxu0 %v847
    %2431 = vmatpush1.msra.mxu0 %v846
    %2432 = vmatprep.subr.mxu0 %v850
    %2433 = vmatpush1.msra.mxu0 %v849
    %2434 = vmatprep.subr.mxu0 %v853
    %2435 = vmatpush1.msra.mxu0 %v852
    %2436 = vmatprep.subr.mxu0 %v856
    %2437 = vmatpush1.msra.mxu0 %v855
    %2438 = vmatprep.subr.mxu0 %v859
    %2439 = vmatpush1.msra.mxu0 %v858
    %2440 = vmatprep.subr.mxu0 %v862
    %2441 = vmatpush1.msra.mxu0 %v861
    %2442 = vmatprep.subr.mxu0 0.0
    %2443 = vmatpush1.msra.mxu0 0.0
    %2444 = vmatprep.subr.mxu0 0.0
    %2445 = vmatpush1.msra.mxu0 0.0
    %2446 = vmatprep.subr.mxu0 0.0
    %2447 = vmatpush1.msra.mxu0 0.0
    %2448 = vmatprep.subr.mxu0 0.0
    %2449 = vmatpush1.msra.mxu0 0.0
    %2450 = vmatprep.subr.mxu0 0.0
    %2451 = vmatpush1.msra.mxu0 0.0
    %2452 = vmatprep.subr.mxu0 0.0
    %2453 = vmatpush1.msra.mxu0 0.0
    %2454 = vmatprep.subr.mxu0 0.0
    %2455 = vmatpush1.msra.mxu0 0.0
    %2456 = vmatprep.subr.mxu0 0.0
    %2457 = vmatpush1.msra.mxu0 0.0
    %2458 = vmatprep.subr.mxu0 0.0
    %2459 = vmatpush1.msra.mxu0 0.0
    %2460 = vmatprep.subr.mxu0 0.0
    %2461 = vmatpush1.msra.mxu0 0.0
    %2462 = vmatprep.subr.mxu0 0.0
    %2463 = vmatpush1.msra.mxu0 0.0
    %2464 = vmatprep.subr.mxu0 0.0
    %2465 = vmatpush1.msra.mxu0 0.0
    %2466 = vmatprep.subr.mxu0 0.0
    %2467 = vmatpush1.msra.mxu0 0.0
    %2468 = vmatprep.subr.mxu0 0.0
    %2469 = vmatpush1.msra.mxu0 0.0
    %2470 = vmatprep.subr.mxu0 0.0
    %2471 = vmatpush1.msra.mxu0 0.0
    %2472 = vmatprep.subr.mxu0 0.0
    %2473 = vmatpush1.msra.mxu0 0.0
    %2474 = vmatprep.mubr.f32.mxu0 0.0
    %2475 = vmatmul.mubr.f32.gmra.mrb[0].mxu0 %v2106
    %v2476 = vpop.f32.mrb[0].mxu0
    %v2477 = vadd.f32 %v869, %v2476
    %v2478 = vpop.f32.mrb[0].mxu0
    %v2479 = vadd.f32 %v873, %v2478
    %2480 = vdwg.mxu0
    %2481 = vmatprep.subr.mxu0 0.0
    %2482 = vmatpush1.msra.mxu0 %v818
    %2483 = vmatprep.subr.mxu0 0.0
    %2484 = vmatpush1.msra.mxu0 %v821
    %2485 = vmatprep.subr.mxu0 0.0
    %2486 = vmatpush1.msra.mxu0 %v824
    %2487 = vmatprep.subr.mxu0 0.0
    %2488 = vmatpush1.msra.mxu0 %v827
    %2489 = vmatprep.subr.mxu0 0.0
    %2490 = vmatpush1.msra.mxu0 %v830
    %2491 = vmatprep.subr.mxu0 0.0
    %2492 = vmatpush1.msra.mxu0 %v833
    %2493 = vmatprep.subr.mxu0 0.0
    %2494 = vmatpush1.msra.mxu0 %v836
    %2495 = vmatprep.subr.mxu0 0.0
    %2496 = vmatpush1.msra.mxu0 %v839
    %2497 = vmatprep.subr.mxu0 0.0
    %2498 = vmatpush1.msra.mxu0 %v842
    %2499 = vmatprep.subr.mxu0 0.0
    %2500 = vmatpush1.msra.mxu0 %v845
    %2501 = vmatprep.subr.mxu0 0.0
    %2502 = vmatpush1.msra.mxu0 %v848
    %2503 = vmatprep.subr.mxu0 0.0
    %2504 = vmatpush1.msra.mxu0 %v851
    %2505 = vmatprep.subr.mxu0 0.0
    %2506 = vmatpush1.msra.mxu0 %v854
    %2507 = vmatprep.subr.mxu0 0.0
    %2508 = vmatpush1.msra.mxu0 %v857
    %2509 = vmatprep.subr.mxu0 0.0
    %2510 = vmatpush1.msra.mxu0 %v860
    %2511 = vmatprep.subr.mxu0 0.0
    %2512 = vmatpush1.msra.mxu0 %v863
    %2513 = vmatprep.subr.mxu0 0.0
    %2514 = vmatpush1.msra.mxu0 0.0
    %2515 = vmatprep.subr.mxu0 0.0
    %2516 = vmatpush1.msra.mxu0 0.0
    %2517 = vmatprep.subr.mxu0 0.0
    %2518 = vmatpush1.msra.mxu0 0.0
    %2519 = vmatprep.subr.mxu0 0.0
    %2520 = vmatpush1.msra.mxu0 0.0
    %2521 = vmatprep.subr.mxu0 0.0
    %2522 = vmatpush1.msra.mxu0 0.0
    %2523 = vmatprep.subr.mxu0 0.0
    %2524 = vmatpush1.msra.mxu0 0.0
    %2525 = vmatprep.subr.mxu0 0.0
    %2526 = vmatpush1.msra.mxu0 0.0
    %2527 = vmatprep.subr.mxu0 0.0
    %2528 = vmatpush1.msra.mxu0 0.0
    %2529 = vmatprep.subr.mxu0 0.0
    %2530 = vmatpush1.msra.mxu0 0.0
    %2531 = vmatprep.subr.mxu0 0.0
    %2532 = vmatpush1.msra.mxu0 0.0
    %2533 = vmatprep.subr.mxu0 0.0
    %2534 = vmatpush1.msra.mxu0 0.0
    %2535 = vmatprep.subr.mxu0 0.0
    %2536 = vmatpush1.msra.mxu0 0.0
    %2537 = vmatprep.subr.mxu0 0.0
    %2538 = vmatpush1.msra.mxu0 0.0
    %2539 = vmatprep.subr.mxu0 0.0
    %2540 = vmatpush1.msra.mxu0 0.0
    %2541 = vmatprep.subr.mxu0 0.0
    %2542 = vmatpush1.msra.mxu0 0.0
    %2543 = vmatprep.subr.mxu0 0.0
    %2544 = vmatpush1.msra.mxu0 0.0
    %2545 = vmatprep.mubr.f32.mxu0 0.0
    %2546 = vmatmul.mubr.f32.gmra.mrb[0].mxu0 %v2106
    %v2547 = vpop.f32.mrb[0].mxu0
    %v2548 = vadd.f32 %v877, %v2547
    %v2549 = vpop.f32.mrb[0].mxu0
    %2550 = vdwg.mxu0
    %v2551 = vadd.f32 %v724, %v2477
    %v2552 = vxor.u32 %v2551, 2147483648
    %v2553 = vmul.f32 %v2552, 1.442695
    %v2554 = vpow.pop %v2553
    %v2555 = vadd.f32 %v2554, 1.0
    %v2556 = vrcp.pop %v2555
    %v2557 = vmul.f32 1.0, %v2556
    %v2558 = vadd.f32 %v726, %v2479
    %v2559 = vxor.u32 %v2558, 2147483648
    %v2560 = vmul.f32 %v2559, 1.442695
    %v2561 = vpow.pop %v2560
    %v2562 = vadd.f32 %v2561, 1.0
    %v2563 = vrcp.pop %v2562
    %v2564 = vmul.f32 1.0, %v2563
    %v2565 = vmul.f32 %v2557, %v2548
    %v2566 = vadd.f32 %v810, %v2565
    %v2567 = vtanh.pop %v2566
    %v2568 = vsub.f32 1.0, %v2564
    %v2569 = vmul.f32 %v2568, %v2567
    %v2570 = vmul.f32 %v2564, %v2106
    %v2571 = vadd.f32 %v2569, %v2570
    %2572 = vmatprep.subr.mxu0 %v1045
    %2573 = vmatpush1.msra.mxu0 %v1044
    %2574 = vmatprep.subr.mxu0 %v1048
    %2575 = vmatpush1.msra.mxu0 %v1047
    %2576 = vmatprep.subr.mxu0 %v1051
    %2577 = vmatpush1.msra.mxu0 %v1050
    %2578 = vmatprep.subr.mxu0 %v1054
    %2579 = vmatpush1.msra.mxu0 %v1053
    %2580 = vmatprep.subr.mxu0 %v1057
    %2581 = vmatpush1.msra.mxu0 %v1056
    %2582 = vmatprep.subr.mxu0 %v1060
    %2583 = vmatpush1.msra.mxu0 %v1059
    %2584 = vmatprep.subr.mxu0 %v1063
    %2585 = vmatpush1.msra.mxu0 %v1062
    %2586 = vmatprep.subr.mxu0 %v1066
    %2587 = vmatpush1.msra.mxu0 %v1065
    %2588 = vmatprep.subr.mxu0 %v1069
    %2589 = vmatpush1.msra.mxu0 %v1068
    %2590 = vmatprep.subr.mxu0 %v1072
    %2591 = vmatpush1.msra.mxu0 %v1071
    %2592 = vmatprep.subr.mxu0 %v1075
    %2593 = vmatpush1.msra.mxu0 %v1074
    %2594 = vmatprep.subr.mxu0 %v1078
    %2595 = vmatpush1.msra.mxu0 %v1077
    %2596 = vmatprep.subr.mxu0 %v1081
    %2597 = vmatpush1.msra.mxu0 %v1080
    %2598 = vmatprep.subr.mxu0 %v1084
    %2599 = vmatpush1.msra.mxu0 %v1083
    %2600 = vmatprep.subr.mxu0 %v1087
    %2601 = vmatpush1.msra.mxu0 %v1086
    %2602 = vmatprep.subr.mxu0 %v1090
    %2603 = vmatpush1.msra.mxu0 %v1089
    %2604 = vmatprep.subr.mxu0 0.0
    %2605 = vmatpush1.msra.mxu0 0.0
    %2606 = vmatprep.subr.mxu0 0.0
    %2607 = vmatpush1.msra.mxu0 0.0
    %2608 = vmatprep.subr.mxu0 0.0
    %2609 = vmatpush1.msra.mxu0 0.0
    %2610 = vmatprep.subr.mxu0 0.0
    %2611 = vmatpush1.msra.mxu0 0.0
    %2612 = vmatprep.subr.mxu0 0.0
    %2613 = vmatpush1.msra.mxu0 0.0
    %2614 = vmatprep.subr.mxu0 0.0
    %2615 = vmatpush1.msra.mxu0 0.0
    %2616 = vmatprep.subr.mxu0 0.0
    %2617 = vmatpush1.msra.mxu0 0.0
    %2618 = vmatprep.subr.mxu0 0.0
    %2619 = vmatpush1.msra.mxu0 0.0
    %2620 = vmatprep.subr.mxu0 0.0
    %2621 = vmatpush1.msra.mxu0 0.0
    %2622 = vmatprep.subr.mxu0 0.0
    %2623 = vmatpush1.msra.mxu0 0.0
    %2624 = vmatprep.subr.mxu0 0.0
    %2625 = vmatpush1.msra.mxu0 0.0
    %2626 = vmatprep.subr.mxu0 0.0
    %2627 = vmatpush1.msra.mxu0 0.0
    %2628 = vmatprep.subr.mxu0 0.0
    %2629 = vmatpush1.msra.mxu0 0.0
    %2630 = vmatprep.subr.mxu0 0.0
    %2631 = vmatpush1.msra.mxu0 0.0
    %2632 = vmatprep.subr.mxu0 0.0
    %2633 = vmatpush1.msra.mxu0 0.0
    %2634 = vmatprep.subr.mxu0 0.0
    %2635 = vmatpush1.msra.mxu0 0.0
    %2636 = vmatprep.mubr.f32.mxu0 0.0
    %2637 = vmatmul.mubr.f32.gmra.mrb[0].mxu0 %v2571
    %v2638 = vpop.f32.mrb[0].mxu0
    %v2639 = vadd.f32 %v1098, %v2638
    %v2640 = vpop.f32.mrb[0].mxu0
    %v2641 = vadd.f32 %v1102, %v2640
    %2642 = vdwg.mxu0
    %2643 = vmatprep.subr.mxu0 0.0
    %2644 = vmatpush1.msra.mxu0 %v1046
    %2645 = vmatprep.subr.mxu0 0.0
    %2646 = vmatpush1.msra.mxu0 %v1049
    %2647 = vmatprep.subr.mxu0 0.0
    %2648 = vmatpush1.msra.mxu0 %v1052
    %2649 = vmatprep.subr.mxu0 0.0
    %2650 = vmatpush1.msra.mxu0 %v1055
    %2651 = vmatprep.subr.mxu0 0.0
    %2652 = vmatpush1.msra.mxu0 %v1058
    %2653 = vmatprep.subr.mxu0 0.0
    %2654 = vmatpush1.msra.mxu0 %v1061
    %2655 = vmatprep.subr.mxu0 0.0
    %2656 = vmatpush1.msra.mxu0 %v1064
    %2657 = vmatprep.subr.mxu0 0.0
    %2658 = vmatpush1.msra.mxu0 %v1067
    %2659 = vmatprep.subr.mxu0 0.0
    %2660 = vmatpush1.msra.mxu0 %v1070
    %2661 = vmatprep.subr.mxu0 0.0
    %2662 = vmatpush1.msra.mxu0 %v1073
    %2663 = vmatprep.subr.mxu0 0.0
    %2664 = vmatpush1.msra.mxu0 %v1076
    %2665 = vmatprep.subr.mxu0 0.0
    %2666 = vmatpush1.msra.mxu0 %v1079
    %2667 = vmatprep.subr.mxu0 0.0
    %2668 = vmatpush1.msra.mxu0 %v1082
    %2669 = vmatprep.subr.mxu0 0.0
    %2670 = vmatpush1.msra.mxu0 %v1085
    %2671 = vmatprep.subr.mxu0 0.0
    %2672 = vmatpush1.msra.mxu0 %v1088
    %2673 = vmatprep.subr.mxu0 0.0
    %2674 = vmatpush1.msra.mxu0 %v1091
    %2675 = vmatprep.subr.mxu0 0.0
    %2676 = vmatpush1.msra.mxu0 0.0
    %2677 = vmatprep.subr.mxu0 0.0
    %2678 = vmatpush1.msra.mxu0 0.0
    %2679 = vmatprep.subr.mxu0 0.0
    %2680 = vmatpush1.msra.mxu0 0.0
    %2681 = vmatprep.subr.mxu0 0.0
    %2682 = vmatpush1.msra.mxu0 0.0
    %2683 = vmatprep.subr.mxu0 0.0
    %2684 = vmatpush1.msra.mxu0 0.0
    %2685 = vmatprep.subr.mxu0 0.0
    %2686 = vmatpush1.msra.mxu0 0.0
    %2687 = vmatprep.subr.mxu0 0.0
    %2688 = vmatpush1.msra.mxu0 0.0
    %2689 = vmatprep.subr.mxu0 0.0
    %2690 = vmatpush1.msra.mxu0 0.0
    %2691 = vmatprep.subr.mxu0 0.0
    %2692 = vmatpush1.msra.mxu0 0.0
    %2693 = vmatprep.subr.mxu0 0.0
    %2694 = vmatpush1.msra.mxu0 0.0
    %2695 = vmatprep.subr.mxu0 0.0
    %2696 = vmatpush1.msra.mxu0 0.0
    %2697 = vmatprep.subr.mxu0 0.0
    %2698 = vmatpush1.msra.mxu0 0.0
    %2699 = vmatprep.subr.mxu0 0.0
    %2700 = vmatpush1.msra.mxu0 0.0
    %2701 = vmatprep.subr.mxu0 0.0
    %2702 = vmatpush1.msra.mxu0 0.0
    %2703 = vmatprep.subr.mxu0 0.0
    %2704 = vmatpush1.msra.mxu0 0.0
    %2705 = vmatprep.subr.mxu0 0.0
    %2706 = vmatpush1.msra.mxu0 0.0
    %2707 = vmatprep.mubr.f32.mxu0 0.0
    %2708 = vmatmul.mubr.f32.gmra.mrb[0].mxu0 %v2571
    %v2709 = vpop.f32.mrb[0].mxu0
    %v2710 = vadd.f32 %v1106, %v2709
    %v2711 = vpop.f32.mrb[0].mxu0
    %2712 = vdwg.mxu0
    %2713 = vmatprep.subr.mxu0 %v1253
    %2714 = vmatpush1.msra.mxu0 %v1252
    %2715 = vmatprep.subr.mxu0 %v1256
    %2716 = vmatpush1.msra.mxu0 %v1255
    %2717 = vmatprep.subr.mxu0 %v1259
    %2718 = vmatpush1.msra.mxu0 %v1258
    %2719 = vmatprep.subr.mxu0 %v1262
    %2720 = vmatpush1.msra.mxu0 %v1261
    %2721 = vmatprep.subr.mxu0 %v1265
    %2722 = vmatpush1.msra.mxu0 %v1264
    %2723 = vmatprep.subr.mxu0 %v1268
    %2724 = vmatpush1.msra.mxu0 %v1267
    %2725 = vmatprep.subr.mxu0 %v1271
    %2726 = vmatpush1.msra.mxu0 %v1270
    %2727 = vmatprep.subr.mxu0 %v1274
    %2728 = vmatpush1.msra.mxu0 %v1273
    %2729 = vmatprep.subr.mxu0 %v1277
    %2730 = vmatpush1.msra.mxu0 %v1276
    %2731 = vmatprep.subr.mxu0 %v1280
    %2732 = vmatpush1.msra.mxu0 %v1279
    %2733 = vmatprep.subr.mxu0 %v1283
    %2734 = vmatpush1.msra.mxu0 %v1282
    %2735 = vmatprep.subr.mxu0 %v1286
    %2736 = vmatpush1.msra.mxu0 %v1285
    %2737 = vmatprep.subr.mxu0 %v1289
    %2738 = vmatpush1.msra.mxu0 %v1288
    %2739 = vmatprep.subr.mxu0 %v1292
    %2740 = vmatpush1.msra.mxu0 %v1291
    %2741 = vmatprep.subr.mxu0 %v1295
    %2742 = vmatpush1.msra.mxu0 %v1294
    %2743 = vmatprep.subr.mxu0 %v1298
    %2744 = vmatpush1.msra.mxu0 %v1297
    %2745 = vmatprep.subr.mxu0 0.0
    %2746 = vmatpush1.msra.mxu0 0.0
    %2747 = vmatprep.subr.mxu0 0.0
    %2748 = vmatpush1.msra.mxu0 0.0
    %2749 = vmatprep.subr.mxu0 0.0
    %2750 = vmatpush1.msra.mxu0 0.0
    %2751 = vmatprep.subr.mxu0 0.0
    %2752 = vmatpush1.msra.mxu0 0.0
    %2753 = vmatprep.subr.mxu0 0.0
    %2754 = vmatpush1.msra.mxu0 0.0
    %2755 = vmatprep.subr.mxu0 0.0
    %2756 = vmatpush1.msra.mxu0 0.0
    %2757 = vmatprep.subr.mxu0 0.0
    %2758 = vmatpush1.msra.mxu0 0.0
    %2759 = vmatprep.subr.mxu0 0.0
    %2760 = vmatpush1.msra.mxu0 0.0
    %2761 = vmatprep.subr.mxu0 0.0
    %2762 = vmatpush1.msra.mxu0 0.0
    %2763 = vmatprep.subr.mxu0 0.0
    %2764 = vmatpush1.msra.mxu0 0.0
    %2765 = vmatprep.subr.mxu0 0.0
    %2766 = vmatpush1.msra.mxu0 0.0
    %2767 = vmatprep.subr.mxu0 0.0
    %2768 = vmatpush1.msra.mxu0 0.0
    %2769 = vmatprep.subr.mxu0 0.0
    %2770 = vmatpush1.msra.mxu0 0.0
    %2771 = vmatprep.subr.mxu0 0.0
    %2772 = vmatpush1.msra.mxu0 0.0
    %2773 = vmatprep.subr.mxu0 0.0
    %2774 = vmatpush1.msra.mxu0 0.0
    %2775 = vmatprep.subr.mxu0 0.0
    %2776 = vmatpush1.msra.mxu0 0.0
    %2777 = vmatprep.mubr.f32.mxu0 0.0
    %2778 = vmatmul.mubr.f32.gmra.mrb[0].mxu0 %v2409
    %v2779 = vpop.f32.mrb[0].mxu0
    %v2780 = vadd.f32 %v1306, %v2779
    %v2781 = vpop.f32.mrb[0].mxu0
    %v2782 = vadd.f32 %v1310, %v2781
    %2783 = vdwg.mxu0
    %2784 = vmatprep.subr.mxu0 0.0
    %2785 = vmatpush1.msra.mxu0 %v1254
    %2786 = vmatprep.subr.mxu0 0.0
    %2787 = vmatpush1.msra.mxu0 %v1257
    %2788 = vmatprep.subr.mxu0 0.0
    %2789 = vmatpush1.msra.mxu0 %v1260
    %2790 = vmatprep.subr.mxu0 0.0
    %2791 = vmatpush1.msra.mxu0 %v1263
    %2792 = vmatprep.subr.mxu0 0.0
    %2793 = vmatpush1.msra.mxu0 %v1266
    %2794 = vmatprep.subr.mxu0 0.0
    %2795 = vmatpush1.msra.mxu0 %v1269
    %2796 = vmatprep.subr.mxu0 0.0
    %2797 = vmatpush1.msra.mxu0 %v1272
    %2798 = vmatprep.subr.mxu0 0.0
    %2799 = vmatpush1.msra.mxu0 %v1275
    %2800 = vmatprep.subr.mxu0 0.0
    %2801 = vmatpush1.msra.mxu0 %v1278
    %2802 = vmatprep.subr.mxu0 0.0
    %2803 = vmatpush1.msra.mxu0 %v1281
    %2804 = vmatprep.subr.mxu0 0.0
    %2805 = vmatpush1.msra.mxu0 %v1284
    %2806 = vmatprep.subr.mxu0 0.0
    %2807 = vmatpush1.msra.mxu0 %v1287
    %2808 = vmatprep.subr.mxu0 0.0
    %2809 = vmatpush1.msra.mxu0 %v1290
    %2810 = vmatprep.subr.mxu0 0.0
    %2811 = vmatpush1.msra.mxu0 %v1293
    %2812 = vmatprep.subr.mxu0 0.0
    %2813 = vmatpush1.msra.mxu0 %v1296
    %2814 = vmatprep.subr.mxu0 0.0
    %2815 = vmatpush1.msra.mxu0 %v1299
    %2816 = vmatprep.subr.mxu0 0.0
    %2817 = vmatpush1.msra.mxu0 0.0
    %2818 = vmatprep.subr.mxu0 0.0
    %2819 = vmatpush1.msra.mxu0 0.0
    %2820 = vmatprep.subr.mxu0 0.0
    %2821 = vmatpush1.msra.mxu0 0.0
    %2822 = vmatprep.subr.mxu0 0.0
    %2823 = vmatpush1.msra.mxu0 0.0
    %2824 = vmatprep.subr.mxu0 0.0
    %2825 = vmatpush1.msra.mxu0 0.0
    %2826 = vmatprep.subr.mxu0 0.0
    %2827 = vmatpush1.msra.mxu0 0.0
    %2828 = vmatprep.subr.mxu0 0.0
    %2829 = vmatpush1.msra.mxu0 0.0
    %2830 = vmatprep.subr.mxu0 0.0
    %2831 = vmatpush1.msra.mxu0 0.0
    %2832 = vmatprep.subr.mxu0 0.0
    %2833 = vmatpush1.msra.mxu0 0.0
    %2834 = vmatprep.subr.mxu0 0.0
    %2835 = vmatpush1.msra.mxu0 0.0
    %2836 = vmatprep.subr.mxu0 0.0
    %2837 = vmatpush1.msra.mxu0 0.0
    %2838 = vmatprep.subr.mxu0 0.0
    %2839 = vmatpush1.msra.mxu0 0.0
    %2840 = vmatprep.subr.mxu0 0.0
    %2841 = vmatpush1.msra.mxu0 0.0
    %2842 = vmatprep.subr.mxu0 0.0
    %2843 = vmatpush1.msra.mxu0 0.0
    %2844 = vmatprep.subr.mxu0 0.0
    %2845 = vmatpush1.msra.mxu0 0.0
    %2846 = vmatprep.subr.mxu0 0.0
    %2847 = vmatpush1.msra.mxu0 0.0
    %2848 = vmatprep.mubr.f32.mxu0 0.0
    %2849 = vmatmul.mubr.f32.gmra.mrb[0].mxu0 %v2409
    %v2850 = vpop.f32.mrb[0].mxu0
    %v2851 = vadd.f32 %v1314, %v2850
    %v2852 = vpop.f32.mrb[0].mxu0
    %2853 = vdwg.mxu0
    %v2854 = vadd.f32 %v2639, %v2780
    %v2855 = vxor.u32 %v2854, 2147483648
    %v2856 = vmul.f32 %v2855, 1.442695
    %v2857 = vpow.pop %v2856
    %v2858 = vadd.f32 %v2857, 1.0
    %v2859 = vrcp.pop %v2858
    %v2860 = vmul.f32 1.0, %v2859
    %v2861 = vadd.f32 %v2641, %v2782
    %v2862 = vxor.u32 %v2861, 2147483648
    %v2863 = vmul.f32 %v2862, 1.442695
    %v2864 = vpow.pop %v2863
    %v2865 = vadd.f32 %v2864, 1.0
    %v2866 = vrcp.pop %v2865
    %v2867 = vmul.f32 1.0, %v2866
    %v2868 = vmul.f32 %v2860, %v2851
    %v2869 = vadd.f32 %v2710, %v2868
    %v2870 = vtanh.pop %v2869
    %v2871 = vsub.f32 1.0, %v2867
    %v2872 = vmul.f32 %v2871, %v2870
    %v2873 = vmul.f32 %v2867, %v2409
    %v2874 = vadd.f32 %v2872, %v2873
    %2875 = vst [vmem:[%s19] sm:$0xff] %v2571
    %s2876 = scalar_lea.vmem %s19, 8
    %2877 = vst [vmem:[%s2876] sm:$0xff] %v2874
    %v2878 = vld [vmem:[#allocation13] sm:$0xff]
    %v2879 = vld [vmem:[#allocation13 + $0x8] sm:$0xff]
    %v2880 = vld [vmem:[#allocation13 + $0x10] sm:$0xff]
    %v2881 = vld [vmem:[#allocation13 + $0x18] sm:$0xff]
    %v2882 = vld [vmem:[#allocation13 + $0x20] sm:$0xff]
    %v2883 = vld [vmem:[#allocation13 + $0x28] sm:$0xff]
    %v2884 = vld [vmem:[#allocation13 + $0x30] sm:$0xff]
    %v2885 = vld [vmem:[#allocation13 + $0x38] sm:$0xff]
    %v2886 = vld [vmem:[#allocation13 + $0x40] sm:$0xff]
    %v2887 = vld [vmem:[#allocation13 + $0x48] sm:$0xff]
    %v2888 = vld [vmem:[#allocation13 + $0x50] sm:$0xff]
    %v2889 = vld [vmem:[#allocation13 + $0x58] sm:$0xff]
    %v2890 = vld [vmem:[#allocation13 + $0x60] sm:$0xff]
    %v2891 = vld [vmem:[#allocation13 + $0x68] sm:$0xff]
    %v2892 = vld [vmem:[#allocation13 + $0x70] sm:$0xff]
    %v2893 = vld [vmem:[#allocation13 + $0x78] sm:$0xff]
    %v2894 = vld [vmem:[#allocation15] sm:$0x1]
    %v2896 = vlaneseq
    %v2897 = vshrl.u32 %v2896, 7
    %v2898 = vsub.s32 0, %v2897
    %v2899 = vrot.slane %v2894, %v2898
    %2901 = vmatprep.subr.mxu0 0.0
    %2902 = vmatpush1.msra.mxu0 %v2878
    %2903 = vmatprep.subr.mxu0 0.0
    %2904 = vmatpush1.msra.mxu0 %v2879
    %2905 = vmatprep.subr.mxu0 0.0
    %2906 = vmatpush1.msra.mxu0 %v2880
    %2907 = vmatprep.subr.mxu0 0.0
    %2908 = vmatpush1.msra.mxu0 %v2881
    %2909 = vmatprep.subr.mxu0 0.0
    %2910 = vmatpush1.msra.mxu0 %v2882
    %2911 = vmatprep.subr.mxu0 0.0
    %2912 = vmatpush1.msra.mxu0 %v2883
    %2913 = vmatprep.subr.mxu0 0.0
    %2914 = vmatpush1.msra.mxu0 %v2884
    %2915 = vmatprep.subr.mxu0 0.0
    %2916 = vmatpush1.msra.mxu0 %v2885
    %2917 = vmatprep.subr.mxu0 0.0
    %2918 = vmatpush1.msra.mxu0 %v2886
    %2919 = vmatprep.subr.mxu0 0.0
    %2920 = vmatpush1.msra.mxu0 %v2887
    %2921 = vmatprep.subr.mxu0 0.0
    %2922 = vmatpush1.msra.mxu0 %v2888
    %2923 = vmatprep.subr.mxu0 0.0
    %2924 = vmatpush1.msra.mxu0 %v2889
    %2925 = vmatprep.subr.mxu0 0.0
    %2926 = vmatpush1.msra.mxu0 %v2890
    %2927 = vmatprep.subr.mxu0 0.0
    %2928 = vmatpush1.msra.mxu0 %v2891
    %2929 = vmatprep.subr.mxu0 0.0
    %2930 = vmatpush1.msra.mxu0 %v2892
    %2931 = vmatprep.subr.mxu0 0.0
    %2932 = vmatpush1.msra.mxu0 %v2893
    %2933 = vmatprep.subr.mxu0 0.0
    %2934 = vmatpush1.msra.mxu0 0.0
    %2935 = vmatprep.subr.mxu0 0.0
    %2936 = vmatpush1.msra.mxu0 0.0
    %2937 = vmatprep.subr.mxu0 0.0
    %2938 = vmatpush1.msra.mxu0 0.0
    %2939 = vmatprep.subr.mxu0 0.0
    %2940 = vmatpush1.msra.mxu0 0.0
    %2941 = vmatprep.subr.mxu0 0.0
    %2942 = vmatpush1.msra.mxu0 0.0
    %2943 = vmatprep.subr.mxu0 0.0
    %2944 = vmatpush1.msra.mxu0 0.0
    %2945 = vmatprep.subr.mxu0 0.0
    %2946 = vmatpush1.msra.mxu0 0.0
    %2947 = vmatprep.subr.mxu0 0.0
    %2948 = vmatpush1.msra.mxu0 0.0
    %2949 = vmatprep.subr.mxu0 0.0
    %2950 = vmatpush1.msra.mxu0 0.0
    %2951 = vmatprep.subr.mxu0 0.0
    %2952 = vmatpush1.msra.mxu0 0.0
    %2953 = vmatprep.subr.mxu0 0.0
    %2954 = vmatpush1.msra.mxu0 0.0
    %2955 = vmatprep.subr.mxu0 0.0
    %2956 = vmatpush1.msra.mxu0 0.0
    %2957 = vmatprep.subr.mxu0 0.0
    %2958 = vmatpush1.msra.mxu0 0.0
    %2959 = vmatprep.subr.mxu0 0.0
    %2960 = vmatpush1.msra.mxu0 0.0
    %2961 = vmatprep.subr.mxu0 0.0
    %2962 = vmatpush1.msra.mxu0 0.0
    %2963 = vmatprep.subr.mxu0 0.0
    %2964 = vmatpush1.msra.mxu0 0.0
    %2965 = vmatprep.mubr.f32.mxu0 0.0
    %2966 = vmatmul.mubr.f32.gmra.mrb[0].mxu0 %v570
    %v2967 = vpop.f32.mrb[0].mxu0
    %v2968 = vadd.f32 %v2899, %v2967
    %v2969 = vpop.f32.mrb[0].mxu0
    %2970 = vmatprep.mubr.f32.mxu0 0.0
    %2971 = vmatmul.mubr.f32.gmra.mrb[0].mxu0 %v571
    %v2972 = vpop.f32.mrb[0].mxu0
    %v2973 = vadd.f32 %v2899, %v2972
    %v2974 = vpop.f32.mrb[0].mxu0
    %2975 = vmatprep.mubr.f32.mxu0 0.0
    %2976 = vmatmul.mubr.f32.gmra.mrb[0].mxu0 %v572
    %v2977 = vpop.f32.mrb[0].mxu0
    %v2978 = vadd.f32 %v2899, %v2977
    %v2979 = vpop.f32.mrb[0].mxu0
    %2980 = vmatprep.mubr.f32.mxu0 0.0
    %2981 = vmatmul.mubr.f32.gmra.mrb[0].mxu0 %v573
    %v2982 = vpop.f32.mrb[0].mxu0
    %v2983 = vadd.f32 %v2899, %v2982
    %v2984 = vpop.f32.mrb[0].mxu0
    %2985 = vdwg.mxu0
    %v2986 = vxor.u32 %v2968, 2147483648
    %v2987 = vxor.u32 %v2973, 2147483648
    %v2988 = vxor.u32 %v2978, 2147483648
    %v2989 = vxor.u32 %v2983, 2147483648
    %v2990 = vmul.f32 %v2986, 1.442695
    %v2991 = vpow.pop %v2990
    %v2992 = vmul.f32 %v2987, 1.442695
    %v2993 = vpow.pop %v2992
    %v2994 = vmul.f32 %v2988, 1.442695
    %v2995 = vpow.pop %v2994
    %v2996 = vmul.f32 %v2989, 1.442695
    %v2997 = vpow.pop %v2996
    %v2998 = vadd.f32 %v2991, 1.0
    %v2999 = vadd.f32 %v2993, 1.0
    %v3000 = vadd.f32 %v2995, 1.0
    %v3001 = vadd.f32 %v2997, 1.0
    %v3002 = vrcp.pop %v2998
    %v3003 = vmul.f32 1.0, %v3002
    %v3004 = vrcp.pop %v2999
    %v3005 = vmul.f32 1.0, %v3004
    %v3006 = vrcp.pop %v3000
    %v3007 = vmul.f32 1.0, %v3006
    %v3008 = vrcp.pop %v3001
    %v3009 = vmul.f32 1.0, %v3008
    %v3010 = vmul.f32 %v3003, %v1479
    %v3011 = vmul.f32 %v3005, %v1944
    %v3012 = vmul.f32 %v3007, %v2409
    %v3013 = vmul.f32 %v3009, %v2874
    %v3014 = vadd.f32 %v570, %v3010
    %v3015 = vadd.f32 %v571, %v3011
    %v3016 = vadd.f32 %v572, %v3012
    %v3017 = vadd.f32 %v573, %v3013
    %v3018 = vld [vmem:[#allocation16] sm:$0xff]
    %v3019 = vld [vmem:[#allocation16 + $0x8] sm:$0xff]
    %v3020 = vld [vmem:[#allocation16 + $0x10] sm:$0xff]
    %v3021 = vld [vmem:[#allocation16 + $0x18] sm:$0xff]
    %v3022 = vld [vmem:[#allocation16 + $0x20] sm:$0xff]
    %v3023 = vld [vmem:[#allocation16 + $0x28] sm:$0xff]
    %v3024 = vld [vmem:[#allocation16 + $0x30] sm:$0xff]
    %v3025 = vld [vmem:[#allocation16 + $0x38] sm:$0xff]
    %v3026 = vld [vmem:[#allocation16 + $0x40] sm:$0xff]
    %v3027 = vld [vmem:[#allocation16 + $0x48] sm:$0xff]
    %v3028 = vld [vmem:[#allocation16 + $0x50] sm:$0xff]
    %v3029 = vld [vmem:[#allocation16 + $0x58] sm:$0xff]
    %v3030 = vld [vmem:[#allocation16 + $0x60] sm:$0xff]
    %v3031 = vld [vmem:[#allocation16 + $0x68] sm:$0xff]
    %v3032 = vld [vmem:[#allocation16 + $0x70] sm:$0xff]
    %v3033 = vld [vmem:[#allocation16 + $0x78] sm:$0xff]
    %v3034 = vld [vmem:[#allocation18] sm:$0x1]
    %v3036 = vlaneseq
    %v3037 = vshrl.u32 %v3036, 7
    %v3038 = vsub.s32 0, %v3037
    %v3039 = vrot.slane %v3034, %v3038
    %3041 = vmatprep.subr.mxu0 0.0
    %3042 = vmatpush1.msra.mxu0 %v3018
    %3043 = vmatprep.subr.mxu0 0.0
    %3044 = vmatpush1.msra.mxu0 %v3019
    %3045 = vmatprep.subr.mxu0 0.0
    %3046 = vmatpush1.msra.mxu0 %v3020
    %3047 = vmatprep.subr.mxu0 0.0
    %3048 = vmatpush1.msra.mxu0 %v3021
    %3049 = vmatprep.subr.mxu0 0.0
    %3050 = vmatpush1.msra.mxu0 %v3022
    %3051 = vmatprep.subr.mxu0 0.0
    %3052 = vmatpush1.msra.mxu0 %v3023
    %3053 = vmatprep.subr.mxu0 0.0
    %3054 = vmatpush1.msra.mxu0 %v3024
    %3055 = vmatprep.subr.mxu0 0.0
    %3056 = vmatpush1.msra.mxu0 %v3025
    %3057 = vmatprep.subr.mxu0 0.0
    %3058 = vmatpush1.msra.mxu0 %v3026
    %3059 = vmatprep.subr.mxu0 0.0
    %3060 = vmatpush1.msra.mxu0 %v3027
    %3061 = vmatprep.subr.mxu0 0.0
    %3062 = vmatpush1.msra.mxu0 %v3028
    %3063 = vmatprep.subr.mxu0 0.0
    %3064 = vmatpush1.msra.mxu0 %v3029
    %3065 = vmatprep.subr.mxu0 0.0
    %3066 = vmatpush1.msra.mxu0 %v3030
    %3067 = vmatprep.subr.mxu0 0.0
    %3068 = vmatpush1.msra.mxu0 %v3031
    %3069 = vmatprep.subr.mxu0 0.0
    %3070 = vmatpush1.msra.mxu0 %v3032
    %3071 = vmatprep.subr.mxu0 0.0
    %3072 = vmatpush1.msra.mxu0 %v3033
    %3073 = vmatprep.subr.mxu0 0.0
    %3074 = vmatpush1.msra.mxu0 0.0
    %3075 = vmatprep.subr.mxu0 0.0
    %3076 = vmatpush1.msra.mxu0 0.0
    %3077 = vmatprep.subr.mxu0 0.0
    %3078 = vmatpush1.msra.mxu0 0.0
    %3079 = vmatprep.subr.mxu0 0.0
    %3080 = vmatpush1.msra.mxu0 0.0
    %3081 = vmatprep.subr.mxu0 0.0
    %3082 = vmatpush1.msra.mxu0 0.0
    %3083 = vmatprep.subr.mxu0 0.0
    %3084 = vmatpush1.msra.mxu0 0.0
    %3085 = vmatprep.subr.mxu0 0.0
    %3086 = vmatpush1.msra.mxu0 0.0
    %3087 = vmatprep.subr.mxu0 0.0
    %3088 = vmatpush1.msra.mxu0 0.0
    %3089 = vmatprep.subr.mxu0 0.0
    %3090 = vmatpush1.msra.mxu0 0.0
    %3091 = vmatprep.subr.mxu0 0.0
    %3092 = vmatpush1.msra.mxu0 0.0
    %3093 = vmatprep.subr.mxu0 0.0
    %3094 = vmatpush1.msra.mxu0 0.0
    %3095 = vmatprep.subr.mxu0 0.0
    %3096 = vmatpush1.msra.mxu0 0.0
    %3097 = vmatprep.subr.mxu0 0.0
    %3098 = vmatpush1.msra.mxu0 0.0
    %3099 = vmatprep.subr.mxu0 0.0
    %3100 = vmatpush1.msra.mxu0 0.0
    %3101 = vmatprep.subr.mxu0 0.0
    %3102 = vmatpush1.msra.mxu0 0.0
    %3103 = vmatprep.subr.mxu0 0.0
    %3104 = vmatpush1.msra.mxu0 0.0
    %3105 = vmatprep.mubr.f32.mxu0 0.0
    %3106 = vmatmul.mubr.f32.gmra.mrb[0].mxu0 %v3014
    %v3107 = vpop.f32.mrb[0].mxu0
    %v3108 = vadd.f32 %v3039, %v3107
    %v3109 = vpop.f32.mrb[0].mxu0
    %3110 = vmatprep.mubr.f32.mxu0 0.0
    %3111 = vmatmul.mubr.f32.gmra.mrb[0].mxu0 %v3015
    %v3112 = vpop.f32.mrb[0].mxu0
    %v3113 = vadd.f32 %v3039, %v3112
    %v3114 = vpop.f32.mrb[0].mxu0
    %3115 = vmatprep.mubr.f32.mxu0 0.0
    %3116 = vmatmul.mubr.f32.gmra.mrb[0].mxu0 %v3016
    %v3117 = vpop.f32.mrb[0].mxu0
    %v3118 = vadd.f32 %v3039, %v3117
    %v3119 = vpop.f32.mrb[0].mxu0
    %3120 = vmatprep.mubr.f32.mxu0 0.0
    %3121 = vmatmul.mubr.f32.gmra.mrb[0].mxu0 %v3017
    %v3122 = vpop.f32.mrb[0].mxu0
    %v3123 = vadd.f32 %v3039, %v3122
    %v3124 = vpop.f32.mrb[0].mxu0
    %3125 = vdwg.mxu0
    %3126 = vst [vmem:[%s18] sm:$0xff] %v3108
    %3127 = vst [vmem:[%s18 + $0x8] sm:$0xff] %v3113
    %3128 = vst [vmem:[%s18 + $0x10] sm:$0xff] %v3118
    %3129 = vst [vmem:[%s18 + $0x18] sm:$0xff] %v3123
    // Predicated region
    $region118: #{actor_critic_forward.2} parent=1 // pred_check
      _
    $region119: #{actor_critic_forward.2} parent=1 // pred_check_branch
      %3131 = sbr.rel (0) target = $region121
    $region120: #{actor_critic_forward.2} parent=1 // pred_region
      _
    $region121: #{actor_critic_forward.2} parent=1 // pred_fallthru
      _
    // Predicated region
    $region122: #{actor_critic_forward.2} parent=1 // pred_check
      _
    $region123: #{actor_critic_forward.2} parent=1 // pred_check_branch
      %3133 = sbr.rel (0) target = $region125
    $region124: #{actor_critic_forward.2} parent=1 // pred_region
      _
    $region125: #{actor_critic_forward.2} parent=1 // pred_fallthru
      _
    // Predicated region
    $region126: #{actor_critic_forward.2} parent=1 // pred_check
      _
    $region127: #{actor_critic_forward.2} parent=1 // pred_check_branch
      %3135 = sbr.rel (0) target = $region129
    $region128: #{actor_critic_forward.2} parent=1 // pred_region
      _
    $region129: #{actor_critic_forward.2} parent=1 // pred_fallthru
      _
    // Predicated region
    $region130: #{actor_critic_forward.2} parent=1 // pred_check
      _
    $region131: #{actor_critic_forward.2} parent=1 // pred_check_branch
      %3137 = sbr.rel (0) target = $region133
    $region132: #{actor_critic_forward.2} parent=1 // pred_region
      _
    $region133: #{actor_critic_forward.2} parent=1 // pred_fallthru
      _
    %3138 = vsyncpa [#allocation3], 1
    %3139 = vsyncpa [#allocation5], 1
    %3140 = vsyncpa [#allocation8], 1
    %3141 = vsyncpa [#allocation11], 1
    %3142 = vsyncpa [#allocation14], 1
    %3143 = vsyncpa [#allocation17], 1

</llo_original>
